<compile_context>
chip_gen: v5e
topology: v5e:2x2
jax: 0.10.0
libtpu: 0.0.40
codegen_flags: <defaults>
</compile_context>

<pallas_src>
import jax
import jax.numpy as jnp
import numpy as np
from jax import lax
from jax.experimental import pallas as pl
from jax.experimental.pallas import tpu as pltpu

HP = 128   # per-gate padded hidden width (one full 128-lane vreg per gate)
OP = 128   # padded FC output width (lane-dense output store)
BC = 8     # sequences per grid step (fills 8 MXU rows / one sublane tile)


def gru_fc_softmax_kernel(ids_ref, emb_ref, wih_ref, bih_ref, whh_ref,
                          bhh_ref, wfc_ref, bfc_ref, out_ref, gi_ref):
    """One grid step = BC sequences: embed -> GRU (PyTorch gate order r,z,n)
    -> FC -> softmax.

    ids_ref : (Bp, S)      int32 token ids in SMEM (scalar prefetch)
    emb_ref : (V, E)       f32 embedding table (VMEM resident)
    wih_ref : (E, 3*Hp)    W_ih^T, each gate padded to Hp lanes
    bih_ref : (1, 3*Hp)    f32
    whh_ref : (Hp, 3*Hp)   W_hh^T, rows H..Hp and pad lanes zero
    bhh_ref : (1, 3*Hp)    f32
    wfc_ref : (Hp, OP)     W_fc^T, rows H..Hp zero, cols O..OP zero
    bfc_ref : (1, OP)      f32, cols O..OP = -1e30 (pad logits -> softmax 0)
    out_ref : (BC, OP)     softmax probabilities for this chunk
    gi_ref  : (S*BC, 3*Hp) f32 VMEM scratch holding all input projections
    """
    c = pl.program_id(0)
    S = ids_ref.shape[1]
    V = emb_ref.shape[0]
    Hp = whh_ref.shape[0]
    wdt = wih_ref.dtype

    # ---- in-kernel embedding gather: one-hot x table == exact row select ----
    lane = lax.broadcasted_iota(jnp.int32, (1, V), 1)
    rows = []
    for t in range(S):                 # time-major: row index = t*BC + b
        for b in range(BC):
            tok = ids_ref[c * BC + b, t]          # scalar read from SMEM
            rows.append(jnp.where(lane == tok, 1.0, 0.0))
    onehot = jnp.concatenate(rows, axis=0)                        # (S*BC, V) f32
    x = jnp.dot(onehot, emb_ref[...], preferred_element_type=jnp.float32)

    # ---- all time-step input projections in one MXU pass, parked in VMEM ----
    gi_ref[...] = (jnp.dot(x.astype(wdt), wih_ref[...],
                           preferred_element_type=jnp.float32) + bih_ref[...])

    # ---- recurrence: static unroll, W_hh re-read from VMEM each step --------
    # TODO(synk): v5e-only follow-up: latch W_hh in MXU weight regs across the
    # unroll via pltpu.matmul_push_rhs / matmul_acc_lhs / matmul_pop.
    h = jnp.zeros((BC, Hp), jnp.float32)
    for t in range(S):
        gi = gi_ref[t * BC:(t + 1) * BC, :]        # cheap vld, off the h-chain
        gh = (jnp.dot(h.astype(wdt), whh_ref[...],
                      preferred_element_type=jnp.float32) + bhh_ref[...])
        # 128-lane-aligned gate slices -> whole-vreg views, no lane rotates.
        r = jax.nn.sigmoid(gi[:, 0:Hp] + gh[:, 0:Hp])
        z = jax.nn.sigmoid(gi[:, Hp:2 * Hp] + gh[:, Hp:2 * Hp])
        n = jnp.tanh(gi[:, 2 * Hp:3 * Hp] + r * gh[:, 2 * Hp:3 * Hp])
        h = (1.0 - z) * n + z * h
        # Pad lanes H..Hp: gi = gh = 0 there -> n_pad = 0, h_pad = 0.5*h_pad = 0
        # by induction (h starts at 0), so padding never leaks into valid lanes.

    # ---- FC + softmax (padded to OP lanes; pad logits are -1e30 -> exp = 0) --
    logits = (jnp.dot(h.astype(wdt), wfc_ref[...],
                      preferred_element_type=jnp.float32) + bfc_ref[...])
    m = jnp.max(logits, axis=1, keepdims=True)
    e = jnp.exp(logits - m)
    out_ref[...] = e / jnp.sum(e, axis=1, keepdims=True)


def prepare_params(params, weight_dtype=jnp.bfloat16, hp=HP, op=OP):
    """One-time re-layout: transpose, pad each gate to hp lanes, pad FC output
    to op lanes, and cast matmul weights to `weight_dtype` (biases and gate math
    stay f32; pass jnp.float32 for near-exact parity with the reference)."""
    H = params["w_hh"].shape[1]
    O = params["w_fc"].shape[0]

    def pad_gate_cols(w_t, b):
        in_dim = w_t.shape[0]
        w3 = w_t.reshape(in_dim, 3, H)
        wp = jnp.zeros((in_dim, 3, hp), jnp.float32).at[:, :, :H].set(w3)
        b3 = b.reshape(3, H)
        bp = jnp.zeros((3, hp), jnp.float32).at[:, :H].set(b3)
        return wp.reshape(in_dim, 3 * hp), bp.reshape(1, 3 * hp)

    wih_p, bih_p = pad_gate_cols(params["w_ih"].T, params["b_ih"])          # (E, 3hp)
    whh_t = jnp.zeros((hp, 3 * H), jnp.float32).at[:H, :].set(params["w_hh"].T)
    whh_p, bhh_p = pad_gate_cols(whh_t, params["b_hh"])                     # (hp, 3hp)
    wfc_p = jnp.zeros((hp, op), jnp.float32).at[:H, :O].set(params["w_fc"].T)
    bfc_p = jnp.full((1, op), -1e30, jnp.float32).at[0, :O].set(params["b_fc"])
    return dict(
        emb=params["embedding"].astype(jnp.float32),    # 2 KiB, stays f32
        wih=wih_p.astype(weight_dtype), bih=bih_p,
        whh=whh_p.astype(weight_dtype), bhh=bhh_p,
        wfc=wfc_p.astype(weight_dtype), bfc=bfc_p,
        out_dim=O)


def make_forward(prepped):
    emb, wih, bih = prepped["emb"], prepped["wih"], prepped["bih"]
    whh, bhh = prepped["whh"], prepped["bhh"]
    wfc, bfc = prepped["wfc"], prepped["bfc"]
    O = prepped["out_dim"]
    V, E = emb.shape
    Hp = whh.shape[0]

    def _const(shape):
        zero = tuple(0 for _ in shape)
        return pl.BlockSpec(shape, lambda c, ids, _z=zero: _z)   # weights stay resident

    @jax.jit
    def forward_batch(ids):
        """ids: (B, S) int -> (B, O) softmax probabilities (rows independent)."""
        B, S = ids.shape
        n_chunks = -(-B // BC)
        Bp = n_chunks * BC
        ids_p = jnp.zeros((Bp, S), jnp.int32).at[:B].set(ids.astype(jnp.int32))

        out = pl.pallas_call(
            gru_fc_softmax_kernel,
            out_shape=jax.ShapeDtypeStruct((Bp, OP), jnp.float32),
            grid_spec=pltpu.PrefetchScalarGridSpec(
                num_scalar_prefetch=1,                 # token ids -> SMEM
                grid=(n_chunks,),
                in_specs=[
                    _const((V, E)),                    # embedding table
                    _const((E, 3 * Hp)),               # W_ih^T
                    _const((1, 3 * Hp)),               # b_ih
                    _const((Hp, 3 * Hp)),              # W_hh^T
                    _const((1, 3 * Hp)),               # b_hh
                    _const((Hp, OP)),                  # W_fc^T
                    _const((1, OP)),                   # b_fc
                ],
                out_specs=pl.BlockSpec((BC, OP), lambda c, ids: (c, 0)),
                scratch_shapes=[pltpu.VMEM((S * BC, 3 * Hp), jnp.float32)],
            ),
            compiler_params=pltpu.CompilerParams(
                # Batch-chunk axis is embarrassingly parallel: lets v7x shard it
                # across its two TensorCores (no-op on v5e/v6e).
                dimension_semantics=("parallel",)),
        )(ids_p, emb, wih, bih, whh, bhh, wfc, bfc)
        return out[:B, :O]

    @jax.jit
    def forward(input_sequence):
        """Module-faithful batch=1 forward: (S,) int ids -> (1, O) probs."""
        return forward_batch(input_sequence[None, :])

    return forward, forward_batch


def reference_forward(input_sequence, params):
    """Plain-JAX reference mirroring PyTorch nn.GRU(batch_first) + Linear + Softmax."""
    x = params["embedding"][input_sequence]           # (S, E)
    H = params["w_hh"].shape[1]
    wih, whh = params["w_ih"], params["w_hh"]
    bih, bhh = params["b_ih"], params["b_hh"]

    def step(h, x_t):
        gi = x_t @ wih.T + bih
        gh = h @ whh.T + bhh
        r = jax.nn.sigmoid(gi[0:H] + gh[0:H])
        z = jax.nn.sigmoid(gi[H:2 * H] + gh[H:2 * H])
        n = jnp.tanh(gi[2 * H:3 * H] + r * gh[2 * H:3 * H])
        return (1.0 - z) * n + z * h, None

    h_last, _ = lax.scan(step, jnp.zeros((H,), jnp.float32), x)
    logits = h_last @ params["w_fc"].T + params["b_fc"]
    return jax.nn.softmax(logits)[None, :]


def init_params(key, vocab, emb_dim, hidden, out_dim):
    ks = jax.random.split(key, 7)
    s = 1.0 / np.sqrt(hidden)
    return {
        "embedding": jax.random.normal(ks[0], (vocab, emb_dim), jnp.float32),
        "w_ih": jax.random.uniform(ks[1], (3 * hidden, emb_dim), jnp.float32, -s, s),
        "w_hh": jax.random.uniform(ks[2], (3 * hidden, hidden), jnp.float32, -s, s),
        "b_ih": jax.random.uniform(ks[3], (3 * hidden,), jnp.float32, -s, s),
        "b_hh": jax.random.uniform(ks[4], (3 * hidden,), jnp.float32, -s, s),
        "w_fc": jax.random.uniform(ks[5], (out_dim, hidden), jnp.float32, -s, s),
        "b_fc": jax.random.uniform(ks[6], (out_dim,), jnp.float32, -s, s),
    }


if __name__ == "__main__":
    VOCAB, EMB, HIDDEN, NUM_LAYERS, OUT = 16, 32, 32, 1, 2  # nn.GRU default num_layers=1
    SEQ, BATCH = 8, 16                                      # 16 sequences -> 2 grid chunks

    key = jax.random.PRNGKey(0)
    k_seq, k_par = jax.random.split(key)
    params = init_params(k_par, VOCAB, EMB, HIDDEN, OUT)
    seq_batch = jax.random.randint(k_seq, (BATCH, SEQ), 0, VOCAB, dtype=jnp.int32)
    input_sequence = seq_batch[0]

    ref_single = np.asarray(reference_forward(input_sequence, params))       # (1, O)
    ref_batch = np.concatenate(
        [np.asarray(reference_forward(seq_batch[i], params)) for i in range(BATCH)],
        axis=0)                                                              # (B, O)

    # --- f32-weight configuration: near-exact parity with the reference -------
    # (matches to ~1e-6 in practice; 1e-4 keeps the assert robust to MXU f32
    #  emulation differences across TPU generations)
    fwd32, fwd32_b = make_forward(prepare_params(params, weight_dtype=jnp.float32))
    probs32 = jax.block_until_ready(fwd32(input_sequence))                   # (1, O)
    np.testing.assert_allclose(np.asarray(probs32), ref_single, rtol=1e-4, atol=1e-4)
    probs32_b = jax.block_until_ready(fwd32_b(seq_batch))                    # (B, O)
    np.testing.assert_allclose(np.asarray(probs32_b), ref_batch, rtol=1e-4, atol=1e-4)

    # --- perf configuration: bf16 weights, f32 accumulation & gate math -------
    fwd16, fwd16_b = make_forward(prepare_params(params, weight_dtype=jnp.bfloat16))
    probs16_b = jax.block_until_ready(fwd16_b(seq_batch))
    np.testing.assert_allclose(np.asarray(probs16_b), ref_batch, rtol=5e-2, atol=5e-2)

    # predict() equivalent: argmax over dim=1
    _ = int(jnp.argmax(probs32, axis=1)[0])

    print("KERNEL_OK")
</pallas_src>

<mosaic_0001>
module attributes {stable_mosaic.version = 11 : i64} {
  func.func @gru_fc_softmax_kernel(%arg0: i32, %arg1: memref<8x8xi32, #tpu.memory_space<smem>>, %arg2: memref<16x32xf32, #tpu.memory_space<vmem>>, %arg3: memref<32x384xf32, #tpu.memory_space<vmem>>, %arg4: memref<1x384xf32, #tpu.memory_space<vmem>>, %arg5: memref<128x384xf32, #tpu.memory_space<vmem>>, %arg6: memref<1x384xf32, #tpu.memory_space<vmem>>, %arg7: memref<128x128xf32, #tpu.memory_space<vmem>>, %arg8: memref<1x128xf32, #tpu.memory_space<vmem>>, %arg9: memref<8x128xf32, #tpu.memory_space<vmem>>, %arg10: memref<64x384xf32, #tpu.memory_space<vmem>>) attributes {dimension_semantics = [#tpu.dimension_semantics<parallel>], iteration_bounds = array<i64: 1>, scalar_prefetch = 1 : i64, scratch_operands = 1 : i64, tpu.core_type = #tpu.core_type<tc>, window_params = [{pipeline_mode = #tpu.pipeline_mode<synchronous>, transform_indices = @transform_0, window_bounds = array<i64: 16, 32>}, {pipeline_mode = #tpu.pipeline_mode<synchronous>, transform_indices = @transform_1, window_bounds = array<i64: 32, 384>}, {pipeline_mode = #tpu.pipeline_mode<synchronous>, transform_indices = @transform_2, window_bounds = array<i64: 1, 384>}, {pipeline_mode = #tpu.pipeline_mode<synchronous>, transform_indices = @transform_3, window_bounds = array<i64: 128, 384>}, {pipeline_mode = #tpu.pipeline_mode<synchronous>, transform_indices = @transform_4, window_bounds = array<i64: 1, 384>}, {pipeline_mode = #tpu.pipeline_mode<synchronous>, transform_indices = @transform_5, window_bounds = array<i64: 128, 128>}, {pipeline_mode = #tpu.pipeline_mode<synchronous>, transform_indices = @transform_6, window_bounds = array<i64: 1, 128>}, {transform_indices = @transform_7, window_bounds = array<i64: 8, 128>}]} {
    %0 = tpu.iota {dimensions = array<i32: 1>} : vector<1x16xi32>
    %c8_i32 = arith.constant 8 : i32
    %1 = arith.muli %arg0, %c8_i32 : i32
    %c0_i32 = arith.constant 0 : i32
    %2 = arith.addi %1, %c0_i32 : i32
    %3 = arith.index_cast %2 : i32 to index
    %c0 = arith.constant 0 : index
    %4 = memref.load %arg1[%3, %c0] : memref<8x8xi32, #tpu.memory_space<smem>>
    %5 = vector.broadcast %4 : i32 to vector<1x16xi32>
    %6 = arith.cmpi eq, %0, %5 : vector<1x16xi32>
    %cst = arith.constant 1.000000e+00 : f32
    %cst_0 = arith.constant 0.000000e+00 : f32
    %7 = vector.broadcast %cst : f32 to vector<1x16xf32>
    %8 = vector.broadcast %cst_0 : f32 to vector<1x16xf32>
    %9 = arith.select %6, %7, %8 : vector<1x16xi1>, vector<1x16xf32>
    %c8_i32_1 = arith.constant 8 : i32
    %10 = arith.muli %arg0, %c8_i32_1 : i32
    %c1_i32 = arith.constant 1 : i32
    %11 = arith.addi %10, %c1_i32 : i32
    %12 = arith.index_cast %11 : i32 to index
    %c0_2 = arith.constant 0 : index
    %13 = memref.load %arg1[%12, %c0_2] : memref<8x8xi32, #tpu.memory_space<smem>>
    %14 = vector.broadcast %13 : i32 to vector<1x16xi32>
    %15 = arith.cmpi eq, %0, %14 : vector<1x16xi32>
    %cst_3 = arith.constant 1.000000e+00 : f32
    %cst_4 = arith.constant 0.000000e+00 : f32
    %16 = vector.broadcast %cst_3 : f32 to vector<1x16xf32>
    %17 = vector.broadcast %cst_4 : f32 to vector<1x16xf32>
    %18 = arith.select %15, %16, %17 : vector<1x16xi1>, vector<1x16xf32>
    %c8_i32_5 = arith.constant 8 : i32
    %19 = arith.muli %arg0, %c8_i32_5 : i32
    %c2_i32 = arith.constant 2 : i32
    %20 = arith.addi %19, %c2_i32 : i32
    %21 = arith.index_cast %20 : i32 to index
    %c0_6 = arith.constant 0 : index
    %22 = memref.load %arg1[%21, %c0_6] : memref<8x8xi32, #tpu.memory_space<smem>>
    %23 = vector.broadcast %22 : i32 to vector<1x16xi32>
    %24 = arith.cmpi eq, %0, %23 : vector<1x16xi32>
    %cst_7 = arith.constant 1.000000e+00 : f32
    %cst_8 = arith.constant 0.000000e+00 : f32
    %25 = vector.broadcast %cst_7 : f32 to vector<1x16xf32>
    %26 = vector.broadcast %cst_8 : f32 to vector<1x16xf32>
    %27 = arith.select %24, %25, %26 : vector<1x16xi1>, vector<1x16xf32>
    %c8_i32_9 = arith.constant 8 : i32
    %28 = arith.muli %arg0, %c8_i32_9 : i32
    %c3_i32 = arith.constant 3 : i32
    %29 = arith.addi %28, %c3_i32 : i32
    %30 = arith.index_cast %29 : i32 to index
    %c0_10 = arith.constant 0 : index
    %31 = memref.load %arg1[%30, %c0_10] : memref<8x8xi32, #tpu.memory_space<smem>>
    %32 = vector.broadcast %31 : i32 to vector<1x16xi32>
    %33 = arith.cmpi eq, %0, %32 : vector<1x16xi32>
    %cst_11 = arith.constant 1.000000e+00 : f32
    %cst_12 = arith.constant 0.000000e+00 : f32
    %34 = vector.broadcast %cst_11 : f32 to vector<1x16xf32>
    %35 = vector.broadcast %cst_12 : f32 to vector<1x16xf32>
    %36 = arith.select %33, %34, %35 : vector<1x16xi1>, vector<1x16xf32>
    %c8_i32_13 = arith.constant 8 : i32
    %37 = arith.muli %arg0, %c8_i32_13 : i32
    %c4_i32 = arith.constant 4 : i32
    %38 = arith.addi %37, %c4_i32 : i32
    %39 = arith.index_cast %38 : i32 to index
    %c0_14 = arith.constant 0 : index
    %40 = memref.load %arg1[%39, %c0_14] : memref<8x8xi32, #tpu.memory_space<smem>>
    %41 = vector.broadcast %40 : i32 to vector<1x16xi32>
    %42 = arith.cmpi eq, %0, %41 : vector<1x16xi32>
    %cst_15 = arith.constant 1.000000e+00 : f32
    %cst_16 = arith.constant 0.000000e+00 : f32
    %43 = vector.broadcast %cst_15 : f32 to vector<1x16xf32>
    %44 = vector.broadcast %cst_16 : f32 to vector<1x16xf32>
    %45 = arith.select %42, %43, %44 : vector<1x16xi1>, vector<1x16xf32>
    %c8_i32_17 = arith.constant 8 : i32
    %46 = arith.muli %arg0, %c8_i32_17 : i32
    %c5_i32 = arith.constant 5 : i32
    %47 = arith.addi %46, %c5_i32 : i32
    %48 = arith.index_cast %47 : i32 to index
    %c0_18 = arith.constant 0 : index
    %49 = memref.load %arg1[%48, %c0_18] : memref<8x8xi32, #tpu.memory_space<smem>>
    %50 = vector.broadcast %49 : i32 to vector<1x16xi32>
    %51 = arith.cmpi eq, %0, %50 : vector<1x16xi32>
    %cst_19 = arith.constant 1.000000e+00 : f32
    %cst_20 = arith.constant 0.000000e+00 : f32
    %52 = vector.broadcast %cst_19 : f32 to vector<1x16xf32>
    %53 = vector.broadcast %cst_20 : f32 to vector<1x16xf32>
    %54 = arith.select %51, %52, %53 : vector<1x16xi1>, vector<1x16xf32>
    %c8_i32_21 = arith.constant 8 : i32
    %55 = arith.muli %arg0, %c8_i32_21 : i32
    %c6_i32 = arith.constant 6 : i32
    %56 = arith.addi %55, %c6_i32 : i32
    %57 = arith.index_cast %56 : i32 to index
    %c0_22 = arith.constant 0 : index
    %58 = memref.load %arg1[%57, %c0_22] : memref<8x8xi32, #tpu.memory_space<smem>>
    %59 = vector.broadcast %58 : i32 to vector<1x16xi32>
    %60 = arith.cmpi eq, %0, %59 : vector<1x16xi32>
    %cst_23 = arith.constant 1.000000e+00 : f32
    %cst_24 = arith.constant 0.000000e+00 : f32
    %61 = vector.broadcast %cst_23 : f32 to vector<1x16xf32>
    %62 = vector.broadcast %cst_24 : f32 to vector<1x16xf32>
    %63 = arith.select %60, %61, %62 : vector<1x16xi1>, vector<1x16xf32>
    %c8_i32_25 = arith.constant 8 : i32
    %64 = arith.muli %arg0, %c8_i32_25 : i32
    %c7_i32 = arith.constant 7 : i32
    %65 = arith.addi %64, %c7_i32 : i32
    %66 = arith.index_cast %65 : i32 to index
    %c0_26 = arith.constant 0 : index
    %67 = memref.load %arg1[%66, %c0_26] : memref<8x8xi32, #tpu.memory_space<smem>>
    %68 = vector.broadcast %67 : i32 to vector<1x16xi32>
    %69 = arith.cmpi eq, %0, %68 : vector<1x16xi32>
    %cst_27 = arith.constant 1.000000e+00 : f32
    %cst_28 = arith.constant 0.000000e+00 : f32
    %70 = vector.broadcast %cst_27 : f32 to vector<1x16xf32>
    %71 = vector.broadcast %cst_28 : f32 to vector<1x16xf32>
    %72 = arith.select %69, %70, %71 : vector<1x16xi1>, vector<1x16xf32>
    %c8_i32_29 = arith.constant 8 : i32
    %73 = arith.muli %arg0, %c8_i32_29 : i32
    %c0_i32_30 = arith.constant 0 : i32
    %74 = arith.addi %73, %c0_i32_30 : i32
    %75 = arith.index_cast %74 : i32 to index
    %c1 = arith.constant 1 : index
    %76 = memref.load %arg1[%75, %c1] : memref<8x8xi32, #tpu.memory_space<smem>>
    %77 = vector.broadcast %76 : i32 to vector<1x16xi32>
    %78 = arith.cmpi eq, %0, %77 : vector<1x16xi32>
    %cst_31 = arith.constant 1.000000e+00 : f32
    %cst_32 = arith.constant 0.000000e+00 : f32
    %79 = vector.broadcast %cst_31 : f32 to vector<1x16xf32>
    %80 = vector.broadcast %cst_32 : f32 to vector<1x16xf32>
    %81 = arith.select %78, %79, %80 : vector<1x16xi1>, vector<1x16xf32>
    %c8_i32_33 = arith.constant 8 : i32
    %82 = arith.muli %arg0, %c8_i32_33 : i32
    %c1_i32_34 = arith.constant 1 : i32
    %83 = arith.addi %82, %c1_i32_34 : i32
    %84 = arith.index_cast %83 : i32 to index
    %c1_35 = arith.constant 1 : index
    %85 = memref.load %arg1[%84, %c1_35] : memref<8x8xi32, #tpu.memory_space<smem>>
    %86 = vector.broadcast %85 : i32 to vector<1x16xi32>
    %87 = arith.cmpi eq, %0, %86 : vector<1x16xi32>
    %cst_36 = arith.constant 1.000000e+00 : f32
    %cst_37 = arith.constant 0.000000e+00 : f32
    %88 = vector.broadcast %cst_36 : f32 to vector<1x16xf32>
    %89 = vector.broadcast %cst_37 : f32 to vector<1x16xf32>
    %90 = arith.select %87, %88, %89 : vector<1x16xi1>, vector<1x16xf32>
    %c8_i32_38 = arith.constant 8 : i32
    %91 = arith.muli %arg0, %c8_i32_38 : i32
    %c2_i32_39 = arith.constant 2 : i32
    %92 = arith.addi %91, %c2_i32_39 : i32
    %93 = arith.index_cast %92 : i32 to index
    %c1_40 = arith.constant 1 : index
    %94 = memref.load %arg1[%93, %c1_40] : memref<8x8xi32, #tpu.memory_space<smem>>
    %95 = vector.broadcast %94 : i32 to vector<1x16xi32>
    %96 = arith.cmpi eq, %0, %95 : vector<1x16xi32>
    %cst_41 = arith.constant 1.000000e+00 : f32
    %cst_42 = arith.constant 0.000000e+00 : f32
    %97 = vector.broadcast %cst_41 : f32 to vector<1x16xf32>
    %98 = vector.broadcast %cst_42 : f32 to vector<1x16xf32>
    %99 = arith.select %96, %97, %98 : vector<1x16xi1>, vector<1x16xf32>
    %c8_i32_43 = arith.constant 8 : i32
    %100 = arith.muli %arg0, %c8_i32_43 : i32
    %c3_i32_44 = arith.constant 3 : i32
    %101 = arith.addi %100, %c3_i32_44 : i32
    %102 = arith.index_cast %101 : i32 to index
    %c1_45 = arith.constant 1 : index
    %103 = memref.load %arg1[%102, %c1_45] : memref<8x8xi32, #tpu.memory_space<smem>>
    %104 = vector.broadcast %103 : i32 to vector<1x16xi32>
    %105 = arith.cmpi eq, %0, %104 : vector<1x16xi32>
    %cst_46 = arith.constant 1.000000e+00 : f32
    %cst_47 = arith.constant 0.000000e+00 : f32
    %106 = vector.broadcast %cst_46 : f32 to vector<1x16xf32>
    %107 = vector.broadcast %cst_47 : f32 to vector<1x16xf32>
    %108 = arith.select %105, %106, %107 : vector<1x16xi1>, vector<1x16xf32>
    %c8_i32_48 = arith.constant 8 : i32
    %109 = arith.muli %arg0, %c8_i32_48 : i32
    %c4_i32_49 = arith.constant 4 : i32
    %110 = arith.addi %109, %c4_i32_49 : i32
    %111 = arith.index_cast %110 : i32 to index
    %c1_50 = arith.constant 1 : index
    %112 = memref.load %arg1[%111, %c1_50] : memref<8x8xi32, #tpu.memory_space<smem>>
    %113 = vector.broadcast %112 : i32 to vector<1x16xi32>
    %114 = arith.cmpi eq, %0, %113 : vector<1x16xi32>
    %cst_51 = arith.constant 1.000000e+00 : f32
    %cst_52 = arith.constant 0.000000e+00 : f32
    %115 = vector.broadcast %cst_51 : f32 to vector<1x16xf32>
    %116 = vector.broadcast %cst_52 : f32 to vector<1x16xf32>
    %117 = arith.select %114, %115, %116 : vector<1x16xi1>, vector<1x16xf32>
    %c8_i32_53 = arith.constant 8 : i32
    %118 = arith.muli %arg0, %c8_i32_53 : i32
    %c5_i32_54 = arith.constant 5 : i32
    %119 = arith.addi %118, %c5_i32_54 : i32
    %120 = arith.index_cast %119 : i32 to index
    %c1_55 = arith.constant 1 : index
    %121 = memref.load %arg1[%120, %c1_55] : memref<8x8xi32, #tpu.memory_space<smem>>
    %122 = vector.broadcast %121 : i32 to vector<1x16xi32>
    %123 = arith.cmpi eq, %0, %122 : vector<1x16xi32>
    %cst_56 = arith.constant 1.000000e+00 : f32
    %cst_57 = arith.constant 0.000000e+00 : f32
    %124 = vector.broadcast %cst_56 : f32 to vector<1x16xf32>
    %125 = vector.broadcast %cst_57 : f32 to vector<1x16xf32>
    %126 = arith.select %123, %124, %125 : vector<1x16xi1>, vector<1x16xf32>
    %c8_i32_58 = arith.constant 8 : i32
    %127 = arith.muli %arg0, %c8_i32_58 : i32
    %c6_i32_59 = arith.constant 6 : i32
    %128 = arith.addi %127, %c6_i32_59 : i32
    %129 = arith.index_cast %128 : i32 to index
    %c1_60 = arith.constant 1 : index
    %130 = memref.load %arg1[%129, %c1_60] : memref<8x8xi32, #tpu.memory_space<smem>>
    %131 = vector.broadcast %130 : i32 to vector<1x16xi32>
    %132 = arith.cmpi eq, %0, %131 : vector<1x16xi32>
    %cst_61 = arith.constant 1.000000e+00 : f32
    %cst_62 = arith.constant 0.000000e+00 : f32
    %133 = vector.broadcast %cst_61 : f32 to vector<1x16xf32>
    %134 = vector.broadcast %cst_62 : f32 to vector<1x16xf32>
    %135 = arith.select %132, %133, %134 : vector<1x16xi1>, vector<1x16xf32>
    %c8_i32_63 = arith.constant 8 : i32
    %136 = arith.muli %arg0, %c8_i32_63 : i32
    %c7_i32_64 = arith.constant 7 : i32
    %137 = arith.addi %136, %c7_i32_64 : i32
    %138 = arith.index_cast %137 : i32 to index
    %c1_65 = arith.constant 1 : index
    %139 = memref.load %arg1[%138, %c1_65] : memref<8x8xi32, #tpu.memory_space<smem>>
    %140 = vector.broadcast %139 : i32 to vector<1x16xi32>
    %141 = arith.cmpi eq, %0, %140 : vector<1x16xi32>
    %cst_66 = arith.constant 1.000000e+00 : f32
    %cst_67 = arith.constant 0.000000e+00 : f32
    %142 = vector.broadcast %cst_66 : f32 to vector<1x16xf32>
    %143 = vector.broadcast %cst_67 : f32 to vector<1x16xf32>
    %144 = arith.select %141, %142, %143 : vector<1x16xi1>, vector<1x16xf32>
    %c8_i32_68 = arith.constant 8 : i32
    %145 = arith.muli %arg0, %c8_i32_68 : i32
    %c0_i32_69 = arith.constant 0 : i32
    %146 = arith.addi %145, %c0_i32_69 : i32
    %147 = arith.index_cast %146 : i32 to index
    %c2 = arith.constant 2 : index
    %148 = memref.load %arg1[%147, %c2] : memref<8x8xi32, #tpu.memory_space<smem>>
    %149 = vector.broadcast %148 : i32 to vector<1x16xi32>
    %150 = arith.cmpi eq, %0, %149 : vector<1x16xi32>
    %cst_70 = arith.constant 1.000000e+00 : f32
    %cst_71 = arith.constant 0.000000e+00 : f32
    %151 = vector.broadcast %cst_70 : f32 to vector<1x16xf32>
    %152 = vector.broadcast %cst_71 : f32 to vector<1x16xf32>
    %153 = arith.select %150, %151, %152 : vector<1x16xi1>, vector<1x16xf32>
    %c8_i32_72 = arith.constant 8 : i32
    %154 = arith.muli %arg0, %c8_i32_72 : i32
    %c1_i32_73 = arith.constant 1 : i32
    %155 = arith.addi %154, %c1_i32_73 : i32
    %156 = arith.index_cast %155 : i32 to index
    %c2_74 = arith.constant 2 : index
    %157 = memref.load %arg1[%156, %c2_74] : memref<8x8xi32, #tpu.memory_space<smem>>
    %158 = vector.broadcast %157 : i32 to vector<1x16xi32>
    %159 = arith.cmpi eq, %0, %158 : vector<1x16xi32>
    %cst_75 = arith.constant 1.000000e+00 : f32
    %cst_76 = arith.constant 0.000000e+00 : f32
    %160 = vector.broadcast %cst_75 : f32 to vector<1x16xf32>
    %161 = vector.broadcast %cst_76 : f32 to vector<1x16xf32>
    %162 = arith.select %159, %160, %161 : vector<1x16xi1>, vector<1x16xf32>
    %c8_i32_77 = arith.constant 8 : i32
    %163 = arith.muli %arg0, %c8_i32_77 : i32
    %c2_i32_78 = arith.constant 2 : i32
    %164 = arith.addi %163, %c2_i32_78 : i32
    %165 = arith.index_cast %164 : i32 to index
    %c2_79 = arith.constant 2 : index
    %166 = memref.load %arg1[%165, %c2_79] : memref<8x8xi32, #tpu.memory_space<smem>>
    %167 = vector.broadcast %166 : i32 to vector<1x16xi32>
    %168 = arith.cmpi eq, %0, %167 : vector<1x16xi32>
    %cst_80 = arith.constant 1.000000e+00 : f32
    %cst_81 = arith.constant 0.000000e+00 : f32
    %169 = vector.broadcast %cst_80 : f32 to vector<1x16xf32>
    %170 = vector.broadcast %cst_81 : f32 to vector<1x16xf32>
    %171 = arith.select %168, %169, %170 : vector<1x16xi1>, vector<1x16xf32>
    %c8_i32_82 = arith.constant 8 : i32
    %172 = arith.muli %arg0, %c8_i32_82 : i32
    %c3_i32_83 = arith.constant 3 : i32
    %173 = arith.addi %172, %c3_i32_83 : i32
    %174 = arith.index_cast %173 : i32 to index
    %c2_84 = arith.constant 2 : index
    %175 = memref.load %arg1[%174, %c2_84] : memref<8x8xi32, #tpu.memory_space<smem>>
    %176 = vector.broadcast %175 : i32 to vector<1x16xi32>
    %177 = arith.cmpi eq, %0, %176 : vector<1x16xi32>
    %cst_85 = arith.constant 1.000000e+00 : f32
    %cst_86 = arith.constant 0.000000e+00 : f32
    %178 = vector.broadcast %cst_85 : f32 to vector<1x16xf32>
    %179 = vector.broadcast %cst_86 : f32 to vector<1x16xf32>
    %180 = arith.select %177, %178, %179 : vector<1x16xi1>, vector<1x16xf32>
    %c8_i32_87 = arith.constant 8 : i32
    %181 = arith.muli %arg0, %c8_i32_87 : i32
    %c4_i32_88 = arith.constant 4 : i32
    %182 = arith.addi %181, %c4_i32_88 : i32
    %183 = arith.index_cast %182 : i32 to index
    %c2_89 = arith.constant 2 : index
    %184 = memref.load %arg1[%183, %c2_89] : memref<8x8xi32, #tpu.memory_space<smem>>
    %185 = vector.broadcast %184 : i32 to vector<1x16xi32>
    %186 = arith.cmpi eq, %0, %185 : vector<1x16xi32>
    %cst_90 = arith.constant 1.000000e+00 : f32
    %cst_91 = arith.constant 0.000000e+00 : f32
    %187 = vector.broadcast %cst_90 : f32 to vector<1x16xf32>
    %188 = vector.broadcast %cst_91 : f32 to vector<1x16xf32>
    %189 = arith.select %186, %187, %188 : vector<1x16xi1>, vector<1x16xf32>
    %c8_i32_92 = arith.constant 8 : i32
    %190 = arith.muli %arg0, %c8_i32_92 : i32
    %c5_i32_93 = arith.constant 5 : i32
    %191 = arith.addi %190, %c5_i32_93 : i32
    %192 = arith.index_cast %191 : i32 to index
    %c2_94 = arith.constant 2 : index
    %193 = memref.load %arg1[%192, %c2_94] : memref<8x8xi32, #tpu.memory_space<smem>>
    %194 = vector.broadcast %193 : i32 to vector<1x16xi32>
    %195 = arith.cmpi eq, %0, %194 : vector<1x16xi32>
    %cst_95 = arith.constant 1.000000e+00 : f32
    %cst_96 = arith.constant 0.000000e+00 : f32
    %196 = vector.broadcast %cst_95 : f32 to vector<1x16xf32>
    %197 = vector.broadcast %cst_96 : f32 to vector<1x16xf32>
    %198 = arith.select %195, %196, %197 : vector<1x16xi1>, vector<1x16xf32>
    %c8_i32_97 = arith.constant 8 : i32
    %199 = arith.muli %arg0, %c8_i32_97 : i32
    %c6_i32_98 = arith.constant 6 : i32
    %200 = arith.addi %199, %c6_i32_98 : i32
    %201 = arith.index_cast %200 : i32 to index
    %c2_99 = arith.constant 2 : index
    %202 = memref.load %arg1[%201, %c2_99] : memref<8x8xi32, #tpu.memory_space<smem>>
    %203 = vector.broadcast %202 : i32 to vector<1x16xi32>
    %204 = arith.cmpi eq, %0, %203 : vector<1x16xi32>
    %cst_100 = arith.constant 1.000000e+00 : f32
    %cst_101 = arith.constant 0.000000e+00 : f32
    %205 = vector.broadcast %cst_100 : f32 to vector<1x16xf32>
    %206 = vector.broadcast %cst_101 : f32 to vector<1x16xf32>
    %207 = arith.select %204, %205, %206 : vector<1x16xi1>, vector<1x16xf32>
    %c8_i32_102 = arith.constant 8 : i32
    %208 = arith.muli %arg0, %c8_i32_102 : i32
    %c7_i32_103 = arith.constant 7 : i32
    %209 = arith.addi %208, %c7_i32_103 : i32
    %210 = arith.index_cast %209 : i32 to index
    %c2_104 = arith.constant 2 : index
    %211 = memref.load %arg1[%210, %c2_104] : memref<8x8xi32, #tpu.memory_space<smem>>
    %212 = vector.broadcast %211 : i32 to vector<1x16xi32>
    %213 = arith.cmpi eq, %0, %212 : vector<1x16xi32>
    %cst_105 = arith.constant 1.000000e+00 : f32
    %cst_106 = arith.constant 0.000000e+00 : f32
    %214 = vector.broadcast %cst_105 : f32 to vector<1x16xf32>
    %215 = vector.broadcast %cst_106 : f32 to vector<1x16xf32>
    %216 = arith.select %213, %214, %215 : vector<1x16xi1>, vector<1x16xf32>
    %c8_i32_107 = arith.constant 8 : i32
    %217 = arith.muli %arg0, %c8_i32_107 : i32
    %c0_i32_108 = arith.constant 0 : i32
    %218 = arith.addi %217, %c0_i32_108 : i32
    %219 = arith.index_cast %218 : i32 to index
    %c3 = arith.constant 3 : index
    %220 = memref.load %arg1[%219, %c3] : memref<8x8xi32, #tpu.memory_space<smem>>
    %221 = vector.broadcast %220 : i32 to vector<1x16xi32>
    %222 = arith.cmpi eq, %0, %221 : vector<1x16xi32>
    %cst_109 = arith.constant 1.000000e+00 : f32
    %cst_110 = arith.constant 0.000000e+00 : f32
    %223 = vector.broadcast %cst_109 : f32 to vector<1x16xf32>
    %224 = vector.broadcast %cst_110 : f32 to vector<1x16xf32>
    %225 = arith.select %222, %223, %224 : vector<1x16xi1>, vector<1x16xf32>
    %c8_i32_111 = arith.constant 8 : i32
    %226 = arith.muli %arg0, %c8_i32_111 : i32
    %c1_i32_112 = arith.constant 1 : i32
    %227 = arith.addi %226, %c1_i32_112 : i32
    %228 = arith.index_cast %227 : i32 to index
    %c3_113 = arith.constant 3 : index
    %229 = memref.load %arg1[%228, %c3_113] : memref<8x8xi32, #tpu.memory_space<smem>>
    %230 = vector.broadcast %229 : i32 to vector<1x16xi32>
    %231 = arith.cmpi eq, %0, %230 : vector<1x16xi32>
    %cst_114 = arith.constant 1.000000e+00 : f32
    %cst_115 = arith.constant 0.000000e+00 : f32
    %232 = vector.broadcast %cst_114 : f32 to vector<1x16xf32>
    %233 = vector.broadcast %cst_115 : f32 to vector<1x16xf32>
    %234 = arith.select %231, %232, %233 : vector<1x16xi1>, vector<1x16xf32>
    %c8_i32_116 = arith.constant 8 : i32
    %235 = arith.muli %arg0, %c8_i32_116 : i32
    %c2_i32_117 = arith.constant 2 : i32
    %236 = arith.addi %235, %c2_i32_117 : i32
    %237 = arith.index_cast %236 : i32 to index
    %c3_118 = arith.constant 3 : index
    %238 = memref.load %arg1[%237, %c3_118] : memref<8x8xi32, #tpu.memory_space<smem>>
    %239 = vector.broadcast %238 : i32 to vector<1x16xi32>
    %240 = arith.cmpi eq, %0, %239 : vector<1x16xi32>
    %cst_119 = arith.constant 1.000000e+00 : f32
    %cst_120 = arith.constant 0.000000e+00 : f32
    %241 = vector.broadcast %cst_119 : f32 to vector<1x16xf32>
    %242 = vector.broadcast %cst_120 : f32 to vector<1x16xf32>
    %243 = arith.select %240, %241, %242 : vector<1x16xi1>, vector<1x16xf32>
    %c8_i32_121 = arith.constant 8 : i32
    %244 = arith.muli %arg0, %c8_i32_121 : i32
    %c3_i32_122 = arith.constant 3 : i32
    %245 = arith.addi %244, %c3_i32_122 : i32
    %246 = arith.index_cast %245 : i32 to index
    %c3_123 = arith.constant 3 : index
    %247 = memref.load %arg1[%246, %c3_123] : memref<8x8xi32, #tpu.memory_space<smem>>
    %248 = vector.broadcast %247 : i32 to vector<1x16xi32>
    %249 = arith.cmpi eq, %0, %248 : vector<1x16xi32>
    %cst_124 = arith.constant 1.000000e+00 : f32
    %cst_125 = arith.constant 0.000000e+00 : f32
    %250 = vector.broadcast %cst_124 : f32 to vector<1x16xf32>
    %251 = vector.broadcast %cst_125 : f32 to vector<1x16xf32>
    %252 = arith.select %249, %250, %251 : vector<1x16xi1>, vector<1x16xf32>
    %c8_i32_126 = arith.constant 8 : i32
    %253 = arith.muli %arg0, %c8_i32_126 : i32
    %c4_i32_127 = arith.constant 4 : i32
    %254 = arith.addi %253, %c4_i32_127 : i32
    %255 = arith.index_cast %254 : i32 to index
    %c3_128 = arith.constant 3 : index
    %256 = memref.load %arg1[%255, %c3_128] : memref<8x8xi32, #tpu.memory_space<smem>>
    %257 = vector.broadcast %256 : i32 to vector<1x16xi32>
    %258 = arith.cmpi eq, %0, %257 : vector<1x16xi32>
    %cst_129 = arith.constant 1.000000e+00 : f32
    %cst_130 = arith.constant 0.000000e+00 : f32
    %259 = vector.broadcast %cst_129 : f32 to vector<1x16xf32>
    %260 = vector.broadcast %cst_130 : f32 to vector<1x16xf32>
    %261 = arith.select %258, %259, %260 : vector<1x16xi1>, vector<1x16xf32>
    %c8_i32_131 = arith.constant 8 : i32
    %262 = arith.muli %arg0, %c8_i32_131 : i32
    %c5_i32_132 = arith.constant 5 : i32
    %263 = arith.addi %262, %c5_i32_132 : i32
    %264 = arith.index_cast %263 : i32 to index
    %c3_133 = arith.constant 3 : index
    %265 = memref.load %arg1[%264, %c3_133] : memref<8x8xi32, #tpu.memory_space<smem>>
    %266 = vector.broadcast %265 : i32 to vector<1x16xi32>
    %267 = arith.cmpi eq, %0, %266 : vector<1x16xi32>
    %cst_134 = arith.constant 1.000000e+00 : f32
    %cst_135 = arith.constant 0.000000e+00 : f32
    %268 = vector.broadcast %cst_134 : f32 to vector<1x16xf32>
    %269 = vector.broadcast %cst_135 : f32 to vector<1x16xf32>
    %270 = arith.select %267, %268, %269 : vector<1x16xi1>, vector<1x16xf32>
    %c8_i32_136 = arith.constant 8 : i32
    %271 = arith.muli %arg0, %c8_i32_136 : i32
    %c6_i32_137 = arith.constant 6 : i32
    %272 = arith.addi %271, %c6_i32_137 : i32
    %273 = arith.index_cast %272 : i32 to index
    %c3_138 = arith.constant 3 : index
    %274 = memref.load %arg1[%273, %c3_138] : memref<8x8xi32, #tpu.memory_space<smem>>
    %275 = vector.broadcast %274 : i32 to vector<1x16xi32>
    %276 = arith.cmpi eq, %0, %275 : vector<1x16xi32>
    %cst_139 = arith.constant 1.000000e+00 : f32
    %cst_140 = arith.constant 0.000000e+00 : f32
    %277 = vector.broadcast %cst_139 : f32 to vector<1x16xf32>
    %278 = vector.broadcast %cst_140 : f32 to vector<1x16xf32>
    %279 = arith.select %276, %277, %278 : vector<1x16xi1>, vector<1x16xf32>
    %c8_i32_141 = arith.constant 8 : i32
    %280 = arith.muli %arg0, %c8_i32_141 : i32
    %c7_i32_142 = arith.constant 7 : i32
    %281 = arith.addi %280, %c7_i32_142 : i32
    %282 = arith.index_cast %281 : i32 to index
    %c3_143 = arith.constant 3 : index
    %283 = memref.load %arg1[%282, %c3_143] : memref<8x8xi32, #tpu.memory_space<smem>>
    %284 = vector.broadcast %283 : i32 to vector<1x16xi32>
    %285 = arith.cmpi eq, %0, %284 : vector<1x16xi32>
    %cst_144 = arith.constant 1.000000e+00 : f32
    %cst_145 = arith.constant 0.000000e+00 : f32
    %286 = vector.broadcast %cst_144 : f32 to vector<1x16xf32>
    %287 = vector.broadcast %cst_145 : f32 to vector<1x16xf32>
    %288 = arith.select %285, %286, %287 : vector<1x16xi1>, vector<1x16xf32>
    %c8_i32_146 = arith.constant 8 : i32
    %289 = arith.muli %arg0, %c8_i32_146 : i32
    %c0_i32_147 = arith.constant 0 : i32
    %290 = arith.addi %289, %c0_i32_147 : i32
    %291 = arith.index_cast %290 : i32 to index
    %c4 = arith.constant 4 : index
    %292 = memref.load %arg1[%291, %c4] : memref<8x8xi32, #tpu.memory_space<smem>>
    %293 = vector.broadcast %292 : i32 to vector<1x16xi32>
    %294 = arith.cmpi eq, %0, %293 : vector<1x16xi32>
    %cst_148 = arith.constant 1.000000e+00 : f32
    %cst_149 = arith.constant 0.000000e+00 : f32
    %295 = vector.broadcast %cst_148 : f32 to vector<1x16xf32>
    %296 = vector.broadcast %cst_149 : f32 to vector<1x16xf32>
    %297 = arith.select %294, %295, %296 : vector<1x16xi1>, vector<1x16xf32>
    %c8_i32_150 = arith.constant 8 : i32
    %298 = arith.muli %arg0, %c8_i32_150 : i32
    %c1_i32_151 = arith.constant 1 : i32
    %299 = arith.addi %298, %c1_i32_151 : i32
    %300 = arith.index_cast %299 : i32 to index
    %c4_152 = arith.constant 4 : index
    %301 = memref.load %arg1[%300, %c4_152] : memref<8x8xi32, #tpu.memory_space<smem>>
    %302 = vector.broadcast %301 : i32 to vector<1x16xi32>
    %303 = arith.cmpi eq, %0, %302 : vector<1x16xi32>
    %cst_153 = arith.constant 1.000000e+00 : f32
    %cst_154 = arith.constant 0.000000e+00 : f32
    %304 = vector.broadcast %cst_153 : f32 to vector<1x16xf32>
    %305 = vector.broadcast %cst_154 : f32 to vector<1x16xf32>
    %306 = arith.select %303, %304, %305 : vector<1x16xi1>, vector<1x16xf32>
    %c8_i32_155 = arith.constant 8 : i32
    %307 = arith.muli %arg0, %c8_i32_155 : i32
    %c2_i32_156 = arith.constant 2 : i32
    %308 = arith.addi %307, %c2_i32_156 : i32
    %309 = arith.index_cast %308 : i32 to index
    %c4_157 = arith.constant 4 : index
    %310 = memref.load %arg1[%309, %c4_157] : memref<8x8xi32, #tpu.memory_space<smem>>
    %311 = vector.broadcast %310 : i32 to vector<1x16xi32>
    %312 = arith.cmpi eq, %0, %311 : vector<1x16xi32>
    %cst_158 = arith.constant 1.000000e+00 : f32
    %cst_159 = arith.constant 0.000000e+00 : f32
    %313 = vector.broadcast %cst_158 : f32 to vector<1x16xf32>
    %314 = vector.broadcast %cst_159 : f32 to vector<1x16xf32>
    %315 = arith.select %312, %313, %314 : vector<1x16xi1>, vector<1x16xf32>
    %c8_i32_160 = arith.constant 8 : i32
    %316 = arith.muli %arg0, %c8_i32_160 : i32
    %c3_i32_161 = arith.constant 3 : i32
    %317 = arith.addi %316, %c3_i32_161 : i32
    %318 = arith.index_cast %317 : i32 to index
    %c4_162 = arith.constant 4 : index
    %319 = memref.load %arg1[%318, %c4_162] : memref<8x8xi32, #tpu.memory_space<smem>>
    %320 = vector.broadcast %319 : i32 to vector<1x16xi32>
    %321 = arith.cmpi eq, %0, %320 : vector<1x16xi32>
    %cst_163 = arith.constant 1.000000e+00 : f32
    %cst_164 = arith.constant 0.000000e+00 : f32
    %322 = vector.broadcast %cst_163 : f32 to vector<1x16xf32>
    %323 = vector.broadcast %cst_164 : f32 to vector<1x16xf32>
    %324 = arith.select %321, %322, %323 : vector<1x16xi1>, vector<1x16xf32>
    %c8_i32_165 = arith.constant 8 : i32
    %325 = arith.muli %arg0, %c8_i32_165 : i32
    %c4_i32_166 = arith.constant 4 : i32
    %326 = arith.addi %325, %c4_i32_166 : i32
    %327 = arith.index_cast %326 : i32 to index
    %c4_167 = arith.constant 4 : index
    %328 = memref.load %arg1[%327, %c4_167] : memref<8x8xi32, #tpu.memory_space<smem>>
    %329 = vector.broadcast %328 : i32 to vector<1x16xi32>
    %330 = arith.cmpi eq, %0, %329 : vector<1x16xi32>
    %cst_168 = arith.constant 1.000000e+00 : f32
    %cst_169 = arith.constant 0.000000e+00 : f32
    %331 = vector.broadcast %cst_168 : f32 to vector<1x16xf32>
    %332 = vector.broadcast %cst_169 : f32 to vector<1x16xf32>
    %333 = arith.select %330, %331, %332 : vector<1x16xi1>, vector<1x16xf32>
    %c8_i32_170 = arith.constant 8 : i32
    %334 = arith.muli %arg0, %c8_i32_170 : i32
    %c5_i32_171 = arith.constant 5 : i32
    %335 = arith.addi %334, %c5_i32_171 : i32
    %336 = arith.index_cast %335 : i32 to index
    %c4_172 = arith.constant 4 : index
    %337 = memref.load %arg1[%336, %c4_172] : memref<8x8xi32, #tpu.memory_space<smem>>
    %338 = vector.broadcast %337 : i32 to vector<1x16xi32>
    %339 = arith.cmpi eq, %0, %338 : vector<1x16xi32>
    %cst_173 = arith.constant 1.000000e+00 : f32
    %cst_174 = arith.constant 0.000000e+00 : f32
    %340 = vector.broadcast %cst_173 : f32 to vector<1x16xf32>
    %341 = vector.broadcast %cst_174 : f32 to vector<1x16xf32>
    %342 = arith.select %339, %340, %341 : vector<1x16xi1>, vector<1x16xf32>
    %c8_i32_175 = arith.constant 8 : i32
    %343 = arith.muli %arg0, %c8_i32_175 : i32
    %c6_i32_176 = arith.constant 6 : i32
    %344 = arith.addi %343, %c6_i32_176 : i32
    %345 = arith.index_cast %344 : i32 to index
    %c4_177 = arith.constant 4 : index
    %346 = memref.load %arg1[%345, %c4_177] : memref<8x8xi32, #tpu.memory_space<smem>>
    %347 = vector.broadcast %346 : i32 to vector<1x16xi32>
    %348 = arith.cmpi eq, %0, %347 : vector<1x16xi32>
    %cst_178 = arith.constant 1.000000e+00 : f32
    %cst_179 = arith.constant 0.000000e+00 : f32
    %349 = vector.broadcast %cst_178 : f32 to vector<1x16xf32>
    %350 = vector.broadcast %cst_179 : f32 to vector<1x16xf32>
    %351 = arith.select %348, %349, %350 : vector<1x16xi1>, vector<1x16xf32>
    %c8_i32_180 = arith.constant 8 : i32
    %352 = arith.muli %arg0, %c8_i32_180 : i32
    %c7_i32_181 = arith.constant 7 : i32
    %353 = arith.addi %352, %c7_i32_181 : i32
    %354 = arith.index_cast %353 : i32 to index
    %c4_182 = arith.constant 4 : index
    %355 = memref.load %arg1[%354, %c4_182] : memref<8x8xi32, #tpu.memory_space<smem>>
    %356 = vector.broadcast %355 : i32 to vector<1x16xi32>
    %357 = arith.cmpi eq, %0, %356 : vector<1x16xi32>
    %cst_183 = arith.constant 1.000000e+00 : f32
    %cst_184 = arith.constant 0.000000e+00 : f32
    %358 = vector.broadcast %cst_183 : f32 to vector<1x16xf32>
    %359 = vector.broadcast %cst_184 : f32 to vector<1x16xf32>
    %360 = arith.select %357, %358, %359 : vector<1x16xi1>, vector<1x16xf32>
    %c8_i32_185 = arith.constant 8 : i32
    %361 = arith.muli %arg0, %c8_i32_185 : i32
    %c0_i32_186 = arith.constant 0 : i32
    %362 = arith.addi %361, %c0_i32_186 : i32
    %363 = arith.index_cast %362 : i32 to index
    %c5 = arith.constant 5 : index
    %364 = memref.load %arg1[%363, %c5] : memref<8x8xi32, #tpu.memory_space<smem>>
    %365 = vector.broadcast %364 : i32 to vector<1x16xi32>
    %366 = arith.cmpi eq, %0, %365 : vector<1x16xi32>
    %cst_187 = arith.constant 1.000000e+00 : f32
    %cst_188 = arith.constant 0.000000e+00 : f32
    %367 = vector.broadcast %cst_187 : f32 to vector<1x16xf32>
    %368 = vector.broadcast %cst_188 : f32 to vector<1x16xf32>
    %369 = arith.select %366, %367, %368 : vector<1x16xi1>, vector<1x16xf32>
    %c8_i32_189 = arith.constant 8 : i32
    %370 = arith.muli %arg0, %c8_i32_189 : i32
    %c1_i32_190 = arith.constant 1 : i32
    %371 = arith.addi %370, %c1_i32_190 : i32
    %372 = arith.index_cast %371 : i32 to index
    %c5_191 = arith.constant 5 : index
    %373 = memref.load %arg1[%372, %c5_191] : memref<8x8xi32, #tpu.memory_space<smem>>
    %374 = vector.broadcast %373 : i32 to vector<1x16xi32>
    %375 = arith.cmpi eq, %0, %374 : vector<1x16xi32>
    %cst_192 = arith.constant 1.000000e+00 : f32
    %cst_193 = arith.constant 0.000000e+00 : f32
    %376 = vector.broadcast %cst_192 : f32 to vector<1x16xf32>
    %377 = vector.broadcast %cst_193 : f32 to vector<1x16xf32>
    %378 = arith.select %375, %376, %377 : vector<1x16xi1>, vector<1x16xf32>
    %c8_i32_194 = arith.constant 8 : i32
    %379 = arith.muli %arg0, %c8_i32_194 : i32
    %c2_i32_195 = arith.constant 2 : i32
    %380 = arith.addi %379, %c2_i32_195 : i32
    %381 = arith.index_cast %380 : i32 to index
    %c5_196 = arith.constant 5 : index
    %382 = memref.load %arg1[%381, %c5_196] : memref<8x8xi32, #tpu.memory_space<smem>>
    %383 = vector.broadcast %382 : i32 to vector<1x16xi32>
    %384 = arith.cmpi eq, %0, %383 : vector<1x16xi32>
    %cst_197 = arith.constant 1.000000e+00 : f32
    %cst_198 = arith.constant 0.000000e+00 : f32
    %385 = vector.broadcast %cst_197 : f32 to vector<1x16xf32>
    %386 = vector.broadcast %cst_198 : f32 to vector<1x16xf32>
    %387 = arith.select %384, %385, %386 : vector<1x16xi1>, vector<1x16xf32>
    %c8_i32_199 = arith.constant 8 : i32
    %388 = arith.muli %arg0, %c8_i32_199 : i32
    %c3_i32_200 = arith.constant 3 : i32
    %389 = arith.addi %388, %c3_i32_200 : i32
    %390 = arith.index_cast %389 : i32 to index
    %c5_201 = arith.constant 5 : index
    %391 = memref.load %arg1[%390, %c5_201] : memref<8x8xi32, #tpu.memory_space<smem>>
    %392 = vector.broadcast %391 : i32 to vector<1x16xi32>
    %393 = arith.cmpi eq, %0, %392 : vector<1x16xi32>
    %cst_202 = arith.constant 1.000000e+00 : f32
    %cst_203 = arith.constant 0.000000e+00 : f32
    %394 = vector.broadcast %cst_202 : f32 to vector<1x16xf32>
    %395 = vector.broadcast %cst_203 : f32 to vector<1x16xf32>
    %396 = arith.select %393, %394, %395 : vector<1x16xi1>, vector<1x16xf32>
    %c8_i32_204 = arith.constant 8 : i32
    %397 = arith.muli %arg0, %c8_i32_204 : i32
    %c4_i32_205 = arith.constant 4 : i32
    %398 = arith.addi %397, %c4_i32_205 : i32
    %399 = arith.index_cast %398 : i32 to index
    %c5_206 = arith.constant 5 : index
    %400 = memref.load %arg1[%399, %c5_206] : memref<8x8xi32, #tpu.memory_space<smem>>
    %401 = vector.broadcast %400 : i32 to vector<1x16xi32>
    %402 = arith.cmpi eq, %0, %401 : vector<1x16xi32>
    %cst_207 = arith.constant 1.000000e+00 : f32
    %cst_208 = arith.constant 0.000000e+00 : f32
    %403 = vector.broadcast %cst_207 : f32 to vector<1x16xf32>
    %404 = vector.broadcast %cst_208 : f32 to vector<1x16xf32>
    %405 = arith.select %402, %403, %404 : vector<1x16xi1>, vector<1x16xf32>
    %c8_i32_209 = arith.constant 8 : i32
    %406 = arith.muli %arg0, %c8_i32_209 : i32
    %c5_i32_210 = arith.constant 5 : i32
    %407 = arith.addi %406, %c5_i32_210 : i32
    %408 = arith.index_cast %407 : i32 to index
    %c5_211 = arith.constant 5 : index
    %409 = memref.load %arg1[%408, %c5_211] : memref<8x8xi32, #tpu.memory_space<smem>>
    %410 = vector.broadcast %409 : i32 to vector<1x16xi32>
    %411 = arith.cmpi eq, %0, %410 : vector<1x16xi32>
    %cst_212 = arith.constant 1.000000e+00 : f32
    %cst_213 = arith.constant 0.000000e+00 : f32
    %412 = vector.broadcast %cst_212 : f32 to vector<1x16xf32>
    %413 = vector.broadcast %cst_213 : f32 to vector<1x16xf32>
    %414 = arith.select %411, %412, %413 : vector<1x16xi1>, vector<1x16xf32>
    %c8_i32_214 = arith.constant 8 : i32
    %415 = arith.muli %arg0, %c8_i32_214 : i32
    %c6_i32_215 = arith.constant 6 : i32
    %416 = arith.addi %415, %c6_i32_215 : i32
    %417 = arith.index_cast %416 : i32 to index
    %c5_216 = arith.constant 5 : index
    %418 = memref.load %arg1[%417, %c5_216] : memref<8x8xi32, #tpu.memory_space<smem>>
    %419 = vector.broadcast %418 : i32 to vector<1x16xi32>
    %420 = arith.cmpi eq, %0, %419 : vector<1x16xi32>
    %cst_217 = arith.constant 1.000000e+00 : f32
    %cst_218 = arith.constant 0.000000e+00 : f32
    %421 = vector.broadcast %cst_217 : f32 to vector<1x16xf32>
    %422 = vector.broadcast %cst_218 : f32 to vector<1x16xf32>
    %423 = arith.select %420, %421, %422 : vector<1x16xi1>, vector<1x16xf32>
    %c8_i32_219 = arith.constant 8 : i32
    %424 = arith.muli %arg0, %c8_i32_219 : i32
    %c7_i32_220 = arith.constant 7 : i32
    %425 = arith.addi %424, %c7_i32_220 : i32
    %426 = arith.index_cast %425 : i32 to index
    %c5_221 = arith.constant 5 : index
    %427 = memref.load %arg1[%426, %c5_221] : memref<8x8xi32, #tpu.memory_space<smem>>
    %428 = vector.broadcast %427 : i32 to vector<1x16xi32>
    %429 = arith.cmpi eq, %0, %428 : vector<1x16xi32>
    %cst_222 = arith.constant 1.000000e+00 : f32
    %cst_223 = arith.constant 0.000000e+00 : f32
    %430 = vector.broadcast %cst_222 : f32 to vector<1x16xf32>
    %431 = vector.broadcast %cst_223 : f32 to vector<1x16xf32>
    %432 = arith.select %429, %430, %431 : vector<1x16xi1>, vector<1x16xf32>
    %c8_i32_224 = arith.constant 8 : i32
    %433 = arith.muli %arg0, %c8_i32_224 : i32
    %c0_i32_225 = arith.constant 0 : i32
    %434 = arith.addi %433, %c0_i32_225 : i32
    %435 = arith.index_cast %434 : i32 to index
    %c6 = arith.constant 6 : index
    %436 = memref.load %arg1[%435, %c6] : memref<8x8xi32, #tpu.memory_space<smem>>
    %437 = vector.broadcast %436 : i32 to vector<1x16xi32>
    %438 = arith.cmpi eq, %0, %437 : vector<1x16xi32>
    %cst_226 = arith.constant 1.000000e+00 : f32
    %cst_227 = arith.constant 0.000000e+00 : f32
    %439 = vector.broadcast %cst_226 : f32 to vector<1x16xf32>
    %440 = vector.broadcast %cst_227 : f32 to vector<1x16xf32>
    %441 = arith.select %438, %439, %440 : vector<1x16xi1>, vector<1x16xf32>
    %c8_i32_228 = arith.constant 8 : i32
    %442 = arith.muli %arg0, %c8_i32_228 : i32
    %c1_i32_229 = arith.constant 1 : i32
    %443 = arith.addi %442, %c1_i32_229 : i32
    %444 = arith.index_cast %443 : i32 to index
    %c6_230 = arith.constant 6 : index
    %445 = memref.load %arg1[%444, %c6_230] : memref<8x8xi32, #tpu.memory_space<smem>>
    %446 = vector.broadcast %445 : i32 to vector<1x16xi32>
    %447 = arith.cmpi eq, %0, %446 : vector<1x16xi32>
    %cst_231 = arith.constant 1.000000e+00 : f32
    %cst_232 = arith.constant 0.000000e+00 : f32
    %448 = vector.broadcast %cst_231 : f32 to vector<1x16xf32>
    %449 = vector.broadcast %cst_232 : f32 to vector<1x16xf32>
    %450 = arith.select %447, %448, %449 : vector<1x16xi1>, vector<1x16xf32>
    %c8_i32_233 = arith.constant 8 : i32
    %451 = arith.muli %arg0, %c8_i32_233 : i32
    %c2_i32_234 = arith.constant 2 : i32
    %452 = arith.addi %451, %c2_i32_234 : i32
    %453 = arith.index_cast %452 : i32 to index
    %c6_235 = arith.constant 6 : index
    %454 = memref.load %arg1[%453, %c6_235] : memref<8x8xi32, #tpu.memory_space<smem>>
    %455 = vector.broadcast %454 : i32 to vector<1x16xi32>
    %456 = arith.cmpi eq, %0, %455 : vector<1x16xi32>
    %cst_236 = arith.constant 1.000000e+00 : f32
    %cst_237 = arith.constant 0.000000e+00 : f32
    %457 = vector.broadcast %cst_236 : f32 to vector<1x16xf32>
    %458 = vector.broadcast %cst_237 : f32 to vector<1x16xf32>
    %459 = arith.select %456, %457, %458 : vector<1x16xi1>, vector<1x16xf32>
    %c8_i32_238 = arith.constant 8 : i32
    %460 = arith.muli %arg0, %c8_i32_238 : i32
    %c3_i32_239 = arith.constant 3 : i32
    %461 = arith.addi %460, %c3_i32_239 : i32
    %462 = arith.index_cast %461 : i32 to index
    %c6_240 = arith.constant 6 : index
    %463 = memref.load %arg1[%462, %c6_240] : memref<8x8xi32, #tpu.memory_space<smem>>
    %464 = vector.broadcast %463 : i32 to vector<1x16xi32>
    %465 = arith.cmpi eq, %0, %464 : vector<1x16xi32>
    %cst_241 = arith.constant 1.000000e+00 : f32
    %cst_242 = arith.constant 0.000000e+00 : f32
    %466 = vector.broadcast %cst_241 : f32 to vector<1x16xf32>
    %467 = vector.broadcast %cst_242 : f32 to vector<1x16xf32>
    %468 = arith.select %465, %466, %467 : vector<1x16xi1>, vector<1x16xf32>
    %c8_i32_243 = arith.constant 8 : i32
    %469 = arith.muli %arg0, %c8_i32_243 : i32
    %c4_i32_244 = arith.constant 4 : i32
    %470 = arith.addi %469, %c4_i32_244 : i32
    %471 = arith.index_cast %470 : i32 to index
    %c6_245 = arith.constant 6 : index
    %472 = memref.load %arg1[%471, %c6_245] : memref<8x8xi32, #tpu.memory_space<smem>>
    %473 = vector.broadcast %472 : i32 to vector<1x16xi32>
    %474 = arith.cmpi eq, %0, %473 : vector<1x16xi32>
    %cst_246 = arith.constant 1.000000e+00 : f32
    %cst_247 = arith.constant 0.000000e+00 : f32
    %475 = vector.broadcast %cst_246 : f32 to vector<1x16xf32>
    %476 = vector.broadcast %cst_247 : f32 to vector<1x16xf32>
    %477 = arith.select %474, %475, %476 : vector<1x16xi1>, vector<1x16xf32>
    %c8_i32_248 = arith.constant 8 : i32
    %478 = arith.muli %arg0, %c8_i32_248 : i32
    %c5_i32_249 = arith.constant 5 : i32
    %479 = arith.addi %478, %c5_i32_249 : i32
    %480 = arith.index_cast %479 : i32 to index
    %c6_250 = arith.constant 6 : index
    %481 = memref.load %arg1[%480, %c6_250] : memref<8x8xi32, #tpu.memory_space<smem>>
    %482 = vector.broadcast %481 : i32 to vector<1x16xi32>
    %483 = arith.cmpi eq, %0, %482 : vector<1x16xi32>
    %cst_251 = arith.constant 1.000000e+00 : f32
    %cst_252 = arith.constant 0.000000e+00 : f32
    %484 = vector.broadcast %cst_251 : f32 to vector<1x16xf32>
    %485 = vector.broadcast %cst_252 : f32 to vector<1x16xf32>
    %486 = arith.select %483, %484, %485 : vector<1x16xi1>, vector<1x16xf32>
    %c8_i32_253 = arith.constant 8 : i32
    %487 = arith.muli %arg0, %c8_i32_253 : i32
    %c6_i32_254 = arith.constant 6 : i32
    %488 = arith.addi %487, %c6_i32_254 : i32
    %489 = arith.index_cast %488 : i32 to index
    %c6_255 = arith.constant 6 : index
    %490 = memref.load %arg1[%489, %c6_255] : memref<8x8xi32, #tpu.memory_space<smem>>
    %491 = vector.broadcast %490 : i32 to vector<1x16xi32>
    %492 = arith.cmpi eq, %0, %491 : vector<1x16xi32>
    %cst_256 = arith.constant 1.000000e+00 : f32
    %cst_257 = arith.constant 0.000000e+00 : f32
    %493 = vector.broadcast %cst_256 : f32 to vector<1x16xf32>
    %494 = vector.broadcast %cst_257 : f32 to vector<1x16xf32>
    %495 = arith.select %492, %493, %494 : vector<1x16xi1>, vector<1x16xf32>
    %c8_i32_258 = arith.constant 8 : i32
    %496 = arith.muli %arg0, %c8_i32_258 : i32
    %c7_i32_259 = arith.constant 7 : i32
    %497 = arith.addi %496, %c7_i32_259 : i32
    %498 = arith.index_cast %497 : i32 to index
    %c6_260 = arith.constant 6 : index
    %499 = memref.load %arg1[%498, %c6_260] : memref<8x8xi32, #tpu.memory_space<smem>>
    %500 = vector.broadcast %499 : i32 to vector<1x16xi32>
    %501 = arith.cmpi eq, %0, %500 : vector<1x16xi32>
    %cst_261 = arith.constant 1.000000e+00 : f32
    %cst_262 = arith.constant 0.000000e+00 : f32
    %502 = vector.broadcast %cst_261 : f32 to vector<1x16xf32>
    %503 = vector.broadcast %cst_262 : f32 to vector<1x16xf32>
    %504 = arith.select %501, %502, %503 : vector<1x16xi1>, vector<1x16xf32>
    %c8_i32_263 = arith.constant 8 : i32
    %505 = arith.muli %arg0, %c8_i32_263 : i32
    %c0_i32_264 = arith.constant 0 : i32
    %506 = arith.addi %505, %c0_i32_264 : i32
    %507 = arith.index_cast %506 : i32 to index
    %c7 = arith.constant 7 : index
    %508 = memref.load %arg1[%507, %c7] : memref<8x8xi32, #tpu.memory_space<smem>>
    %509 = vector.broadcast %508 : i32 to vector<1x16xi32>
    %510 = arith.cmpi eq, %0, %509 : vector<1x16xi32>
    %cst_265 = arith.constant 1.000000e+00 : f32
    %cst_266 = arith.constant 0.000000e+00 : f32
    %511 = vector.broadcast %cst_265 : f32 to vector<1x16xf32>
    %512 = vector.broadcast %cst_266 : f32 to vector<1x16xf32>
    %513 = arith.select %510, %511, %512 : vector<1x16xi1>, vector<1x16xf32>
    %c8_i32_267 = arith.constant 8 : i32
    %514 = arith.muli %arg0, %c8_i32_267 : i32
    %c1_i32_268 = arith.constant 1 : i32
    %515 = arith.addi %514, %c1_i32_268 : i32
    %516 = arith.index_cast %515 : i32 to index
    %c7_269 = arith.constant 7 : index
    %517 = memref.load %arg1[%516, %c7_269] : memref<8x8xi32, #tpu.memory_space<smem>>
    %518 = vector.broadcast %517 : i32 to vector<1x16xi32>
    %519 = arith.cmpi eq, %0, %518 : vector<1x16xi32>
    %cst_270 = arith.constant 1.000000e+00 : f32
    %cst_271 = arith.constant 0.000000e+00 : f32
    %520 = vector.broadcast %cst_270 : f32 to vector<1x16xf32>
    %521 = vector.broadcast %cst_271 : f32 to vector<1x16xf32>
    %522 = arith.select %519, %520, %521 : vector<1x16xi1>, vector<1x16xf32>
    %c8_i32_272 = arith.constant 8 : i32
    %523 = arith.muli %arg0, %c8_i32_272 : i32
    %c2_i32_273 = arith.constant 2 : i32
    %524 = arith.addi %523, %c2_i32_273 : i32
    %525 = arith.index_cast %524 : i32 to index
    %c7_274 = arith.constant 7 : index
    %526 = memref.load %arg1[%525, %c7_274] : memref<8x8xi32, #tpu.memory_space<smem>>
    %527 = vector.broadcast %526 : i32 to vector<1x16xi32>
    %528 = arith.cmpi eq, %0, %527 : vector<1x16xi32>
    %cst_275 = arith.constant 1.000000e+00 : f32
    %cst_276 = arith.constant 0.000000e+00 : f32
    %529 = vector.broadcast %cst_275 : f32 to vector<1x16xf32>
    %530 = vector.broadcast %cst_276 : f32 to vector<1x16xf32>
    %531 = arith.select %528, %529, %530 : vector<1x16xi1>, vector<1x16xf32>
    %c8_i32_277 = arith.constant 8 : i32
    %532 = arith.muli %arg0, %c8_i32_277 : i32
    %c3_i32_278 = arith.constant 3 : i32
    %533 = arith.addi %532, %c3_i32_278 : i32
    %534 = arith.index_cast %533 : i32 to index
    %c7_279 = arith.constant 7 : index
    %535 = memref.load %arg1[%534, %c7_279] : memref<8x8xi32, #tpu.memory_space<smem>>
    %536 = vector.broadcast %535 : i32 to vector<1x16xi32>
    %537 = arith.cmpi eq, %0, %536 : vector<1x16xi32>
    %cst_280 = arith.constant 1.000000e+00 : f32
    %cst_281 = arith.constant 0.000000e+00 : f32
    %538 = vector.broadcast %cst_280 : f32 to vector<1x16xf32>
    %539 = vector.broadcast %cst_281 : f32 to vector<1x16xf32>
    %540 = arith.select %537, %538, %539 : vector<1x16xi1>, vector<1x16xf32>
    %c8_i32_282 = arith.constant 8 : i32
    %541 = arith.muli %arg0, %c8_i32_282 : i32
    %c4_i32_283 = arith.constant 4 : i32
    %542 = arith.addi %541, %c4_i32_283 : i32
    %543 = arith.index_cast %542 : i32 to index
    %c7_284 = arith.constant 7 : index
    %544 = memref.load %arg1[%543, %c7_284] : memref<8x8xi32, #tpu.memory_space<smem>>
    %545 = vector.broadcast %544 : i32 to vector<1x16xi32>
    %546 = arith.cmpi eq, %0, %545 : vector<1x16xi32>
    %cst_285 = arith.constant 1.000000e+00 : f32
    %cst_286 = arith.constant 0.000000e+00 : f32
    %547 = vector.broadcast %cst_285 : f32 to vector<1x16xf32>
    %548 = vector.broadcast %cst_286 : f32 to vector<1x16xf32>
    %549 = arith.select %546, %547, %548 : vector<1x16xi1>, vector<1x16xf32>
    %c8_i32_287 = arith.constant 8 : i32
    %550 = arith.muli %arg0, %c8_i32_287 : i32
    %c5_i32_288 = arith.constant 5 : i32
    %551 = arith.addi %550, %c5_i32_288 : i32
    %552 = arith.index_cast %551 : i32 to index
    %c7_289 = arith.constant 7 : index
    %553 = memref.load %arg1[%552, %c7_289] : memref<8x8xi32, #tpu.memory_space<smem>>
    %554 = vector.broadcast %553 : i32 to vector<1x16xi32>
    %555 = arith.cmpi eq, %0, %554 : vector<1x16xi32>
    %cst_290 = arith.constant 1.000000e+00 : f32
    %cst_291 = arith.constant 0.000000e+00 : f32
    %556 = vector.broadcast %cst_290 : f32 to vector<1x16xf32>
    %557 = vector.broadcast %cst_291 : f32 to vector<1x16xf32>
    %558 = arith.select %555, %556, %557 : vector<1x16xi1>, vector<1x16xf32>
    %c8_i32_292 = arith.constant 8 : i32
    %559 = arith.muli %arg0, %c8_i32_292 : i32
    %c6_i32_293 = arith.constant 6 : i32
    %560 = arith.addi %559, %c6_i32_293 : i32
    %561 = arith.index_cast %560 : i32 to index
    %c7_294 = arith.constant 7 : index
    %562 = memref.load %arg1[%561, %c7_294] : memref<8x8xi32, #tpu.memory_space<smem>>
    %563 = vector.broadcast %562 : i32 to vector<1x16xi32>
    %564 = arith.cmpi eq, %0, %563 : vector<1x16xi32>
    %cst_295 = arith.constant 1.000000e+00 : f32
    %cst_296 = arith.constant 0.000000e+00 : f32
    %565 = vector.broadcast %cst_295 : f32 to vector<1x16xf32>
    %566 = vector.broadcast %cst_296 : f32 to vector<1x16xf32>
    %567 = arith.select %564, %565, %566 : vector<1x16xi1>, vector<1x16xf32>
    %c8_i32_297 = arith.constant 8 : i32
    %568 = arith.muli %arg0, %c8_i32_297 : i32
    %c7_i32_298 = arith.constant 7 : i32
    %569 = arith.addi %568, %c7_i32_298 : i32
    %570 = arith.index_cast %569 : i32 to index
    %c7_299 = arith.constant 7 : index
    %571 = memref.load %arg1[%570, %c7_299] : memref<8x8xi32, #tpu.memory_space<smem>>
    %572 = vector.broadcast %571 : i32 to vector<1x16xi32>
    %573 = arith.cmpi eq, %0, %572 : vector<1x16xi32>
    %cst_300 = arith.constant 1.000000e+00 : f32
    %cst_301 = arith.constant 0.000000e+00 : f32
    %574 = vector.broadcast %cst_300 : f32 to vector<1x16xf32>
    %575 = vector.broadcast %cst_301 : f32 to vector<1x16xf32>
    %576 = arith.select %573, %574, %575 : vector<1x16xi1>, vector<1x16xf32>
    %577 = tpu.concatenate %9, %18, %27, %36, %45, %54, %63, %72, %81, %90, %99, %108, %117, %126, %135, %144 in 0 : vector<1x16xf32>, vector<1x16xf32>, vector<1x16xf32>, vector<1x16xf32>, vector<1x16xf32>, vector<1x16xf32>, vector<1x16xf32>, vector<1x16xf32>, vector<1x16xf32>, vector<1x16xf32>, vector<1x16xf32>, vector<1x16xf32>, vector<1x16xf32>, vector<1x16xf32>, vector<1x16xf32>, vector<1x16xf32> -> vector<16x16xf32>
    %578 = tpu.concatenate %153, %162, %171, %180, %189, %198, %207, %216, %225, %234, %243, %252, %261, %270, %279, %288 in 0 : vector<1x16xf32>, vector<1x16xf32>, vector<1x16xf32>, vector<1x16xf32>, vector<1x16xf32>, vector<1x16xf32>, vector<1x16xf32>, vector<1x16xf32>, vector<1x16xf32>, vector<1x16xf32>, vector<1x16xf32>, vector<1x16xf32>, vector<1x16xf32>, vector<1x16xf32>, vector<1x16xf32>, vector<1x16xf32> -> vector<16x16xf32>
    %579 = tpu.concatenate %297, %306, %315, %324, %333, %342, %351, %360, %369, %378, %387, %396, %405, %414, %423, %432 in 0 : vector<1x16xf32>, vector<1x16xf32>, vector<1x16xf32>, vector<1x16xf32>, vector<1x16xf32>, vector<1x16xf32>, vector<1x16xf32>, vector<1x16xf32>, vector<1x16xf32>, vector<1x16xf32>, vector<1x16xf32>, vector<1x16xf32>, vector<1x16xf32>, vector<1x16xf32>, vector<1x16xf32>, vector<1x16xf32> -> vector<16x16xf32>
    %580 = tpu.concatenate %441, %450, %459, %468, %477, %486, %495, %504, %513, %522, %531, %540, %549, %558, %567, %576 in 0 : vector<1x16xf32>, vector<1x16xf32>, vector<1x16xf32>, vector<1x16xf32>, vector<1x16xf32>, vector<1x16xf32>, vector<1x16xf32>, vector<1x16xf32>, vector<1x16xf32>, vector<1x16xf32>, vector<1x16xf32>, vector<1x16xf32>, vector<1x16xf32>, vector<1x16xf32>, vector<1x16xf32>, vector<1x16xf32> -> vector<16x16xf32>
    %581 = tpu.concatenate %577, %578, %579, %580 in 0 : vector<16x16xf32>, vector<16x16xf32>, vector<16x16xf32>, vector<16x16xf32> -> vector<64x16xf32>
    %c0_302 = arith.constant 0 : index
    %c0_303 = arith.constant 0 : index
    %582 = vector.load %arg2[%c0_302, %c0_303] : memref<16x32xf32, #tpu.memory_space<vmem>>, vector<16x32xf32>
    %cst_304 = arith.constant dense<0.000000e+00> : vector<64x32xf32>
    %583 = tpu.matmul %581, %582, %cst_304 {dimension_numbers = #tpu.dot_dimension_numbers<[1], [0], [0], [1], [0, 0, 1, 1], [], []>} : vector<64x16xf32>, vector<16x32xf32>, vector<64x32xf32> -> vector<64x32xf32>
    %c0_305 = arith.constant 0 : index
    %c0_306 = arith.constant 0 : index
    %584 = vector.load %arg3[%c0_305, %c0_306] : memref<32x384xf32, #tpu.memory_space<vmem>>, vector<32x384xf32>
    %cst_307 = arith.constant dense<0.000000e+00> : vector<64x384xf32>
    %585 = tpu.matmul %583, %584, %cst_307 {dimension_numbers = #tpu.dot_dimension_numbers<[1], [0], [0], [1], [0, 0, 1, 1], [], []>} : vector<64x32xf32>, vector<32x384xf32>, vector<64x384xf32> -> vector<64x384xf32>
    %c0_308 = arith.constant 0 : index
    %c0_309 = arith.constant 0 : index
    %586 = vector.load %arg4[%c0_308, %c0_309] : memref<1x384xf32, #tpu.memory_space<vmem>>, vector<1x384xf32>
    %587 = vector.broadcast %586 : vector<1x384xf32> to vector<64x384xf32>
    %588 = arith.addf %585, %587 : vector<64x384xf32>
    %c0_310 = arith.constant 0 : index
    %c0_311 = arith.constant 0 : index
    %589 = vector.load %arg10[%c0_310, %c0_311] : memref<64x384xf32, #tpu.memory_space<vmem>>, vector<64x384xf32>
    tpu.vector_store %arg10[%c0_310, %c0_311], %588 {strides = array<i32>} : memref<64x384xf32, #tpu.memory_space<vmem>>, vector<64x384xf32>,
    %cst_312 = arith.constant 0.000000e+00 : f32
    %590 = vector.broadcast %cst_312 : f32 to vector<8x128xf32>
    %c0_313 = arith.constant 0 : index
    %c0_314 = arith.constant 0 : index
    %591 = vector.load %arg10[%c0_313, %c0_314] : memref<64x384xf32, #tpu.memory_space<vmem>>, vector<8x384xf32>
    %c0_315 = arith.constant 0 : index
    %c0_316 = arith.constant 0 : index
    %592 = vector.load %arg5[%c0_315, %c0_316] : memref<128x384xf32, #tpu.memory_space<vmem>>, vector<128x384xf32>
    %cst_317 = arith.constant dense<0.000000e+00> : vector<8x384xf32>
    %593 = tpu.matmul %590, %592, %cst_317 {dimension_numbers = #tpu.dot_dimension_numbers<[1], [0], [0], [1], [0, 0, 1, 1], [], []>} : vector<8x128xf32>, vector<128x384xf32>, vector<8x384xf32> -> vector<8x384xf32>
    %c0_318 = arith.constant 0 : index
    %c0_319 = arith.constant 0 : index
    %594 = vector.load %arg6[%c0_318, %c0_319] : memref<1x384xf32, #tpu.memory_space<vmem>>, vector<1x384xf32>
    %595 = vector.broadcast %594 : vector<1x384xf32> to vector<8x384xf32>
    %596 = arith.addf %593, %595 : vector<8x384xf32>
    %597 = vector.extract_strided_slice %591 {offsets = [0, 0], sizes = [8, 128], strides = [1, 1]} : vector<8x384xf32> to vector<8x128xf32>
    %598 = vector.extract_strided_slice %596 {offsets = [0, 0], sizes = [8, 128], strides = [1, 1]} : vector<8x384xf32> to vector<8x128xf32>
    %599 = arith.addf %597, %598 : vector<8x128xf32>
    %600 = arith.negf %599 : vector<8x128xf32>
    %601 = math.exp %600 : vector<8x128xf32>
    %cst_320 = arith.constant 1.000000e+00 : f32
    %602 = vector.broadcast %cst_320 : f32 to vector<8x128xf32>
    %603 = arith.addf %602, %601 : vector<8x128xf32>
    %604 = arith.divf %602, %603 : vector<8x128xf32>
    %605 = vector.extract_strided_slice %591 {offsets = [0, 128], sizes = [8, 128], strides = [1, 1]} : vector<8x384xf32> to vector<8x128xf32>
    %606 = vector.extract_strided_slice %596 {offsets = [0, 128], sizes = [8, 128], strides = [1, 1]} : vector<8x384xf32> to vector<8x128xf32>
    %607 = arith.addf %605, %606 : vector<8x128xf32>
    %608 = arith.negf %607 : vector<8x128xf32>
    %609 = math.exp %608 : vector<8x128xf32>
    %cst_321 = arith.constant 1.000000e+00 : f32
    %610 = vector.broadcast %cst_321 : f32 to vector<8x128xf32>
    %611 = arith.addf %610, %609 : vector<8x128xf32>
    %612 = arith.divf %610, %611 : vector<8x128xf32>
    %613 = vector.extract_strided_slice %591 {offsets = [0, 256], sizes = [8, 128], strides = [1, 1]} : vector<8x384xf32> to vector<8x128xf32>
    %614 = vector.extract_strided_slice %596 {offsets = [0, 256], sizes = [8, 128], strides = [1, 1]} : vector<8x384xf32> to vector<8x128xf32>
    %615 = arith.mulf %604, %614 : vector<8x128xf32>
    %616 = arith.addf %613, %615 : vector<8x128xf32>
    %617 = math.tanh %616 : vector<8x128xf32>
    %cst_322 = arith.constant 1.000000e+00 : f32
    %618 = vector.broadcast %cst_322 : f32 to vector<8x128xf32>
    %619 = arith.subf %618, %612 : vector<8x128xf32>
    %620 = arith.mulf %619, %617 : vector<8x128xf32>
    %621 = arith.mulf %612, %590 : vector<8x128xf32>
    %622 = arith.addf %620, %621 : vector<8x128xf32>
    %c8 = arith.constant 8 : index
    %c0_323 = arith.constant 0 : index
    %623 = vector.load %arg10[%c8, %c0_323] : memref<64x384xf32, #tpu.memory_space<vmem>>, vector<8x384xf32>
    %c0_324 = arith.constant 0 : index
    %c0_325 = arith.constant 0 : index
    %624 = vector.load %arg5[%c0_324, %c0_325] : memref<128x384xf32, #tpu.memory_space<vmem>>, vector<128x384xf32>
    %cst_326 = arith.constant dense<0.000000e+00> : vector<8x384xf32>
    %625 = tpu.matmul %622, %624, %cst_326 {dimension_numbers = #tpu.dot_dimension_numbers<[1], [0], [0], [1], [0, 0, 1, 1], [], []>} : vector<8x128xf32>, vector<128x384xf32>, vector<8x384xf32> -> vector<8x384xf32>
    %c0_327 = arith.constant 0 : index
    %c0_328 = arith.constant 0 : index
    %626 = vector.load %arg6[%c0_327, %c0_328] : memref<1x384xf32, #tpu.memory_space<vmem>>, vector<1x384xf32>
    %627 = vector.broadcast %626 : vector<1x384xf32> to vector<8x384xf32>
    %628 = arith.addf %625, %627 : vector<8x384xf32>
    %629 = vector.extract_strided_slice %623 {offsets = [0, 0], sizes = [8, 128], strides = [1, 1]} : vector<8x384xf32> to vector<8x128xf32>
    %630 = vector.extract_strided_slice %628 {offsets = [0, 0], sizes = [8, 128], strides = [1, 1]} : vector<8x384xf32> to vector<8x128xf32>
    %631 = arith.addf %629, %630 : vector<8x128xf32>
    %632 = arith.negf %631 : vector<8x128xf32>
    %633 = math.exp %632 : vector<8x128xf32>
    %cst_329 = arith.constant 1.000000e+00 : f32
    %634 = vector.broadcast %cst_329 : f32 to vector<8x128xf32>
    %635 = arith.addf %634, %633 : vector<8x128xf32>
    %636 = arith.divf %634, %635 : vector<8x128xf32>
    %637 = vector.extract_strided_slice %623 {offsets = [0, 128], sizes = [8, 128], strides = [1, 1]} : vector<8x384xf32> to vector<8x128xf32>
    %638 = vector.extract_strided_slice %628 {offsets = [0, 128], sizes = [8, 128], strides = [1, 1]} : vector<8x384xf32> to vector<8x128xf32>
    %639 = arith.addf %637, %638 : vector<8x128xf32>
    %640 = arith.negf %639 : vector<8x128xf32>
    %641 = math.exp %640 : vector<8x128xf32>
    %cst_330 = arith.constant 1.000000e+00 : f32
    %642 = vector.broadcast %cst_330 : f32 to vector<8x128xf32>
    %643 = arith.addf %642, %641 : vector<8x128xf32>
    %644 = arith.divf %642, %643 : vector<8x128xf32>
    %645 = vector.extract_strided_slice %623 {offsets = [0, 256], sizes = [8, 128], strides = [1, 1]} : vector<8x384xf32> to vector<8x128xf32>
    %646 = vector.extract_strided_slice %628 {offsets = [0, 256], sizes = [8, 128], strides = [1, 1]} : vector<8x384xf32> to vector<8x128xf32>
    %647 = arith.mulf %636, %646 : vector<8x128xf32>
    %648 = arith.addf %645, %647 : vector<8x128xf32>
    %649 = math.tanh %648 : vector<8x128xf32>
    %cst_331 = arith.constant 1.000000e+00 : f32
    %650 = vector.broadcast %cst_331 : f32 to vector<8x128xf32>
    %651 = arith.subf %650, %644 : vector<8x128xf32>
    %652 = arith.mulf %651, %649 : vector<8x128xf32>
    %653 = arith.mulf %644, %622 : vector<8x128xf32>
    %654 = arith.addf %652, %653 : vector<8x128xf32>
    %c16 = arith.constant 16 : index
    %c0_332 = arith.constant 0 : index
    %655 = vector.load %arg10[%c16, %c0_332] : memref<64x384xf32, #tpu.memory_space<vmem>>, vector<8x384xf32>
    %c0_333 = arith.constant 0 : index
    %c0_334 = arith.constant 0 : index
    %656 = vector.load %arg5[%c0_333, %c0_334] : memref<128x384xf32, #tpu.memory_space<vmem>>, vector<128x384xf32>
    %cst_335 = arith.constant dense<0.000000e+00> : vector<8x384xf32>
    %657 = tpu.matmul %654, %656, %cst_335 {dimension_numbers = #tpu.dot_dimension_numbers<[1], [0], [0], [1], [0, 0, 1, 1], [], []>} : vector<8x128xf32>, vector<128x384xf32>, vector<8x384xf32> -> vector<8x384xf32>
    %c0_336 = arith.constant 0 : index
    %c0_337 = arith.constant 0 : index
    %658 = vector.load %arg6[%c0_336, %c0_337] : memref<1x384xf32, #tpu.memory_space<vmem>>, vector<1x384xf32>
    %659 = vector.broadcast %658 : vector<1x384xf32> to vector<8x384xf32>
    %660 = arith.addf %657, %659 : vector<8x384xf32>
    %661 = vector.extract_strided_slice %655 {offsets = [0, 0], sizes = [8, 128], strides = [1, 1]} : vector<8x384xf32> to vector<8x128xf32>
    %662 = vector.extract_strided_slice %660 {offsets = [0, 0], sizes = [8, 128], strides = [1, 1]} : vector<8x384xf32> to vector<8x128xf32>
    %663 = arith.addf %661, %662 : vector<8x128xf32>
    %664 = arith.negf %663 : vector<8x128xf32>
    %665 = math.exp %664 : vector<8x128xf32>
    %cst_338 = arith.constant 1.000000e+00 : f32
    %666 = vector.broadcast %cst_338 : f32 to vector<8x128xf32>
    %667 = arith.addf %666, %665 : vector<8x128xf32>
    %668 = arith.divf %666, %667 : vector<8x128xf32>
    %669 = vector.extract_strided_slice %655 {offsets = [0, 128], sizes = [8, 128], strides = [1, 1]} : vector<8x384xf32> to vector<8x128xf32>
    %670 = vector.extract_strided_slice %660 {offsets = [0, 128], sizes = [8, 128], strides = [1, 1]} : vector<8x384xf32> to vector<8x128xf32>
    %671 = arith.addf %669, %670 : vector<8x128xf32>
    %672 = arith.negf %671 : vector<8x128xf32>
    %673 = math.exp %672 : vector<8x128xf32>
    %cst_339 = arith.constant 1.000000e+00 : f32
    %674 = vector.broadcast %cst_339 : f32 to vector<8x128xf32>
    %675 = arith.addf %674, %673 : vector<8x128xf32>
    %676 = arith.divf %674, %675 : vector<8x128xf32>
    %677 = vector.extract_strided_slice %655 {offsets = [0, 256], sizes = [8, 128], strides = [1, 1]} : vector<8x384xf32> to vector<8x128xf32>
    %678 = vector.extract_strided_slice %660 {offsets = [0, 256], sizes = [8, 128], strides = [1, 1]} : vector<8x384xf32> to vector<8x128xf32>
    %679 = arith.mulf %668, %678 : vector<8x128xf32>
    %680 = arith.addf %677, %679 : vector<8x128xf32>
    %681 = math.tanh %680 : vector<8x128xf32>
    %cst_340 = arith.constant 1.000000e+00 : f32
    %682 = vector.broadcast %cst_340 : f32 to vector<8x128xf32>
    %683 = arith.subf %682, %676 : vector<8x128xf32>
    %684 = arith.mulf %683, %681 : vector<8x128xf32>
    %685 = arith.mulf %676, %654 : vector<8x128xf32>
    %686 = arith.addf %684, %685 : vector<8x128xf32>
    %c24 = arith.constant 24 : index
    %c0_341 = arith.constant 0 : index
    %687 = vector.load %arg10[%c24, %c0_341] : memref<64x384xf32, #tpu.memory_space<vmem>>, vector<8x384xf32>
    %c0_342 = arith.constant 0 : index
    %c0_343 = arith.constant 0 : index
    %688 = vector.load %arg5[%c0_342, %c0_343] : memref<128x384xf32, #tpu.memory_space<vmem>>, vector<128x384xf32>
    %cst_344 = arith.constant dense<0.000000e+00> : vector<8x384xf32>
    %689 = tpu.matmul %686, %688, %cst_344 {dimension_numbers = #tpu.dot_dimension_numbers<[1], [0], [0], [1], [0, 0, 1, 1], [], []>} : vector<8x128xf32>, vector<128x384xf32>, vector<8x384xf32> -> vector<8x384xf32>
    %c0_345 = arith.constant 0 : index
    %c0_346 = arith.constant 0 : index
    %690 = vector.load %arg6[%c0_345, %c0_346] : memref<1x384xf32, #tpu.memory_space<vmem>>, vector<1x384xf32>
    %691 = vector.broadcast %690 : vector<1x384xf32> to vector<8x384xf32>
    %692 = arith.addf %689, %691 : vector<8x384xf32>
    %693 = vector.extract_strided_slice %687 {offsets = [0, 0], sizes = [8, 128], strides = [1, 1]} : vector<8x384xf32> to vector<8x128xf32>
    %694 = vector.extract_strided_slice %692 {offsets = [0, 0], sizes = [8, 128], strides = [1, 1]} : vector<8x384xf32> to vector<8x128xf32>
    %695 = arith.addf %693, %694 : vector<8x128xf32>
    %696 = arith.negf %695 : vector<8x128xf32>
    %697 = math.exp %696 : vector<8x128xf32>
    %cst_347 = arith.constant 1.000000e+00 : f32
    %698 = vector.broadcast %cst_347 : f32 to vector<8x128xf32>
    %699 = arith.addf %698, %697 : vector<8x128xf32>
    %700 = arith.divf %698, %699 : vector<8x128xf32>
    %701 = vector.extract_strided_slice %687 {offsets = [0, 128], sizes = [8, 128], strides = [1, 1]} : vector<8x384xf32> to vector<8x128xf32>
    %702 = vector.extract_strided_slice %692 {offsets = [0, 128], sizes = [8, 128], strides = [1, 1]} : vector<8x384xf32> to vector<8x128xf32>
    %703 = arith.addf %701, %702 : vector<8x128xf32>
    %704 = arith.negf %703 : vector<8x128xf32>
    %705 = math.exp %704 : vector<8x128xf32>
    %cst_348 = arith.constant 1.000000e+00 : f32
    %706 = vector.broadcast %cst_348 : f32 to vector<8x128xf32>
    %707 = arith.addf %706, %705 : vector<8x128xf32>
    %708 = arith.divf %706, %707 : vector<8x128xf32>
    %709 = vector.extract_strided_slice %687 {offsets = [0, 256], sizes = [8, 128], strides = [1, 1]} : vector<8x384xf32> to vector<8x128xf32>
    %710 = vector.extract_strided_slice %692 {offsets = [0, 256], sizes = [8, 128], strides = [1, 1]} : vector<8x384xf32> to vector<8x128xf32>
    %711 = arith.mulf %700, %710 : vector<8x128xf32>
    %712 = arith.addf %709, %711 : vector<8x128xf32>
    %713 = math.tanh %712 : vector<8x128xf32>
    %cst_349 = arith.constant 1.000000e+00 : f32
    %714 = vector.broadcast %cst_349 : f32 to vector<8x128xf32>
    %715 = arith.subf %714, %708 : vector<8x128xf32>
    %716 = arith.mulf %715, %713 : vector<8x128xf32>
    %717 = arith.mulf %708, %686 : vector<8x128xf32>
    %718 = arith.addf %716, %717 : vector<8x128xf32>
    %c32 = arith.constant 32 : index
    %c0_350 = arith.constant 0 : index
    %719 = vector.load %arg10[%c32, %c0_350] : memref<64x384xf32, #tpu.memory_space<vmem>>, vector<8x384xf32>
    %c0_351 = arith.constant 0 : index
    %c0_352 = arith.constant 0 : index
    %720 = vector.load %arg5[%c0_351, %c0_352] : memref<128x384xf32, #tpu.memory_space<vmem>>, vector<128x384xf32>
    %cst_353 = arith.constant dense<0.000000e+00> : vector<8x384xf32>
    %721 = tpu.matmul %718, %720, %cst_353 {dimension_numbers = #tpu.dot_dimension_numbers<[1], [0], [0], [1], [0, 0, 1, 1], [], []>} : vector<8x128xf32>, vector<128x384xf32>, vector<8x384xf32> -> vector<8x384xf32>
    %c0_354 = arith.constant 0 : index
    %c0_355 = arith.constant 0 : index
    %722 = vector.load %arg6[%c0_354, %c0_355] : memref<1x384xf32, #tpu.memory_space<vmem>>, vector<1x384xf32>
    %723 = vector.broadcast %722 : vector<1x384xf32> to vector<8x384xf32>
    %724 = arith.addf %721, %723 : vector<8x384xf32>
    %725 = vector.extract_strided_slice %719 {offsets = [0, 0], sizes = [8, 128], strides = [1, 1]} : vector<8x384xf32> to vector<8x128xf32>
    %726 = vector.extract_strided_slice %724 {offsets = [0, 0], sizes = [8, 128], strides = [1, 1]} : vector<8x384xf32> to vector<8x128xf32>
    %727 = arith.addf %725, %726 : vector<8x128xf32>
    %728 = arith.negf %727 : vector<8x128xf32>
    %729 = math.exp %728 : vector<8x128xf32>
    %cst_356 = arith.constant 1.000000e+00 : f32
    %730 = vector.broadcast %cst_356 : f32 to vector<8x128xf32>
    %731 = arith.addf %730, %729 : vector<8x128xf32>
    %732 = arith.divf %730, %731 : vector<8x128xf32>
    %733 = vector.extract_strided_slice %719 {offsets = [0, 128], sizes = [8, 128], strides = [1, 1]} : vector<8x384xf32> to vector<8x128xf32>
    %734 = vector.extract_strided_slice %724 {offsets = [0, 128], sizes = [8, 128], strides = [1, 1]} : vector<8x384xf32> to vector<8x128xf32>
    %735 = arith.addf %733, %734 : vector<8x128xf32>
    %736 = arith.negf %735 : vector<8x128xf32>
    %737 = math.exp %736 : vector<8x128xf32>
    %cst_357 = arith.constant 1.000000e+00 : f32
    %738 = vector.broadcast %cst_357 : f32 to vector<8x128xf32>
    %739 = arith.addf %738, %737 : vector<8x128xf32>
    %740 = arith.divf %738, %739 : vector<8x128xf32>
    %741 = vector.extract_strided_slice %719 {offsets = [0, 256], sizes = [8, 128], strides = [1, 1]} : vector<8x384xf32> to vector<8x128xf32>
    %742 = vector.extract_strided_slice %724 {offsets = [0, 256], sizes = [8, 128], strides = [1, 1]} : vector<8x384xf32> to vector<8x128xf32>
    %743 = arith.mulf %732, %742 : vector<8x128xf32>
    %744 = arith.addf %741, %743 : vector<8x128xf32>
    %745 = math.tanh %744 : vector<8x128xf32>
    %cst_358 = arith.constant 1.000000e+00 : f32
    %746 = vector.broadcast %cst_358 : f32 to vector<8x128xf32>
    %747 = arith.subf %746, %740 : vector<8x128xf32>
    %748 = arith.mulf %747, %745 : vector<8x128xf32>
    %749 = arith.mulf %740, %718 : vector<8x128xf32>
    %750 = arith.addf %748, %749 : vector<8x128xf32>
    %c40 = arith.constant 40 : index
    %c0_359 = arith.constant 0 : index
    %751 = vector.load %arg10[%c40, %c0_359] : memref<64x384xf32, #tpu.memory_space<vmem>>, vector<8x384xf32>
    %c0_360 = arith.constant 0 : index
    %c0_361 = arith.constant 0 : index
    %752 = vector.load %arg5[%c0_360, %c0_361] : memref<128x384xf32, #tpu.memory_space<vmem>>, vector<128x384xf32>
    %cst_362 = arith.constant dense<0.000000e+00> : vector<8x384xf32>
    %753 = tpu.matmul %750, %752, %cst_362 {dimension_numbers = #tpu.dot_dimension_numbers<[1], [0], [0], [1], [0, 0, 1, 1], [], []>} : vector<8x128xf32>, vector<128x384xf32>, vector<8x384xf32> -> vector<8x384xf32>
    %c0_363 = arith.constant 0 : index
    %c0_364 = arith.constant 0 : index
    %754 = vector.load %arg6[%c0_363, %c0_364] : memref<1x384xf32, #tpu.memory_space<vmem>>, vector<1x384xf32>
    %755 = vector.broadcast %754 : vector<1x384xf32> to vector<8x384xf32>
    %756 = arith.addf %753, %755 : vector<8x384xf32>
    %757 = vector.extract_strided_slice %751 {offsets = [0, 0], sizes = [8, 128], strides = [1, 1]} : vector<8x384xf32> to vector<8x128xf32>
    %758 = vector.extract_strided_slice %756 {offsets = [0, 0], sizes = [8, 128], strides = [1, 1]} : vector<8x384xf32> to vector<8x128xf32>
    %759 = arith.addf %757, %758 : vector<8x128xf32>
    %760 = arith.negf %759 : vector<8x128xf32>
    %761 = math.exp %760 : vector<8x128xf32>
    %cst_365 = arith.constant 1.000000e+00 : f32
    %762 = vector.broadcast %cst_365 : f32 to vector<8x128xf32>
    %763 = arith.addf %762, %761 : vector<8x128xf32>
    %764 = arith.divf %762, %763 : vector<8x128xf32>
    %765 = vector.extract_strided_slice %751 {offsets = [0, 128], sizes = [8, 128], strides = [1, 1]} : vector<8x384xf32> to vector<8x128xf32>
    %766 = vector.extract_strided_slice %756 {offsets = [0, 128], sizes = [8, 128], strides = [1, 1]} : vector<8x384xf32> to vector<8x128xf32>
    %767 = arith.addf %765, %766 : vector<8x128xf32>
    %768 = arith.negf %767 : vector<8x128xf32>
    %769 = math.exp %768 : vector<8x128xf32>
    %cst_366 = arith.constant 1.000000e+00 : f32
    %770 = vector.broadcast %cst_366 : f32 to vector<8x128xf32>
    %771 = arith.addf %770, %769 : vector<8x128xf32>
    %772 = arith.divf %770, %771 : vector<8x128xf32>
    %773 = vector.extract_strided_slice %751 {offsets = [0, 256], sizes = [8, 128], strides = [1, 1]} : vector<8x384xf32> to vector<8x128xf32>
    %774 = vector.extract_strided_slice %756 {offsets = [0, 256], sizes = [8, 128], strides = [1, 1]} : vector<8x384xf32> to vector<8x128xf32>
    %775 = arith.mulf %764, %774 : vector<8x128xf32>
    %776 = arith.addf %773, %775 : vector<8x128xf32>
    %777 = math.tanh %776 : vector<8x128xf32>
    %cst_367 = arith.constant 1.000000e+00 : f32
    %778 = vector.broadcast %cst_367 : f32 to vector<8x128xf32>
    %779 = arith.subf %778, %772 : vector<8x128xf32>
    %780 = arith.mulf %779, %777 : vector<8x128xf32>
    %781 = arith.mulf %772, %750 : vector<8x128xf32>
    %782 = arith.addf %780, %781 : vector<8x128xf32>
    %c48 = arith.constant 48 : index
    %c0_368 = arith.constant 0 : index
    %783 = vector.load %arg10[%c48, %c0_368] : memref<64x384xf32, #tpu.memory_space<vmem>>, vector<8x384xf32>
    %c0_369 = arith.constant 0 : index
    %c0_370 = arith.constant 0 : index
    %784 = vector.load %arg5[%c0_369, %c0_370] : memref<128x384xf32, #tpu.memory_space<vmem>>, vector<128x384xf32>
    %cst_371 = arith.constant dense<0.000000e+00> : vector<8x384xf32>
    %785 = tpu.matmul %782, %784, %cst_371 {dimension_numbers = #tpu.dot_dimension_numbers<[1], [0], [0], [1], [0, 0, 1, 1], [], []>} : vector<8x128xf32>, vector<128x384xf32>, vector<8x384xf32> -> vector<8x384xf32>
    %c0_372 = arith.constant 0 : index
    %c0_373 = arith.constant 0 : index
    %786 = vector.load %arg6[%c0_372, %c0_373] : memref<1x384xf32, #tpu.memory_space<vmem>>, vector<1x384xf32>
    %787 = vector.broadcast %786 : vector<1x384xf32> to vector<8x384xf32>
    %788 = arith.addf %785, %787 : vector<8x384xf32>
    %789 = vector.extract_strided_slice %783 {offsets = [0, 0], sizes = [8, 128], strides = [1, 1]} : vector<8x384xf32> to vector<8x128xf32>
    %790 = vector.extract_strided_slice %788 {offsets = [0, 0], sizes = [8, 128], strides = [1, 1]} : vector<8x384xf32> to vector<8x128xf32>
    %791 = arith.addf %789, %790 : vector<8x128xf32>
    %792 = arith.negf %791 : vector<8x128xf32>
    %793 = math.exp %792 : vector<8x128xf32>
    %cst_374 = arith.constant 1.000000e+00 : f32
    %794 = vector.broadcast %cst_374 : f32 to vector<8x128xf32>
    %795 = arith.addf %794, %793 : vector<8x128xf32>
    %796 = arith.divf %794, %795 : vector<8x128xf32>
    %797 = vector.extract_strided_slice %783 {offsets = [0, 128], sizes = [8, 128], strides = [1, 1]} : vector<8x384xf32> to vector<8x128xf32>
    %798 = vector.extract_strided_slice %788 {offsets = [0, 128], sizes = [8, 128], strides = [1, 1]} : vector<8x384xf32> to vector<8x128xf32>
    %799 = arith.addf %797, %798 : vector<8x128xf32>
    %800 = arith.negf %799 : vector<8x128xf32>
    %801 = math.exp %800 : vector<8x128xf32>
    %cst_375 = arith.constant 1.000000e+00 : f32
    %802 = vector.broadcast %cst_375 : f32 to vector<8x128xf32>
    %803 = arith.addf %802, %801 : vector<8x128xf32>
    %804 = arith.divf %802, %803 : vector<8x128xf32>
    %805 = vector.extract_strided_slice %783 {offsets = [0, 256], sizes = [8, 128], strides = [1, 1]} : vector<8x384xf32> to vector<8x128xf32>
    %806 = vector.extract_strided_slice %788 {offsets = [0, 256], sizes = [8, 128], strides = [1, 1]} : vector<8x384xf32> to vector<8x128xf32>
    %807 = arith.mulf %796, %806 : vector<8x128xf32>
    %808 = arith.addf %805, %807 : vector<8x128xf32>
    %809 = math.tanh %808 : vector<8x128xf32>
    %cst_376 = arith.constant 1.000000e+00 : f32
    %810 = vector.broadcast %cst_376 : f32 to vector<8x128xf32>
    %811 = arith.subf %810, %804 : vector<8x128xf32>
    %812 = arith.mulf %811, %809 : vector<8x128xf32>
    %813 = arith.mulf %804, %782 : vector<8x128xf32>
    %814 = arith.addf %812, %813 : vector<8x128xf32>
    %c56 = arith.constant 56 : index
    %c0_377 = arith.constant 0 : index
    %815 = vector.load %arg10[%c56, %c0_377] : memref<64x384xf32, #tpu.memory_space<vmem>>, vector<8x384xf32>
    %c0_378 = arith.constant 0 : index
    %c0_379 = arith.constant 0 : index
    %816 = vector.load %arg5[%c0_378, %c0_379] : memref<128x384xf32, #tpu.memory_space<vmem>>, vector<128x384xf32>
    %cst_380 = arith.constant dense<0.000000e+00> : vector<8x384xf32>
    %817 = tpu.matmul %814, %816, %cst_380 {dimension_numbers = #tpu.dot_dimension_numbers<[1], [0], [0], [1], [0, 0, 1, 1], [], []>} : vector<8x128xf32>, vector<128x384xf32>, vector<8x384xf32> -> vector<8x384xf32>
    %c0_381 = arith.constant 0 : index
    %c0_382 = arith.constant 0 : index
    %818 = vector.load %arg6[%c0_381, %c0_382] : memref<1x384xf32, #tpu.memory_space<vmem>>, vector<1x384xf32>
    %819 = vector.broadcast %818 : vector<1x384xf32> to vector<8x384xf32>
    %820 = arith.addf %817, %819 : vector<8x384xf32>
    %821 = vector.extract_strided_slice %815 {offsets = [0, 0], sizes = [8, 128], strides = [1, 1]} : vector<8x384xf32> to vector<8x128xf32>
    %822 = vector.extract_strided_slice %820 {offsets = [0, 0], sizes = [8, 128], strides = [1, 1]} : vector<8x384xf32> to vector<8x128xf32>
    %823 = arith.addf %821, %822 : vector<8x128xf32>
    %824 = arith.negf %823 : vector<8x128xf32>
    %825 = math.exp %824 : vector<8x128xf32>
    %cst_383 = arith.constant 1.000000e+00 : f32
    %826 = vector.broadcast %cst_383 : f32 to vector<8x128xf32>
    %827 = arith.addf %826, %825 : vector<8x128xf32>
    %828 = arith.divf %826, %827 : vector<8x128xf32>
    %829 = vector.extract_strided_slice %815 {offsets = [0, 128], sizes = [8, 128], strides = [1, 1]} : vector<8x384xf32> to vector<8x128xf32>
    %830 = vector.extract_strided_slice %820 {offsets = [0, 128], sizes = [8, 128], strides = [1, 1]} : vector<8x384xf32> to vector<8x128xf32>
    %831 = arith.addf %829, %830 : vector<8x128xf32>
    %832 = arith.negf %831 : vector<8x128xf32>
    %833 = math.exp %832 : vector<8x128xf32>
    %cst_384 = arith.constant 1.000000e+00 : f32
    %834 = vector.broadcast %cst_384 : f32 to vector<8x128xf32>
    %835 = arith.addf %834, %833 : vector<8x128xf32>
    %836 = arith.divf %834, %835 : vector<8x128xf32>
    %837 = vector.extract_strided_slice %815 {offsets = [0, 256], sizes = [8, 128], strides = [1, 1]} : vector<8x384xf32> to vector<8x128xf32>
    %838 = vector.extract_strided_slice %820 {offsets = [0, 256], sizes = [8, 128], strides = [1, 1]} : vector<8x384xf32> to vector<8x128xf32>
    %839 = arith.mulf %828, %838 : vector<8x128xf32>
    %840 = arith.addf %837, %839 : vector<8x128xf32>
    %841 = math.tanh %840 : vector<8x128xf32>
    %cst_385 = arith.constant 1.000000e+00 : f32
    %842 = vector.broadcast %cst_385 : f32 to vector<8x128xf32>
    %843 = arith.subf %842, %836 : vector<8x128xf32>
    %844 = arith.mulf %843, %841 : vector<8x128xf32>
    %845 = arith.mulf %836, %814 : vector<8x128xf32>
    %846 = arith.addf %844, %845 : vector<8x128xf32>
    %c0_386 = arith.constant 0 : index
    %c0_387 = arith.constant 0 : index
    %847 = vector.load %arg7[%c0_386, %c0_387] : memref<128x128xf32, #tpu.memory_space<vmem>>, vector<128x128xf32>
    %cst_388 = arith.constant dense<0.000000e+00> : vector<8x128xf32>
    %848 = tpu.matmul %846, %847, %cst_388 {dimension_numbers = #tpu.dot_dimension_numbers<[1], [0], [0], [1], [0, 0, 1, 1], [], []>} : vector<8x128xf32>, vector<128x128xf32>, vector<8x128xf32> -> vector<8x128xf32>
    %c0_389 = arith.constant 0 : index
    %c0_390 = arith.constant 0 : index
    %849 = vector.load %arg8[%c0_389, %c0_390] : memref<1x128xf32, #tpu.memory_space<vmem>>, vector<1x128xf32>
    %850 = vector.broadcast %849 : vector<1x128xf32> to vector<8x128xf32>
    %851 = arith.addf %848, %850 : vector<8x128xf32>
    %cst_391 = arith.constant dense<0xFF800000> : vector<8xf32>
    %852 = vector.multi_reduction <maximumf>, %851, %cst_391 [1] : vector<8x128xf32> to vector<8xf32>
    %853 = vector.shape_cast %852 : vector<8xf32> to vector<8x1xf32>
    %854 = vector.broadcast %853 : vector<8x1xf32> to vector<8x128xf32>
    %855 = arith.subf %851, %854 : vector<8x128xf32>
    %856 = math.exp %855 : vector<8x128xf32>
    %cst_392 = arith.constant dense<0.000000e+00> : vector<8xf32>
    %857 = vector.multi_reduction <add>, %856, %cst_392 [1] : vector<8x128xf32> to vector<8xf32>
    %858 = vector.shape_cast %857 : vector<8xf32> to vector<8x1xf32>
    %859 = vector.broadcast %858 : vector<8x1xf32> to vector<8x128xf32>
    %860 = arith.divf %856, %859 : vector<8x128xf32>
    %c0_393 = arith.constant 0 : index
    %c0_394 = arith.constant 0 : index
    %861 = vector.load %arg9[%c0_393, %c0_394] : memref<8x128xf32, #tpu.memory_space<vmem>>, vector<8x128xf32>
    tpu.vector_store %arg9[%c0_393, %c0_394], %860 {strides = array<i32>} : memref<8x128xf32, #tpu.memory_space<vmem>>, vector<8x128xf32>,
    return
  }
  func.func @transform_0(%arg0: i32, %arg1: memref<8x8xi32, #tpu.memory_space<smem>>) -> (i32, i32) {
    %c0_i32 = arith.constant 0 : i32
    %c0_i32_0 = arith.constant 0 : i32
    %c0_i32_1 = arith.constant 0 : i32
    return %c0_i32, %c0_i32_0 : i32, i32
  }
  func.func @transform_1(%arg0: i32, %arg1: memref<8x8xi32, #tpu.memory_space<smem>>) -> (i32, i32) {
    %c0_i32 = arith.constant 0 : i32
    %c0_i32_0 = arith.constant 0 : i32
    %c0_i32_1 = arith.constant 0 : i32
    return %c0_i32, %c0_i32_0 : i32, i32
  }
  func.func @transform_2(%arg0: i32, %arg1: memref<8x8xi32, #tpu.memory_space<smem>>) -> (i32, i32) {
    %c0_i32 = arith.constant 0 : i32
    %c0_i32_0 = arith.constant 0 : i32
    %c0_i32_1 = arith.constant 0 : i32
    return %c0_i32, %c0_i32_0 : i32, i32
  }
  func.func @transform_3(%arg0: i32, %arg1: memref<8x8xi32, #tpu.memory_space<smem>>) -> (i32, i32) {
    %c0_i32 = arith.constant 0 : i32
    %c0_i32_0 = arith.constant 0 : i32
    %c0_i32_1 = arith.constant 0 : i32
    return %c0_i32, %c0_i32_0 : i32, i32
  }
  func.func @transform_4(%arg0: i32, %arg1: memref<8x8xi32, #tpu.memory_space<smem>>) -> (i32, i32) {
    %c0_i32 = arith.constant 0 : i32
    %c0_i32_0 = arith.constant 0 : i32
    %c0_i32_1 = arith.constant 0 : i32
    return %c0_i32, %c0_i32_0 : i32, i32
  }
  func.func @transform_5(%arg0: i32, %arg1: memref<8x8xi32, #tpu.memory_space<smem>>) -> (i32, i32) {
    %c0_i32 = arith.constant 0 : i32
    %c0_i32_0 = arith.constant 0 : i32
    %c0_i32_1 = arith.constant 0 : i32
    return %c0_i32, %c0_i32_0 : i32, i32
  }
  func.func @transform_6(%arg0: i32, %arg1: memref<8x8xi32, #tpu.memory_space<smem>>) -> (i32, i32) {
    %c0_i32 = arith.constant 0 : i32
    %c0_i32_0 = arith.constant 0 : i32
    %c0_i32_1 = arith.constant 0 : i32
    return %c0_i32, %c0_i32_0 : i32, i32
  }
  func.func @transform_7(%arg0: i32, %arg1: memref<8x8xi32, #tpu.memory_space<smem>>) -> (i32, i32) {
    %c0_i32 = arith.constant 0 : i32
    %c0_i32_0 = arith.constant 0 : i32
    return %arg0, %c0_i32 : i32, i32
  }
}

</mosaic_0001>

<llo_original>
// kernel: forward_batch.1
$region0: #{forward_batch.1}
  #allocation0 [shape = 'u32[]', space=smem, size = 0x4, offset = 0x4, fixed_abs, tag = 'smem constant byte address 0x4 - core index']
  #allocation1 [shape = 'u32[72,128]{1,0:T(1,128)}', space=vmem, size = 0x9000, scoped, tag = 'internal scratch']
  #allocation2 [shape = 'f32[64,384]{1,0:T(8,128)}', space=vmem, size = 0x18000, scoped, tag = 'scratch operand']
  #allocation3 [shape = 's32[1]{0}', space=sflag, size = 0x4, scoped, tag = 'scoped memory for forward_batch.1']
  #allocation4 [shape = 'u8[4096]{0}', space=smem, size = 0x1000, scoped, tag = 'prefetched SMEM operand 0']
  %s0 = inlined_call_operand.vmem [shape: s32[8,8], index: 0, kind: input, shape index: {}]
  %s1 = inlined_call_operand.hbm [shape: f32[16,32], index: 1, kind: input, shape index: {}]
  %s2 = inlined_call_operand.hbm [shape: f32[32,384], index: 2, kind: input, shape index: {}]
  %s3 = inlined_call_operand.vmem [shape: f32[1,384], index: 3, kind: input, shape index: {}]
  %s4 = inlined_call_operand.hbm [shape: f32[128,384], index: 4, kind: input, shape index: {}]
  %s5 = inlined_call_operand.vmem [shape: f32[1,384], index: 5, kind: input, shape index: {}]
  %s6 = inlined_call_operand.hbm [shape: f32[128,128], index: 6, kind: input, shape index: {}]
  %s7 = inlined_call_operand.vmem [shape: f32[1,128], index: 7, kind: input, shape index: {}]
  %s8 = inlined_call_operand.vmem [shape: f32[8,128], index: 8, kind: output, shape index: {}]
  %s9 = sld [smem:[#allocation0]]
  $region54: #{forward_batch.1} parent=0
    _
  %s11 = ssub.s32 1, %s9
  %s12 = scalar_select 0, %s11, %s9
  %s14 = sshll.u32 %s0, 4
  %s15 = int_to_ptr.vmem [resolvable:$true] %s14
  %17 = dma.vmem_to_smem %s15, 128, [#allocation4], [#allocation3]
  %19 = dma.done [#allocation3], 128
  %20 = sfence
  $region1: #{forward_batch.1} parent=0
    #allocation5 [shape = 'u8[8192]{0}', space=vmem, size = 0x2000, scoped, tag = 'input window, operand 1, single buffered']
    #allocation6 [shape = 's32[1]{0}', space=sflag, size = 0x4, scoped, tag = 'scoped memory for forward_batch.1']
    #allocation7 [shape = 'u8[49152]{0}', space=vmem, size = 0xc000, scoped, tag = 'input window, operand 2, single buffered']
    #allocation8 [shape = 's32[1]{0}', space=sflag, size = 0x4, scoped, tag = 'scoped memory for forward_batch.1']
    #allocation9 [shape = 'u8[196608]{0}', space=vmem, size = 0x30000, scoped, tag = 'input window, operand 4, single buffered']
    #allocation10 [shape = 'u8[65536]{0}', space=vmem, size = 0x10000, scoped, tag = 'input window, operand 6, single buffered']
    #allocation11 [shape = 's32[1]{0}', space=sflag, size = 0x4, scoped, tag = 'scoped memory for forward_batch.1']
    %21 = vsyncpa [#allocation6], 0
    %22 = vsyncpa [#allocation8], 0
    %23 = vsyncpa [#allocation11], 0
    // Predicated region
    $region2: #{forward_batch.1} parent=1 // pred_check
      _
    $region3: #{forward_batch.1} parent=1 // pred_check_branch
      %25 = sbr.rel (0) target = $region5
    $region4: #{forward_batch.1} parent=1 // pred_region
      %27 = vsyncadd [#allocation6], 0
      %s28 = sshll.u32 %s1, 4
      %s29 = int_to_ptr.hbm [resolvable:$true] %s28
      %s30 = sshll.u32 [#allocation5], 4
      %s31 = int_to_ptr.vmem [resolvable:$true] %s30
      %36 = dma.hbm_to_vmem [thread:$0]  %s29, 256, %s31, [#allocation6], 128, 128, 8
    $region5: #{forward_batch.1} parent=1 // pred_fallthru
      _
    // Predicated region
    $region6: #{forward_batch.1} parent=1 // pred_check
      _
    $region7: #{forward_batch.1} parent=1 // pred_check_branch
      %38 = sbr.rel (0) target = $region9
    $region8: #{forward_batch.1} parent=1 // pred_region
      %40 = vsyncadd [#allocation8], 0
      %s41 = sshll.u32 %s2, 4
      %s42 = int_to_ptr.hbm [resolvable:$true] %s41
      %s43 = sshll.u32 [#allocation7], 4
      %s44 = int_to_ptr.vmem [resolvable:$true] %s43
      %49 = dma.hbm_to_vmem [thread:$0]  %s42, 1536, %s44, [#allocation8], 384, 384, 24
    $region9: #{forward_batch.1} parent=1 // pred_fallthru
      _
    // Predicated region
    $region10: #{forward_batch.1} parent=1 // pred_check
      _
    $region11: #{forward_batch.1} parent=1 // pred_check_branch
      %51 = sbr.rel (0) target = $region13
    $region12: #{forward_batch.1} parent=1 // pred_region
      _
    $region13: #{forward_batch.1} parent=1 // pred_fallthru
      _
    // Predicated region
    $region14: #{forward_batch.1} parent=1 // pred_check
      _
    $region15: #{forward_batch.1} parent=1 // pred_check_branch
      %53 = sbr.rel (0) target = $region17
    $region16: #{forward_batch.1} parent=1 // pred_region
      %55 = vsyncadd [#allocation8], 0
      %s56 = sshll.u32 %s4, 4
      %s57 = int_to_ptr.hbm [resolvable:$true] %s56
      %s58 = sshll.u32 [#allocation9], 4
      %s59 = int_to_ptr.vmem [resolvable:$true] %s58
      %64 = dma.hbm_to_vmem [thread:$0]  %s57, 6144, %s59, [#allocation8], 384, 384, 24
    $region17: #{forward_batch.1} parent=1 // pred_fallthru
      _
    // Predicated region
    $region18: #{forward_batch.1} parent=1 // pred_check
      _
    $region19: #{forward_batch.1} parent=1 // pred_check_branch
      %66 = sbr.rel (0) target = $region21
    $region20: #{forward_batch.1} parent=1 // pred_region
      _
    $region21: #{forward_batch.1} parent=1 // pred_fallthru
      _
    // Predicated region
    $region22: #{forward_batch.1} parent=1 // pred_check
      _
    $region23: #{forward_batch.1} parent=1 // pred_check_branch
      %68 = sbr.rel (0) target = $region25
    $region24: #{forward_batch.1} parent=1 // pred_region
      %70 = vsyncadd [#allocation11], 0
      %s71 = sshll.u32 %s6, 4
      %s72 = int_to_ptr.hbm [resolvable:$true] %s71
      %s73 = sshll.u32 [#allocation10], 4
      %s74 = int_to_ptr.vmem [resolvable:$true] %s73
      %79 = dma.hbm_to_vmem [thread:$0]  %s72, 2048, %s74, [#allocation11], 128, 128, 8
    $region25: #{forward_batch.1} parent=1 // pred_fallthru
      _
    // Predicated region
    $region26: #{forward_batch.1} parent=1 // pred_check
      _
    $region27: #{forward_batch.1} parent=1 // pred_check_branch
      %81 = sbr.rel (0) target = $region29
    $region28: #{forward_batch.1} parent=1 // pred_region
      _
    $region29: #{forward_batch.1} parent=1 // pred_fallthru
      _
    // Predicated region
    $region30: #{forward_batch.1} parent=1 // pred_check
      _
    $region31: #{forward_batch.1} parent=1 // pred_check_branch
      %83 = sbr.rel (0) target = $region33
    $region32: #{forward_batch.1} parent=1 // pred_region
      %85 = dma.done [#allocation6], 256
    $region33: #{forward_batch.1} parent=1 // pred_fallthru
      _
    // Predicated region
    $region34: #{forward_batch.1} parent=1 // pred_check
      _
    $region35: #{forward_batch.1} parent=1 // pred_check_branch
      %87 = sbr.rel (0) target = $region37
    $region36: #{forward_batch.1} parent=1 // pred_region
      %89 = dma.done [#allocation8], 1536
    $region37: #{forward_batch.1} parent=1 // pred_fallthru
      _
    // Predicated region
    $region38: #{forward_batch.1} parent=1 // pred_check
      _
    $region39: #{forward_batch.1} parent=1 // pred_check_branch
      %91 = sbr.rel (0) target = $region41
    $region40: #{forward_batch.1} parent=1 // pred_region
      %93 = dma.done [#allocation8], 6144
    $region41: #{forward_batch.1} parent=1 // pred_fallthru
      _
    // Predicated region
    $region42: #{forward_batch.1} parent=1 // pred_check
      _
    $region43: #{forward_batch.1} parent=1 // pred_check_branch
      %95 = sbr.rel (0) target = $region45
    $region44: #{forward_batch.1} parent=1 // pred_region
      %97 = dma.done [#allocation11], 2048
    $region45: #{forward_batch.1} parent=1 // pred_fallthru
      _
    %v98 = vlaneseq
    %v99 = vand.u32 %v98, 127
    %s100 = smul.u32 0, 8
    %s101 = smul.u32 %s100, 128
    %s102 = sld [smem:[#allocation4 + %s101]]
    %v103 = vstv %s102
    %vm104 = vcmp.eq.s32.totalorder %v99, %v103
    %v105 = vsel %vm104, 1.0, 0.0
    %s106 = sadd.s32 %s100, 1
    %s107 = smul.u32 %s106, 128
    %s108 = sld [smem:[#allocation4 + %s107]]
    %v109 = vstv %s108
    %vm110 = vcmp.eq.s32.totalorder %v99, %v109
    %v111 = vsel %vm110, 1.0, 0.0
    %s112 = sadd.s32 %s100, 2
    %s113 = smul.u32 %s112, 128
    %s114 = sld [smem:[#allocation4 + %s113]]
    %v115 = vstv %s114
    %vm116 = vcmp.eq.s32.totalorder %v99, %v115
    %v117 = vsel %vm116, 1.0, 0.0
    %s118 = sadd.s32 %s100, 3
    %s119 = smul.u32 %s118, 128
    %s120 = sld [smem:[#allocation4 + %s119]]
    %v121 = vstv %s120
    %vm122 = vcmp.eq.s32.totalorder %v99, %v121
    %v123 = vsel %vm122, 1.0, 0.0
    %s124 = sadd.s32 %s100, 4
    %s125 = smul.u32 %s124, 128
    %s126 = sld [smem:[#allocation4 + %s125]]
    %v127 = vstv %s126
    %vm128 = vcmp.eq.s32.totalorder %v99, %v127
    %v129 = vsel %vm128, 1.0, 0.0
    %s130 = sadd.s32 %s100, 5
    %s131 = smul.u32 %s130, 128
    %s132 = sld [smem:[#allocation4 + %s131]]
    %v133 = vstv %s132
    %vm134 = vcmp.eq.s32.totalorder %v99, %v133
    %v135 = vsel %vm134, 1.0, 0.0
    %s136 = sadd.s32 %s100, 6
    %s137 = smul.u32 %s136, 128
    %s138 = sld [smem:[#allocation4 + %s137]]
    %v139 = vstv %s138
    %vm140 = vcmp.eq.s32.totalorder %v99, %v139
    %v141 = vsel %vm140, 1.0, 0.0
    %s142 = sadd.s32 %s100, 7
    %s143 = smul.u32 %s142, 128
    %s144 = sld [smem:[#allocation4 + %s143]]
    %v145 = vstv %s144
    %vm146 = vcmp.eq.s32.totalorder %v99, %v145
    %v147 = vsel %vm146, 1.0, 0.0
    %s148 = sadd.s32 %s101, 1
    %s149 = sld [smem:[#allocation4 + %s148]]
    %v150 = vstv %s149
    %vm151 = vcmp.eq.s32.totalorder %v99, %v150
    %v152 = vsel %vm151, 1.0, 0.0
    %s153 = sadd.s32 %s107, 1
    %s154 = sld [smem:[#allocation4 + %s153]]
    %v155 = vstv %s154
    %vm156 = vcmp.eq.s32.totalorder %v99, %v155
    %v157 = vsel %vm156, 1.0, 0.0
    %s158 = sadd.s32 %s113, 1
    %s159 = sld [smem:[#allocation4 + %s158]]
    %v160 = vstv %s159
    %vm161 = vcmp.eq.s32.totalorder %v99, %v160
    %v162 = vsel %vm161, 1.0, 0.0
    %s163 = sadd.s32 %s119, 1
    %s164 = sld [smem:[#allocation4 + %s163]]
    %v165 = vstv %s164
    %vm166 = vcmp.eq.s32.totalorder %v99, %v165
    %v167 = vsel %vm166, 1.0, 0.0
    %s168 = sadd.s32 %s125, 1
    %s169 = sld [smem:[#allocation4 + %s168]]
    %v170 = vstv %s169
    %vm171 = vcmp.eq.s32.totalorder %v99, %v170
    %v172 = vsel %vm171, 1.0, 0.0
    %s173 = sadd.s32 %s131, 1
    %s174 = sld [smem:[#allocation4 + %s173]]
    %v175 = vstv %s174
    %vm176 = vcmp.eq.s32.totalorder %v99, %v175
    %v177 = vsel %vm176, 1.0, 0.0
    %s178 = sadd.s32 %s137, 1
    %s179 = sld [smem:[#allocation4 + %s178]]
    %v180 = vstv %s179
    %vm181 = vcmp.eq.s32.totalorder %v99, %v180
    %v182 = vsel %vm181, 1.0, 0.0
    %s183 = sadd.s32 %s143, 1
    %s184 = sld [smem:[#allocation4 + %s183]]
    %v185 = vstv %s184
    %vm186 = vcmp.eq.s32.totalorder %v99, %v185
    %v187 = vsel %vm186, 1.0, 0.0
    %s188 = sadd.s32 %s101, 2
    %s189 = sld [smem:[#allocation4 + %s188]]
    %v190 = vstv %s189
    %vm191 = vcmp.eq.s32.totalorder %v99, %v190
    %v192 = vsel %vm191, 1.0, 0.0
    %s193 = sadd.s32 %s107, 2
    %s194 = sld [smem:[#allocation4 + %s193]]
    %v195 = vstv %s194
    %vm196 = vcmp.eq.s32.totalorder %v99, %v195
    %v197 = vsel %vm196, 1.0, 0.0
    %s198 = sadd.s32 %s113, 2
    %s199 = sld [smem:[#allocation4 + %s198]]
    %v200 = vstv %s199
    %vm201 = vcmp.eq.s32.totalorder %v99, %v200
    %v202 = vsel %vm201, 1.0, 0.0
    %s203 = sadd.s32 %s119, 2
    %s204 = sld [smem:[#allocation4 + %s203]]
    %v205 = vstv %s204
    %vm206 = vcmp.eq.s32.totalorder %v99, %v205
    %v207 = vsel %vm206, 1.0, 0.0
    %s208 = sadd.s32 %s125, 2
    %s209 = sld [smem:[#allocation4 + %s208]]
    %v210 = vstv %s209
    %vm211 = vcmp.eq.s32.totalorder %v99, %v210
    %v212 = vsel %vm211, 1.0, 0.0
    %s213 = sadd.s32 %s131, 2
    %s214 = sld [smem:[#allocation4 + %s213]]
    %v215 = vstv %s214
    %vm216 = vcmp.eq.s32.totalorder %v99, %v215
    %v217 = vsel %vm216, 1.0, 0.0
    %s218 = sadd.s32 %s137, 2
    %s219 = sld [smem:[#allocation4 + %s218]]
    %v220 = vstv %s219
    %vm221 = vcmp.eq.s32.totalorder %v99, %v220
    %v222 = vsel %vm221, 1.0, 0.0
    %s223 = sadd.s32 %s143, 2
    %s224 = sld [smem:[#allocation4 + %s223]]
    %v225 = vstv %s224
    %vm226 = vcmp.eq.s32.totalorder %v99, %v225
    %v227 = vsel %vm226, 1.0, 0.0
    %s228 = sadd.s32 %s101, 3
    %s229 = sld [smem:[#allocation4 + %s228]]
    %v230 = vstv %s229
    %vm231 = vcmp.eq.s32.totalorder %v99, %v230
    %v232 = vsel %vm231, 1.0, 0.0
    %s233 = sadd.s32 %s107, 3
    %s234 = sld [smem:[#allocation4 + %s233]]
    %v235 = vstv %s234
    %vm236 = vcmp.eq.s32.totalorder %v99, %v235
    %v237 = vsel %vm236, 1.0, 0.0
    %s238 = sadd.s32 %s113, 3
    %s239 = sld [smem:[#allocation4 + %s238]]
    %v240 = vstv %s239
    %vm241 = vcmp.eq.s32.totalorder %v99, %v240
    %v242 = vsel %vm241, 1.0, 0.0
    %s243 = sadd.s32 %s119, 3
    %s244 = sld [smem:[#allocation4 + %s243]]
    %v245 = vstv %s244
    %vm246 = vcmp.eq.s32.totalorder %v99, %v245
    %v247 = vsel %vm246, 1.0, 0.0
    %s248 = sadd.s32 %s125, 3
    %s249 = sld [smem:[#allocation4 + %s248]]
    %v250 = vstv %s249
    %vm251 = vcmp.eq.s32.totalorder %v99, %v250
    %v252 = vsel %vm251, 1.0, 0.0
    %s253 = sadd.s32 %s131, 3
    %s254 = sld [smem:[#allocation4 + %s253]]
    %v255 = vstv %s254
    %vm256 = vcmp.eq.s32.totalorder %v99, %v255
    %v257 = vsel %vm256, 1.0, 0.0
    %s258 = sadd.s32 %s137, 3
    %s259 = sld [smem:[#allocation4 + %s258]]
    %v260 = vstv %s259
    %vm261 = vcmp.eq.s32.totalorder %v99, %v260
    %v262 = vsel %vm261, 1.0, 0.0
    %s263 = sadd.s32 %s143, 3
    %s264 = sld [smem:[#allocation4 + %s263]]
    %v265 = vstv %s264
    %vm266 = vcmp.eq.s32.totalorder %v99, %v265
    %v267 = vsel %vm266, 1.0, 0.0
    %s268 = sadd.s32 %s101, 4
    %s269 = sld [smem:[#allocation4 + %s268]]
    %v270 = vstv %s269
    %vm271 = vcmp.eq.s32.totalorder %v99, %v270
    %v272 = vsel %vm271, 1.0, 0.0
    %s273 = sadd.s32 %s107, 4
    %s274 = sld [smem:[#allocation4 + %s273]]
    %v275 = vstv %s274
    %vm276 = vcmp.eq.s32.totalorder %v99, %v275
    %v277 = vsel %vm276, 1.0, 0.0
    %s278 = sadd.s32 %s113, 4
    %s279 = sld [smem:[#allocation4 + %s278]]
    %v280 = vstv %s279
    %vm281 = vcmp.eq.s32.totalorder %v99, %v280
    %v282 = vsel %vm281, 1.0, 0.0
    %s283 = sadd.s32 %s119, 4
    %s284 = sld [smem:[#allocation4 + %s283]]
    %v285 = vstv %s284
    %vm286 = vcmp.eq.s32.totalorder %v99, %v285
    %v287 = vsel %vm286, 1.0, 0.0
    %s288 = sadd.s32 %s125, 4
    %s289 = sld [smem:[#allocation4 + %s288]]
    %v290 = vstv %s289
    %vm291 = vcmp.eq.s32.totalorder %v99, %v290
    %v292 = vsel %vm291, 1.0, 0.0
    %s293 = sadd.s32 %s131, 4
    %s294 = sld [smem:[#allocation4 + %s293]]
    %v295 = vstv %s294
    %vm296 = vcmp.eq.s32.totalorder %v99, %v295
    %v297 = vsel %vm296, 1.0, 0.0
    %s298 = sadd.s32 %s137, 4
    %s299 = sld [smem:[#allocation4 + %s298]]
    %v300 = vstv %s299
    %vm301 = vcmp.eq.s32.totalorder %v99, %v300
    %v302 = vsel %vm301, 1.0, 0.0
    %s303 = sadd.s32 %s143, 4
    %s304 = sld [smem:[#allocation4 + %s303]]
    %v305 = vstv %s304
    %vm306 = vcmp.eq.s32.totalorder %v99, %v305
    %v307 = vsel %vm306, 1.0, 0.0
    %s308 = sadd.s32 %s101, 5
    %s309 = sld [smem:[#allocation4 + %s308]]
    %v310 = vstv %s309
    %vm311 = vcmp.eq.s32.totalorder %v99, %v310
    %v312 = vsel %vm311, 1.0, 0.0
    %s313 = sadd.s32 %s107, 5
    %s314 = sld [smem:[#allocation4 + %s313]]
    %v315 = vstv %s314
    %vm316 = vcmp.eq.s32.totalorder %v99, %v315
    %v317 = vsel %vm316, 1.0, 0.0
    %s318 = sadd.s32 %s113, 5
    %s319 = sld [smem:[#allocation4 + %s318]]
    %v320 = vstv %s319
    %vm321 = vcmp.eq.s32.totalorder %v99, %v320
    %v322 = vsel %vm321, 1.0, 0.0
    %s323 = sadd.s32 %s119, 5
    %s324 = sld [smem:[#allocation4 + %s323]]
    %v325 = vstv %s324
    %vm326 = vcmp.eq.s32.totalorder %v99, %v325
    %v327 = vsel %vm326, 1.0, 0.0
    %s328 = sadd.s32 %s125, 5
    %s329 = sld [smem:[#allocation4 + %s328]]
    %v330 = vstv %s329
    %vm331 = vcmp.eq.s32.totalorder %v99, %v330
    %v332 = vsel %vm331, 1.0, 0.0
    %s333 = sadd.s32 %s131, 5
    %s334 = sld [smem:[#allocation4 + %s333]]
    %v335 = vstv %s334
    %vm336 = vcmp.eq.s32.totalorder %v99, %v335
    %v337 = vsel %vm336, 1.0, 0.0
    %s338 = sadd.s32 %s137, 5
    %s339 = sld [smem:[#allocation4 + %s338]]
    %v340 = vstv %s339
    %vm341 = vcmp.eq.s32.totalorder %v99, %v340
    %v342 = vsel %vm341, 1.0, 0.0
    %s343 = sadd.s32 %s143, 5
    %s344 = sld [smem:[#allocation4 + %s343]]
    %v345 = vstv %s344
    %vm346 = vcmp.eq.s32.totalorder %v99, %v345
    %v347 = vsel %vm346, 1.0, 0.0
    %s348 = sadd.s32 %s101, 6
    %s349 = sld [smem:[#allocation4 + %s348]]
    %v350 = vstv %s349
    %vm351 = vcmp.eq.s32.totalorder %v99, %v350
    %v352 = vsel %vm351, 1.0, 0.0
    %s353 = sadd.s32 %s107, 6
    %s354 = sld [smem:[#allocation4 + %s353]]
    %v355 = vstv %s354
    %vm356 = vcmp.eq.s32.totalorder %v99, %v355
    %v357 = vsel %vm356, 1.0, 0.0
    %s358 = sadd.s32 %s113, 6
    %s359 = sld [smem:[#allocation4 + %s358]]
    %v360 = vstv %s359
    %vm361 = vcmp.eq.s32.totalorder %v99, %v360
    %v362 = vsel %vm361, 1.0, 0.0
    %s363 = sadd.s32 %s119, 6
    %s364 = sld [smem:[#allocation4 + %s363]]
    %v365 = vstv %s364
    %vm366 = vcmp.eq.s32.totalorder %v99, %v365
    %v367 = vsel %vm366, 1.0, 0.0
    %s368 = sadd.s32 %s125, 6
    %s369 = sld [smem:[#allocation4 + %s368]]
    %v370 = vstv %s369
    %vm371 = vcmp.eq.s32.totalorder %v99, %v370
    %v372 = vsel %vm371, 1.0, 0.0
    %s373 = sadd.s32 %s131, 6
    %s374 = sld [smem:[#allocation4 + %s373]]
    %v375 = vstv %s374
    %vm376 = vcmp.eq.s32.totalorder %v99, %v375
    %v377 = vsel %vm376, 1.0, 0.0
    %s378 = sadd.s32 %s137, 6
    %s379 = sld [smem:[#allocation4 + %s378]]
    %v380 = vstv %s379
    %vm381 = vcmp.eq.s32.totalorder %v99, %v380
    %v382 = vsel %vm381, 1.0, 0.0
    %s383 = sadd.s32 %s143, 6
    %s384 = sld [smem:[#allocation4 + %s383]]
    %v385 = vstv %s384
    %vm386 = vcmp.eq.s32.totalorder %v99, %v385
    %v387 = vsel %vm386, 1.0, 0.0
    %s388 = sadd.s32 %s101, 7
    %s389 = sld [smem:[#allocation4 + %s388]]
    %v390 = vstv %s389
    %vm391 = vcmp.eq.s32.totalorder %v99, %v390
    %v392 = vsel %vm391, 1.0, 0.0
    %s393 = sadd.s32 %s107, 7
    %s394 = sld [smem:[#allocation4 + %s393]]
    %v395 = vstv %s394
    %vm396 = vcmp.eq.s32.totalorder %v99, %v395
    %v397 = vsel %vm396, 1.0, 0.0
    %s398 = sadd.s32 %s113, 7
    %s399 = sld [smem:[#allocation4 + %s398]]
    %v400 = vstv %s399
    %vm401 = vcmp.eq.s32.totalorder %v99, %v400
    %v402 = vsel %vm401, 1.0, 0.0
    %s403 = sadd.s32 %s119, 7
    %s404 = sld [smem:[#allocation4 + %s403]]
    %v405 = vstv %s404
    %vm406 = vcmp.eq.s32.totalorder %v99, %v405
    %v407 = vsel %vm406, 1.0, 0.0
    %s408 = sadd.s32 %s125, 7
    %s409 = sld [smem:[#allocation4 + %s408]]
    %v410 = vstv %s409
    %vm411 = vcmp.eq.s32.totalorder %v99, %v410
    %v412 = vsel %vm411, 1.0, 0.0
    %s413 = sadd.s32 %s131, 7
    %s414 = sld [smem:[#allocation4 + %s413]]
    %v415 = vstv %s414
    %vm416 = vcmp.eq.s32.totalorder %v99, %v415
    %v417 = vsel %vm416, 1.0, 0.0
    %s418 = sadd.s32 %s137, 7
    %s419 = sld [smem:[#allocation4 + %s418]]
    %v420 = vstv %s419
    %vm421 = vcmp.eq.s32.totalorder %v99, %v420
    %v422 = vsel %vm421, 1.0, 0.0
    %s423 = sadd.s32 %s143, 7
    %s424 = sld [smem:[#allocation4 + %s423]]
    %v425 = vstv %s424
    %vm426 = vcmp.eq.s32.totalorder %v99, %v425
    %v427 = vsel %vm426, 1.0, 0.0
    %vm428 = vcmask 1040384
    %v429 = vsel %vm428, %v105, %v111
    %vm430 = vcmask 1041408
    %v431 = vsel %vm430, %v429, %v117
    %vm432 = vcmask 1042432
    %v433 = vsel %vm432, %v431, %v123
    %vm434 = vcmask 1043456
    %v435 = vsel %vm434, %v433, %v129
    %vm436 = vcmask 1044480
    %v437 = vsel %vm436, %v435, %v135
    %vm438 = vcmask 1045504
    %v439 = vsel %vm438, %v437, %v141
    %vm440 = vcmask 1046528
    %v441 = vsel %vm440, %v439, %v147
    %v442 = vsel %vm428, %v152, %v157
    %v443 = vsel %vm430, %v442, %v162
    %v444 = vsel %vm432, %v443, %v167
    %v445 = vsel %vm434, %v444, %v172
    %v446 = vsel %vm436, %v445, %v177
    %v447 = vsel %vm438, %v446, %v182
    %v448 = vsel %vm440, %v447, %v187
    %v449 = vsel %vm428, %v192, %v197
    %v450 = vsel %vm430, %v449, %v202
    %v451 = vsel %vm432, %v450, %v207
    %v452 = vsel %vm434, %v451, %v212
    %v453 = vsel %vm436, %v452, %v217
    %v454 = vsel %vm438, %v453, %v222
    %v455 = vsel %vm440, %v454, %v227
    %v456 = vsel %vm428, %v232, %v237
    %v457 = vsel %vm430, %v456, %v242
    %v458 = vsel %vm432, %v457, %v247
    %v459 = vsel %vm434, %v458, %v252
    %v460 = vsel %vm436, %v459, %v257
    %v461 = vsel %vm438, %v460, %v262
    %v462 = vsel %vm440, %v461, %v267
    %v463 = vsel %vm428, %v272, %v277
    %v464 = vsel %vm430, %v463, %v282
    %v465 = vsel %vm432, %v464, %v287
    %v466 = vsel %vm434, %v465, %v292
    %v467 = vsel %vm436, %v466, %v297
    %v468 = vsel %vm438, %v467, %v302
    %v469 = vsel %vm440, %v468, %v307
    %v470 = vsel %vm428, %v312, %v317
    %v471 = vsel %vm430, %v470, %v322
    %v472 = vsel %vm432, %v471, %v327
    %v473 = vsel %vm434, %v472, %v332
    %v474 = vsel %vm436, %v473, %v337
    %v475 = vsel %vm438, %v474, %v342
    %v476 = vsel %vm440, %v475, %v347
    %v477 = vsel %vm428, %v352, %v357
    %v478 = vsel %vm430, %v477, %v362
    %v479 = vsel %vm432, %v478, %v367
    %v480 = vsel %vm434, %v479, %v372
    %v481 = vsel %vm436, %v480, %v377
    %v482 = vsel %vm438, %v481, %v382
    %v483 = vsel %vm440, %v482, %v387
    %v484 = vsel %vm428, %v392, %v397
    %v485 = vsel %vm430, %v484, %v402
    %v486 = vsel %vm432, %v485, %v407
    %v487 = vsel %vm434, %v486, %v412
    %v488 = vsel %vm436, %v487, %v417
    %v489 = vsel %vm438, %v488, %v422
    %v490 = vsel %vm440, %v489, %v427
    %v491 = vld [vmem:[#allocation5] sm:$0xff]
    %v492 = vld [vmem:[#allocation5 + $0x8] sm:$0xff]
    %vm493 = vcmask 130048
    %v495 = vsel %vm493, %v441, 0
    %v498 = vsel %vm493, %v448, 0
    %v501 = vsel %vm493, %v455, 0
    %v504 = vsel %vm493, %v462, 0
    %v507 = vsel %vm493, %v469, 0
    %v510 = vsel %vm493, %v476, 0
    %v513 = vsel %vm493, %v483, 0
    %v516 = vsel %vm493, %v490, 0
    %518 = vmatpush.msra.mxu0 0.0
    %519 = vmatpush.msra.mxu0 0.0
    %520 = vmatpush.msra.mxu0 0.0
    %521 = vmatpush.msra.mxu0 0.0
    %522 = vmatpush.msra.mxu0 0.0
    %523 = vmatpush.msra.mxu0 0.0
    %524 = vmatpush.msra.mxu0 0.0
    %525 = vmatpush.msra.mxu0 0.0
    %526 = vmatpush.msra.mxu0 0.0
    %527 = vmatpush.msra.mxu0 0.0
    %528 = vmatpush.msra.mxu0 0.0
    %529 = vmatpush.msra.mxu0 0.0
    %530 = vmatpush.msra.mxu0 0.0
    %531 = vmatpush.msra.mxu0 0.0
    %532 = vmatpush.msra.mxu0 %v492
    %533 = vmatpush.msra.mxu0 %v491
    %534 = vmatmul.f32.gmra.mxu0 %v495
    %v535 = vpop.f32.mrf.mxu0
    %v536 = vadd.f32 0.0, %v535
    %537 = vmatmul.f32.gmra.mxu0 %v498
    %v538 = vpop.f32.mrf.mxu0
    %v539 = vadd.f32 0.0, %v538
    %540 = vmatmul.f32.gmra.mxu0 %v501
    %v541 = vpop.f32.mrf.mxu0
    %v542 = vadd.f32 0.0, %v541
    %543 = vmatmul.f32.gmra.mxu0 %v504
    %v544 = vpop.f32.mrf.mxu0
    %v545 = vadd.f32 0.0, %v544
    %546 = vmatmul.f32.gmra.mxu0 %v507
    %v547 = vpop.f32.mrf.mxu0
    %v548 = vadd.f32 0.0, %v547
    %549 = vmatmul.f32.gmra.mxu0 %v510
    %v550 = vpop.f32.mrf.mxu0
    %v551 = vadd.f32 0.0, %v550
    %552 = vmatmul.f32.gmra.mxu0 %v513
    %v553 = vpop.f32.mrf.mxu0
    %v554 = vadd.f32 0.0, %v553
    %555 = vmatmul.f32.gmra.mxu0 %v516
    %v556 = vpop.f32.mrf.mxu0
    %v557 = vadd.f32 0.0, %v556
    %558 = vdwg.mxu0
    %v559 = vld [vmem:[#allocation7] sm:$0xff]
    %v560 = vld [vmem:[#allocation7 + $0x8] sm:$0xff]
    %v561 = vld [vmem:[#allocation7 + $0x10] sm:$0xff]
    %v562 = vld [vmem:[#allocation7 + $0x18] sm:$0xff]
    %v563 = vld [vmem:[#allocation7 + $0x20] sm:$0xff]
    %v564 = vld [vmem:[#allocation7 + $0x28] sm:$0xff]
    %v565 = vld [vmem:[#allocation7 + $0x30] sm:$0xff]
    %v566 = vld [vmem:[#allocation7 + $0x38] sm:$0xff]
    %v567 = vld [vmem:[#allocation7 + $0x40] sm:$0xff]
    %v568 = vld [vmem:[#allocation7 + $0x48] sm:$0xff]
    %v569 = vld [vmem:[#allocation7 + $0x50] sm:$0xff]
    %v570 = vld [vmem:[#allocation7 + $0x58] sm:$0xff]
    %v571 = vld [vmem:[%s3] sm:$0x7]
    %v573 = vperm.slane %v571, 0
    %v574 = vperm.slane %v571, 1
    %v575 = vperm.slane %v571, 2
    %vm579 = vcmask 261120
    %v581 = vsel %vm579, %v536, 0
    %v584 = vsel %vm579, %v539, 0
    %v587 = vsel %vm579, %v542, 0
    %v590 = vsel %vm579, %v545, 0
    %v593 = vsel %vm579, %v548, 0
    %v596 = vsel %vm579, %v551, 0
    %v599 = vsel %vm579, %v554, 0
    %v602 = vsel %vm579, %v557, 0
    %604 = vmatpush.msra.mxu0 0.0
    %605 = vmatpush.msra.mxu0 0.0
    %606 = vmatpush.msra.mxu0 0.0
    %607 = vmatpush.msra.mxu0 0.0
    %608 = vmatpush.msra.mxu0 0.0
    %609 = vmatpush.msra.mxu0 0.0
    %610 = vmatpush.msra.mxu0 0.0
    %611 = vmatpush.msra.mxu0 0.0
    %612 = vmatpush.msra.mxu0 0.0
    %613 = vmatpush.msra.mxu0 0.0
    %614 = vmatpush.msra.mxu0 0.0
    %615 = vmatpush.msra.mxu0 0.0
    %616 = vmatpush.msra.mxu0 %v568
    %617 = vmatpush.msra.mxu0 %v565
    %618 = vmatpush.msra.mxu0 %v562
    %619 = vmatpush.msra.mxu0 %v559
    %620 = vmatmul.f32.gmra.mxu0 %v581
    %v621 = vpop.f32.mrf.mxu0
    %v622 = vadd.f32 %v573, %v621
    %623 = vmatmul.f32.gmra.mxu0 %v584
    %v624 = vpop.f32.mrf.mxu0
    %v625 = vadd.f32 %v573, %v624
    %626 = vmatmul.f32.gmra.mxu0 %v587
    %v627 = vpop.f32.mrf.mxu0
    %v628 = vadd.f32 %v573, %v627
    %629 = vmatmul.f32.gmra.mxu0 %v590
    %v630 = vpop.f32.mrf.mxu0
    %v631 = vadd.f32 %v573, %v630
    %632 = vmatmul.f32.gmra.mxu0 %v593
    %v633 = vpop.f32.mrf.mxu0
    %v634 = vadd.f32 %v573, %v633
    %635 = vmatmul.f32.gmra.mxu0 %v596
    %v636 = vpop.f32.mrf.mxu0
    %v637 = vadd.f32 %v573, %v636
    %638 = vmatmul.f32.gmra.mxu0 %v599
    %v639 = vpop.f32.mrf.mxu0
    %v640 = vadd.f32 %v573, %v639
    %641 = vmatmul.f32.gmra.mxu0 %v602
    %v642 = vpop.f32.mrf.mxu0
    %v643 = vadd.f32 %v573, %v642
    %644 = vdwg.mxu0
    %645 = vmatpush.msra.mxu0 0.0
    %646 = vmatpush.msra.mxu0 0.0
    %647 = vmatpush.msra.mxu0 0.0
    %648 = vmatpush.msra.mxu0 0.0
    %649 = vmatpush.msra.mxu0 0.0
    %650 = vmatpush.msra.mxu0 0.0
    %651 = vmatpush.msra.mxu0 0.0
    %652 = vmatpush.msra.mxu0 0.0
    %653 = vmatpush.msra.mxu0 0.0
    %654 = vmatpush.msra.mxu0 0.0
    %655 = vmatpush.msra.mxu0 0.0
    %656 = vmatpush.msra.mxu0 0.0
    %657 = vmatpush.msra.mxu0 %v569
    %658 = vmatpush.msra.mxu0 %v566
    %659 = vmatpush.msra.mxu0 %v563
    %660 = vmatpush.msra.mxu0 %v560
    %661 = vmatmul.f32.gmra.mxu0 %v581
    %v662 = vpop.f32.mrf.mxu0
    %v663 = vadd.f32 %v574, %v662
    %664 = vmatmul.f32.gmra.mxu0 %v584
    %v665 = vpop.f32.mrf.mxu0
    %v666 = vadd.f32 %v574, %v665
    %667 = vmatmul.f32.gmra.mxu0 %v587
    %v668 = vpop.f32.mrf.mxu0
    %v669 = vadd.f32 %v574, %v668
    %670 = vmatmul.f32.gmra.mxu0 %v590
    %v671 = vpop.f32.mrf.mxu0
    %v672 = vadd.f32 %v574, %v671
    %673 = vmatmul.f32.gmra.mxu0 %v593
    %v674 = vpop.f32.mrf.mxu0
    %v675 = vadd.f32 %v574, %v674
    %676 = vmatmul.f32.gmra.mxu0 %v596
    %v677 = vpop.f32.mrf.mxu0
    %v678 = vadd.f32 %v574, %v677
    %679 = vmatmul.f32.gmra.mxu0 %v599
    %v680 = vpop.f32.mrf.mxu0
    %v681 = vadd.f32 %v574, %v680
    %682 = vmatmul.f32.gmra.mxu0 %v602
    %v683 = vpop.f32.mrf.mxu0
    %v684 = vadd.f32 %v574, %v683
    %685 = vdwg.mxu0
    %686 = vmatpush.msra.mxu0 0.0
    %687 = vmatpush.msra.mxu0 0.0
    %688 = vmatpush.msra.mxu0 0.0
    %689 = vmatpush.msra.mxu0 0.0
    %690 = vmatpush.msra.mxu0 0.0
    %691 = vmatpush.msra.mxu0 0.0
    %692 = vmatpush.msra.mxu0 0.0
    %693 = vmatpush.msra.mxu0 0.0
    %694 = vmatpush.msra.mxu0 0.0
    %695 = vmatpush.msra.mxu0 0.0
    %696 = vmatpush.msra.mxu0 0.0
    %697 = vmatpush.msra.mxu0 0.0
    %698 = vmatpush.msra.mxu0 %v570
    %699 = vmatpush.msra.mxu0 %v567
    %700 = vmatpush.msra.mxu0 %v564
    %701 = vmatpush.msra.mxu0 %v561
    %702 = vmatmul.f32.gmra.mxu0 %v581
    %v703 = vpop.f32.mrf.mxu0
    %v704 = vadd.f32 %v575, %v703
    %705 = vmatmul.f32.gmra.mxu0 %v584
    %v706 = vpop.f32.mrf.mxu0
    %v707 = vadd.f32 %v575, %v706
    %708 = vmatmul.f32.gmra.mxu0 %v587
    %v709 = vpop.f32.mrf.mxu0
    %v710 = vadd.f32 %v575, %v709
    %711 = vmatmul.f32.gmra.mxu0 %v590
    %v712 = vpop.f32.mrf.mxu0
    %v713 = vadd.f32 %v575, %v712
    %714 = vmatmul.f32.gmra.mxu0 %v593
    %v715 = vpop.f32.mrf.mxu0
    %v716 = vadd.f32 %v575, %v715
    %717 = vmatmul.f32.gmra.mxu0 %v596
    %v718 = vpop.f32.mrf.mxu0
    %v719 = vadd.f32 %v575, %v718
    %720 = vmatmul.f32.gmra.mxu0 %v599
    %v721 = vpop.f32.mrf.mxu0
    %v722 = vadd.f32 %v575, %v721
    %723 = vmatmul.f32.gmra.mxu0 %v602
    %v724 = vpop.f32.mrf.mxu0
    %v725 = vadd.f32 %v575, %v724
    %726 = vdwg.mxu0
    %727 = vst [vmem:[#allocation2] sm:$0xff] %v622
    %728 = vst [vmem:[#allocation2 + $0x8] sm:$0xff] %v663
    %729 = vst [vmem:[#allocation2 + $0x10] sm:$0xff] %v704
    %730 = vst [vmem:[#allocation2 + $0x18] sm:$0xff] %v625
    %731 = vst [vmem:[#allocation2 + $0x20] sm:$0xff] %v666
    %732 = vst [vmem:[#allocation2 + $0x28] sm:$0xff] %v707
    %733 = vst [vmem:[#allocation2 + $0x30] sm:$0xff] %v628
    %734 = vst [vmem:[#allocation2 + $0x38] sm:$0xff] %v669
    %735 = vst [vmem:[#allocation2 + $0x40] sm:$0xff] %v710
    %736 = vst [vmem:[#allocation2 + $0x48] sm:$0xff] %v631
    %737 = vst [vmem:[#allocation2 + $0x50] sm:$0xff] %v672
    %738 = vst [vmem:[#allocation2 + $0x58] sm:$0xff] %v713
    %739 = vst [vmem:[#allocation2 + $0x60] sm:$0xff] %v634
    %740 = vst [vmem:[#allocation2 + $0x68] sm:$0xff] %v675
    %741 = vst [vmem:[#allocation2 + $0x70] sm:$0xff] %v716
    %742 = vst [vmem:[#allocation2 + $0x78] sm:$0xff] %v637
    %743 = vst [vmem:[#allocation2 + $0x80] sm:$0xff] %v678
    %744 = vst [vmem:[#allocation2 + $0x88] sm:$0xff] %v719
    %745 = vst [vmem:[#allocation2 + $0x90] sm:$0xff] %v640
    %746 = vst [vmem:[#allocation2 + $0x98] sm:$0xff] %v681
    %747 = vst [vmem:[#allocation2 + $0xa0] sm:$0xff] %v722
    %748 = vst [vmem:[#allocation2 + $0xa8] sm:$0xff] %v643
    %749 = vst [vmem:[#allocation2 + $0xb0] sm:$0xff] %v684
    %750 = vst [vmem:[#allocation2 + $0xb8] sm:$0xff] %v725
    %v751 = vld [vmem:[#allocation2] sm:$0xff]
    %v752 = vld [vmem:[#allocation2 + $0x8] sm:$0xff]
    %v753 = vld [vmem:[#allocation2 + $0x10] sm:$0xff]
    %v754 = vld [vmem:[#allocation9] sm:$0xff]
    %v755 = vld [vmem:[#allocation9 + $0x8] sm:$0xff]
    %v756 = vld [vmem:[#allocation9 + $0x10] sm:$0xff]
    %v757 = vld [vmem:[#allocation9 + $0x18] sm:$0xff]
    %v758 = vld [vmem:[#allocation9 + $0x20] sm:$0xff]
    %v759 = vld [vmem:[#allocation9 + $0x28] sm:$0xff]
    %v760 = vld [vmem:[#allocation9 + $0x30] sm:$0xff]
    %v761 = vld [vmem:[#allocation9 + $0x38] sm:$0xff]
    %v762 = vld [vmem:[#allocation9 + $0x40] sm:$0xff]
    %v763 = vld [vmem:[#allocation9 + $0x48] sm:$0xff]
    %v764 = vld [vmem:[#allocation9 + $0x50] sm:$0xff]
    %v765 = vld [vmem:[#allocation9 + $0x58] sm:$0xff]
    %v766 = vld [vmem:[#allocation9 + $0x60] sm:$0xff]
    %v767 = vld [vmem:[#allocation9 + $0x68] sm:$0xff]
    %v768 = vld [vmem:[#allocation9 + $0x70] sm:$0xff]
    %v769 = vld [vmem:[#allocation9 + $0x78] sm:$0xff]
    %v770 = vld [vmem:[#allocation9 + $0x80] sm:$0xff]
    %v771 = vld [vmem:[#allocation9 + $0x88] sm:$0xff]
    %v772 = vld [vmem:[#allocation9 + $0x90] sm:$0xff]
    %v773 = vld [vmem:[#allocation9 + $0x98] sm:$0xff]
    %v774 = vld [vmem:[#allocation9 + $0xa0] sm:$0xff]
    %v775 = vld [vmem:[#allocation9 + $0xa8] sm:$0xff]
    %v776 = vld [vmem:[#allocation9 + $0xb0] sm:$0xff]
    %v777 = vld [vmem:[#allocation9 + $0xb8] sm:$0xff]
    %v778 = vld [vmem:[#allocation9 + $0xc0] sm:$0xff]
    %v779 = vld [vmem:[#allocation9 + $0xc8] sm:$0xff]
    %v780 = vld [vmem:[#allocation9 + $0xd0] sm:$0xff]
    %v781 = vld [vmem:[#allocation9 + $0xd8] sm:$0xff]
    %v782 = vld [vmem:[#allocation9 + $0xe0] sm:$0xff]
    %v783 = vld [vmem:[#allocation9 + $0xe8] sm:$0xff]
    %v784 = vld [vmem:[#allocation9 + $0xf0] sm:$0xff]
    %v785 = vld [vmem:[#allocation9 + $0xf8] sm:$0xff]
    %v786 = vld [vmem:[#allocation9 + $0x100] sm:$0xff]
    %v787 = vld [vmem:[#allocation9 + $0x108] sm:$0xff]
    %v788 = vld [vmem:[#allocation9 + $0x110] sm:$0xff]
    %v789 = vld [vmem:[#allocation9 + $0x118] sm:$0xff]
    %v790 = vld [vmem:[#allocation9 + $0x120] sm:$0xff]
    %v791 = vld [vmem:[#allocation9 + $0x128] sm:$0xff]
    %v792 = vld [vmem:[#allocation9 + $0x130] sm:$0xff]
    %v793 = vld [vmem:[#allocation9 + $0x138] sm:$0xff]
    %v794 = vld [vmem:[#allocation9 + $0x140] sm:$0xff]
    %v795 = vld [vmem:[#allocation9 + $0x148] sm:$0xff]
    %v796 = vld [vmem:[#allocation9 + $0x150] sm:$0xff]
    %v797 = vld [vmem:[#allocation9 + $0x158] sm:$0xff]
    %v798 = vld [vmem:[#allocation9 + $0x160] sm:$0xff]
    %v799 = vld [vmem:[#allocation9 + $0x168] sm:$0xff]
    %v800 = vld [vmem:[#allocation9 + $0x170] sm:$0xff]
    %v801 = vld [vmem:[#allocation9 + $0x178] sm:$0xff]
    %v802 = vld [vmem:[%s5] sm:$0x7]
    %v804 = vperm.slane %v802, 0
    %v805 = vperm.slane %v802, 1
    %v806 = vperm.slane %v802, 2
    %810 = vmatpush.msra.mxu0 %v799
    %811 = vmatpush.msra.mxu0 %v796
    %812 = vmatpush.msra.mxu0 %v793
    %813 = vmatpush.msra.mxu0 %v790
    %814 = vmatpush.msra.mxu0 %v787
    %815 = vmatpush.msra.mxu0 %v784
    %816 = vmatpush.msra.mxu0 %v781
    %817 = vmatpush.msra.mxu0 %v778
    %818 = vmatpush.msra.mxu0 %v775
    %819 = vmatpush.msra.mxu0 %v772
    %820 = vmatpush.msra.mxu0 %v769
    %821 = vmatpush.msra.mxu0 %v766
    %822 = vmatpush.msra.mxu0 %v763
    %823 = vmatpush.msra.mxu0 %v760
    %824 = vmatpush.msra.mxu0 %v757
    %825 = vmatpush.msra.mxu0 %v754
    %826 = vmatmul.f32.gmra.mxu0 0.0
    %v827 = vpop.f32.mrf.mxu0
    %v828 = vadd.f32 %v804, %v827
    %829 = vdwg.mxu0
    %830 = vmatpush.msra.mxu0 %v800
    %831 = vmatpush.msra.mxu0 %v797
    %832 = vmatpush.msra.mxu0 %v794
    %833 = vmatpush.msra.mxu0 %v791
    %834 = vmatpush.msra.mxu0 %v788
    %835 = vmatpush.msra.mxu0 %v785
    %836 = vmatpush.msra.mxu0 %v782
    %837 = vmatpush.msra.mxu0 %v779
    %838 = vmatpush.msra.mxu0 %v776
    %839 = vmatpush.msra.mxu0 %v773
    %840 = vmatpush.msra.mxu0 %v770
    %841 = vmatpush.msra.mxu0 %v767
    %842 = vmatpush.msra.mxu0 %v764
    %843 = vmatpush.msra.mxu0 %v761
    %844 = vmatpush.msra.mxu0 %v758
    %845 = vmatpush.msra.mxu0 %v755
    %846 = vmatmul.f32.gmra.mxu0 0.0
    %v847 = vpop.f32.mrf.mxu0
    %v848 = vadd.f32 %v805, %v847
    %849 = vdwg.mxu0
    %850 = vmatpush.msra.mxu0 %v801
    %851 = vmatpush.msra.mxu0 %v798
    %852 = vmatpush.msra.mxu0 %v795
    %853 = vmatpush.msra.mxu0 %v792
    %854 = vmatpush.msra.mxu0 %v789
    %855 = vmatpush.msra.mxu0 %v786
    %856 = vmatpush.msra.mxu0 %v783
    %857 = vmatpush.msra.mxu0 %v780
    %858 = vmatpush.msra.mxu0 %v777
    %859 = vmatpush.msra.mxu0 %v774
    %860 = vmatpush.msra.mxu0 %v771
    %861 = vmatpush.msra.mxu0 %v768
    %862 = vmatpush.msra.mxu0 %v765
    %863 = vmatpush.msra.mxu0 %v762
    %864 = vmatpush.msra.mxu0 %v759
    %865 = vmatpush.msra.mxu0 %v756
    %866 = vmatmul.f32.gmra.mxu0 0.0
    %v867 = vpop.f32.mrf.mxu0
    %v868 = vadd.f32 %v806, %v867
    %869 = vdwg.mxu0
    %v870 = vadd.f32 %v751, %v828
    %v871 = vxor.u32 %v870, 2147483648
    %v872 = vmul.f32 %v871, 1.442695
    %v873 = vpow.pop %v872
    %v874 = vadd.f32 %v873, 1.0
    %v875 = vrcp.pop %v874
    %v876 = vmul.f32 %v874, %v875
    %v877 = vsub.f32 1.0, %v876
    %v878 = vmul.f32 %v875, %v877
    %v879 = vadd.f32 %v875, %v878
    %vm880 = vweird.f32 %v874
    %vm881 = vweird.f32 %v875
    %vm882 = vmor %vm880, %vm881
    %v883 = vsel %vm882, %v875, %v879
    %v884 = vand.u32 2147483647, %v874
    %vm885 = vcmp.eq.f32.partialorder %v884, 8.507059e+37
    %v886 = vand.u32 %v874, 2147483648
    %v887 = vor.u32 1.1754944e-38, %v886
    %v888 = vsel %vm885, %v887, %v883
    %v889 = vmul.f32 1.0, %v888
    %v890 = vadd.f32 %v752, %v848
    %v891 = vxor.u32 %v890, 2147483648
    %v892 = vmul.f32 %v891, 1.442695
    %v893 = vpow.pop %v892
    %v894 = vadd.f32 %v893, 1.0
    %v895 = vrcp.pop %v894
    %v896 = vmul.f32 %v894, %v895
    %v897 = vsub.f32 1.0, %v896
    %v898 = vmul.f32 %v895, %v897
    %v899 = vadd.f32 %v895, %v898
    %vm900 = vweird.f32 %v894
    %vm901 = vweird.f32 %v895
    %vm902 = vmor %vm900, %vm901
    %v903 = vsel %vm902, %v895, %v899
    %v904 = vand.u32 2147483647, %v894
    %vm905 = vcmp.eq.f32.partialorder %v904, 8.507059e+37
    %v906 = vand.u32 %v894, 2147483648
    %v907 = vor.u32 1.1754944e-38, %v906
    %v908 = vsel %vm905, %v907, %v903
    %v909 = vmul.f32 1.0, %v908
    %v910 = vmul.f32 %v889, %v868
    %v911 = vadd.f32 %v753, %v910
    %v912 = vtanh.pop %v911
    %v913 = vsub.f32 1.0, %v909
    %v914 = vmul.f32 %v913, %v912
    %v915 = vmul.f32 %v909, 0.0
    %v916 = vadd.f32 %v914, %v915
    %v917 = vld [vmem:[#allocation2 + $0x18] sm:$0xff]
    %v918 = vld [vmem:[#allocation2 + $0x20] sm:$0xff]
    %v919 = vld [vmem:[#allocation2 + $0x28] sm:$0xff]
    %920 = vmatpush.msra.mxu0 %v799
    %921 = vmatpush.msra.mxu0 %v796
    %922 = vmatpush.msra.mxu0 %v793
    %923 = vmatpush.msra.mxu0 %v790
    %924 = vmatpush.msra.mxu0 %v787
    %925 = vmatpush.msra.mxu0 %v784
    %926 = vmatpush.msra.mxu0 %v781
    %927 = vmatpush.msra.mxu0 %v778
    %928 = vmatpush.msra.mxu0 %v775
    %929 = vmatpush.msra.mxu0 %v772
    %930 = vmatpush.msra.mxu0 %v769
    %931 = vmatpush.msra.mxu0 %v766
    %932 = vmatpush.msra.mxu0 %v763
    %933 = vmatpush.msra.mxu0 %v760
    %934 = vmatpush.msra.mxu0 %v757
    %935 = vmatpush.msra.mxu0 %v754
    %936 = vmatmul.f32.gmra.mxu0 %v916
    %v937 = vpop.f32.mrf.mxu0
    %v938 = vadd.f32 %v804, %v937
    %939 = vdwg.mxu0
    %940 = vmatpush.msra.mxu0 %v800
    %941 = vmatpush.msra.mxu0 %v797
    %942 = vmatpush.msra.mxu0 %v794
    %943 = vmatpush.msra.mxu0 %v791
    %944 = vmatpush.msra.mxu0 %v788
    %945 = vmatpush.msra.mxu0 %v785
    %946 = vmatpush.msra.mxu0 %v782
    %947 = vmatpush.msra.mxu0 %v779
    %948 = vmatpush.msra.mxu0 %v776
    %949 = vmatpush.msra.mxu0 %v773
    %950 = vmatpush.msra.mxu0 %v770
    %951 = vmatpush.msra.mxu0 %v767
    %952 = vmatpush.msra.mxu0 %v764
    %953 = vmatpush.msra.mxu0 %v761
    %954 = vmatpush.msra.mxu0 %v758
    %955 = vmatpush.msra.mxu0 %v755
    %956 = vmatmul.f32.gmra.mxu0 %v916
    %v957 = vpop.f32.mrf.mxu0
    %v958 = vadd.f32 %v805, %v957
    %959 = vdwg.mxu0
    %960 = vmatpush.msra.mxu0 %v801
    %961 = vmatpush.msra.mxu0 %v798
    %962 = vmatpush.msra.mxu0 %v795
    %963 = vmatpush.msra.mxu0 %v792
    %964 = vmatpush.msra.mxu0 %v789
    %965 = vmatpush.msra.mxu0 %v786
    %966 = vmatpush.msra.mxu0 %v783
    %967 = vmatpush.msra.mxu0 %v780
    %968 = vmatpush.msra.mxu0 %v777
    %969 = vmatpush.msra.mxu0 %v774
    %970 = vmatpush.msra.mxu0 %v771
    %971 = vmatpush.msra.mxu0 %v768
    %972 = vmatpush.msra.mxu0 %v765
    %973 = vmatpush.msra.mxu0 %v762
    %974 = vmatpush.msra.mxu0 %v759
    %975 = vmatpush.msra.mxu0 %v756
    %976 = vmatmul.f32.gmra.mxu0 %v916
    %v977 = vpop.f32.mrf.mxu0
    %v978 = vadd.f32 %v806, %v977
    %979 = vdwg.mxu0
    %v980 = vadd.f32 %v917, %v938
    %v981 = vxor.u32 %v980, 2147483648
    %v982 = vmul.f32 %v981, 1.442695
    %v983 = vpow.pop %v982
    %v984 = vadd.f32 %v983, 1.0
    %v985 = vrcp.pop %v984
    %v986 = vmul.f32 %v984, %v985
    %v987 = vsub.f32 1.0, %v986
    %v988 = vmul.f32 %v985, %v987
    %v989 = vadd.f32 %v985, %v988
    %vm990 = vweird.f32 %v984
    %vm991 = vweird.f32 %v985
    %vm992 = vmor %vm990, %vm991
    %v993 = vsel %vm992, %v985, %v989
    %v994 = vand.u32 2147483647, %v984
    %vm995 = vcmp.eq.f32.partialorder %v994, 8.507059e+37
    %v996 = vand.u32 %v984, 2147483648
    %v997 = vor.u32 1.1754944e-38, %v996
    %v998 = vsel %vm995, %v997, %v993
    %v999 = vmul.f32 1.0, %v998
    %v1000 = vadd.f32 %v918, %v958
    %v1001 = vxor.u32 %v1000, 2147483648
    %v1002 = vmul.f32 %v1001, 1.442695
    %v1003 = vpow.pop %v1002
    %v1004 = vadd.f32 %v1003, 1.0
    %v1005 = vrcp.pop %v1004
    %v1006 = vmul.f32 %v1004, %v1005
    %v1007 = vsub.f32 1.0, %v1006
    %v1008 = vmul.f32 %v1005, %v1007
    %v1009 = vadd.f32 %v1005, %v1008
    %vm1010 = vweird.f32 %v1004
    %vm1011 = vweird.f32 %v1005
    %vm1012 = vmor %vm1010, %vm1011
    %v1013 = vsel %vm1012, %v1005, %v1009
    %v1014 = vand.u32 2147483647, %v1004
    %vm1015 = vcmp.eq.f32.partialorder %v1014, 8.507059e+37
    %v1016 = vand.u32 %v1004, 2147483648
    %v1017 = vor.u32 1.1754944e-38, %v1016
    %v1018 = vsel %vm1015, %v1017, %v1013
    %v1019 = vmul.f32 1.0, %v1018
    %v1020 = vmul.f32 %v999, %v978
    %v1021 = vadd.f32 %v919, %v1020
    %v1022 = vtanh.pop %v1021
    %v1023 = vsub.f32 1.0, %v1019
    %v1024 = vmul.f32 %v1023, %v1022
    %v1025 = vmul.f32 %v1019, %v916
    %v1026 = vadd.f32 %v1024, %v1025
    %v1027 = vld [vmem:[#allocation2 + $0x30] sm:$0xff]
    %v1028 = vld [vmem:[#allocation2 + $0x38] sm:$0xff]
    %v1029 = vld [vmem:[#allocation2 + $0x40] sm:$0xff]
    %1030 = vmatpush.msra.mxu0 %v799
    %1031 = vmatpush.msra.mxu0 %v796
    %1032 = vmatpush.msra.mxu0 %v793
    %1033 = vmatpush.msra.mxu0 %v790
    %1034 = vmatpush.msra.mxu0 %v787
    %1035 = vmatpush.msra.mxu0 %v784
    %1036 = vmatpush.msra.mxu0 %v781
    %1037 = vmatpush.msra.mxu0 %v778
    %1038 = vmatpush.msra.mxu0 %v775
    %1039 = vmatpush.msra.mxu0 %v772
    %1040 = vmatpush.msra.mxu0 %v769
    %1041 = vmatpush.msra.mxu0 %v766
    %1042 = vmatpush.msra.mxu0 %v763
    %1043 = vmatpush.msra.mxu0 %v760
    %1044 = vmatpush.msra.mxu0 %v757
    %1045 = vmatpush.msra.mxu0 %v754
    %1046 = vmatmul.f32.gmra.mxu0 %v1026
    %v1047 = vpop.f32.mrf.mxu0
    %v1048 = vadd.f32 %v804, %v1047
    %1049 = vdwg.mxu0
    %1050 = vmatpush.msra.mxu0 %v800
    %1051 = vmatpush.msra.mxu0 %v797
    %1052 = vmatpush.msra.mxu0 %v794
    %1053 = vmatpush.msra.mxu0 %v791
    %1054 = vmatpush.msra.mxu0 %v788
    %1055 = vmatpush.msra.mxu0 %v785
    %1056 = vmatpush.msra.mxu0 %v782
    %1057 = vmatpush.msra.mxu0 %v779
    %1058 = vmatpush.msra.mxu0 %v776
    %1059 = vmatpush.msra.mxu0 %v773
    %1060 = vmatpush.msra.mxu0 %v770
    %1061 = vmatpush.msra.mxu0 %v767
    %1062 = vmatpush.msra.mxu0 %v764
    %1063 = vmatpush.msra.mxu0 %v761
    %1064 = vmatpush.msra.mxu0 %v758
    %1065 = vmatpush.msra.mxu0 %v755
    %1066 = vmatmul.f32.gmra.mxu0 %v1026
    %v1067 = vpop.f32.mrf.mxu0
    %v1068 = vadd.f32 %v805, %v1067
    %1069 = vdwg.mxu0
    %1070 = vmatpush.msra.mxu0 %v801
    %1071 = vmatpush.msra.mxu0 %v798
    %1072 = vmatpush.msra.mxu0 %v795
    %1073 = vmatpush.msra.mxu0 %v792
    %1074 = vmatpush.msra.mxu0 %v789
    %1075 = vmatpush.msra.mxu0 %v786
    %1076 = vmatpush.msra.mxu0 %v783
    %1077 = vmatpush.msra.mxu0 %v780
    %1078 = vmatpush.msra.mxu0 %v777
    %1079 = vmatpush.msra.mxu0 %v774
    %1080 = vmatpush.msra.mxu0 %v771
    %1081 = vmatpush.msra.mxu0 %v768
    %1082 = vmatpush.msra.mxu0 %v765
    %1083 = vmatpush.msra.mxu0 %v762
    %1084 = vmatpush.msra.mxu0 %v759
    %1085 = vmatpush.msra.mxu0 %v756
    %1086 = vmatmul.f32.gmra.mxu0 %v1026
    %v1087 = vpop.f32.mrf.mxu0
    %v1088 = vadd.f32 %v806, %v1087
    %1089 = vdwg.mxu0
    %v1090 = vadd.f32 %v1027, %v1048
    %v1091 = vxor.u32 %v1090, 2147483648
    %v1092 = vmul.f32 %v1091, 1.442695
    %v1093 = vpow.pop %v1092
    %v1094 = vadd.f32 %v1093, 1.0
    %v1095 = vrcp.pop %v1094
    %v1096 = vmul.f32 %v1094, %v1095
    %v1097 = vsub.f32 1.0, %v1096
    %v1098 = vmul.f32 %v1095, %v1097
    %v1099 = vadd.f32 %v1095, %v1098
    %vm1100 = vweird.f32 %v1094
    %vm1101 = vweird.f32 %v1095
    %vm1102 = vmor %vm1100, %vm1101
    %v1103 = vsel %vm1102, %v1095, %v1099
    %v1104 = vand.u32 2147483647, %v1094
    %vm1105 = vcmp.eq.f32.partialorder %v1104, 8.507059e+37
    %v1106 = vand.u32 %v1094, 2147483648
    %v1107 = vor.u32 1.1754944e-38, %v1106
    %v1108 = vsel %vm1105, %v1107, %v1103
    %v1109 = vmul.f32 1.0, %v1108
    %v1110 = vadd.f32 %v1028, %v1068
    %v1111 = vxor.u32 %v1110, 2147483648
    %v1112 = vmul.f32 %v1111, 1.442695
    %v1113 = vpow.pop %v1112
    %v1114 = vadd.f32 %v1113, 1.0
    %v1115 = vrcp.pop %v1114
    %v1116 = vmul.f32 %v1114, %v1115
    %v1117 = vsub.f32 1.0, %v1116
    %v1118 = vmul.f32 %v1115, %v1117
    %v1119 = vadd.f32 %v1115, %v1118
    %vm1120 = vweird.f32 %v1114
    %vm1121 = vweird.f32 %v1115
    %vm1122 = vmor %vm1120, %vm1121
    %v1123 = vsel %vm1122, %v1115, %v1119
    %v1124 = vand.u32 2147483647, %v1114
    %vm1125 = vcmp.eq.f32.partialorder %v1124, 8.507059e+37
    %v1126 = vand.u32 %v1114, 2147483648
    %v1127 = vor.u32 1.1754944e-38, %v1126
    %v1128 = vsel %vm1125, %v1127, %v1123
    %v1129 = vmul.f32 1.0, %v1128
    %v1130 = vmul.f32 %v1109, %v1088
    %v1131 = vadd.f32 %v1029, %v1130
    %v1132 = vtanh.pop %v1131
    %v1133 = vsub.f32 1.0, %v1129
    %v1134 = vmul.f32 %v1133, %v1132
    %v1135 = vmul.f32 %v1129, %v1026
    %v1136 = vadd.f32 %v1134, %v1135
    %v1137 = vld [vmem:[#allocation2 + $0x48] sm:$0xff]
    %v1138 = vld [vmem:[#allocation2 + $0x50] sm:$0xff]
    %v1139 = vld [vmem:[#allocation2 + $0x58] sm:$0xff]
    %1140 = vmatpush.msra.mxu0 %v799
    %1141 = vmatpush.msra.mxu0 %v796
    %1142 = vmatpush.msra.mxu0 %v793
    %1143 = vmatpush.msra.mxu0 %v790
    %1144 = vmatpush.msra.mxu0 %v787
    %1145 = vmatpush.msra.mxu0 %v784
    %1146 = vmatpush.msra.mxu0 %v781
    %1147 = vmatpush.msra.mxu0 %v778
    %1148 = vmatpush.msra.mxu0 %v775
    %1149 = vmatpush.msra.mxu0 %v772
    %1150 = vmatpush.msra.mxu0 %v769
    %1151 = vmatpush.msra.mxu0 %v766
    %1152 = vmatpush.msra.mxu0 %v763
    %1153 = vmatpush.msra.mxu0 %v760
    %1154 = vmatpush.msra.mxu0 %v757
    %1155 = vmatpush.msra.mxu0 %v754
    %1156 = vmatmul.f32.gmra.mxu0 %v1136
    %v1157 = vpop.f32.mrf.mxu0
    %v1158 = vadd.f32 %v804, %v1157
    %1159 = vdwg.mxu0
    %1160 = vmatpush.msra.mxu0 %v800
    %1161 = vmatpush.msra.mxu0 %v797
    %1162 = vmatpush.msra.mxu0 %v794
    %1163 = vmatpush.msra.mxu0 %v791
    %1164 = vmatpush.msra.mxu0 %v788
    %1165 = vmatpush.msra.mxu0 %v785
    %1166 = vmatpush.msra.mxu0 %v782
    %1167 = vmatpush.msra.mxu0 %v779
    %1168 = vmatpush.msra.mxu0 %v776
    %1169 = vmatpush.msra.mxu0 %v773
    %1170 = vmatpush.msra.mxu0 %v770
    %1171 = vmatpush.msra.mxu0 %v767
    %1172 = vmatpush.msra.mxu0 %v764
    %1173 = vmatpush.msra.mxu0 %v761
    %1174 = vmatpush.msra.mxu0 %v758
    %1175 = vmatpush.msra.mxu0 %v755
    %1176 = vmatmul.f32.gmra.mxu0 %v1136
    %v1177 = vpop.f32.mrf.mxu0
    %v1178 = vadd.f32 %v805, %v1177
    %1179 = vdwg.mxu0
    %1180 = vmatpush.msra.mxu0 %v801
    %1181 = vmatpush.msra.mxu0 %v798
    %1182 = vmatpush.msra.mxu0 %v795
    %1183 = vmatpush.msra.mxu0 %v792
    %1184 = vmatpush.msra.mxu0 %v789
    %1185 = vmatpush.msra.mxu0 %v786
    %1186 = vmatpush.msra.mxu0 %v783
    %1187 = vmatpush.msra.mxu0 %v780
    %1188 = vmatpush.msra.mxu0 %v777
    %1189 = vmatpush.msra.mxu0 %v774
    %1190 = vmatpush.msra.mxu0 %v771
    %1191 = vmatpush.msra.mxu0 %v768
    %1192 = vmatpush.msra.mxu0 %v765
    %1193 = vmatpush.msra.mxu0 %v762
    %1194 = vmatpush.msra.mxu0 %v759
    %1195 = vmatpush.msra.mxu0 %v756
    %1196 = vmatmul.f32.gmra.mxu0 %v1136
    %v1197 = vpop.f32.mrf.mxu0
    %v1198 = vadd.f32 %v806, %v1197
    %1199 = vdwg.mxu0
    %v1200 = vadd.f32 %v1137, %v1158
    %v1201 = vxor.u32 %v1200, 2147483648
    %v1202 = vmul.f32 %v1201, 1.442695
    %v1203 = vpow.pop %v1202
    %v1204 = vadd.f32 %v1203, 1.0
    %v1205 = vrcp.pop %v1204
    %v1206 = vmul.f32 %v1204, %v1205
    %v1207 = vsub.f32 1.0, %v1206
    %v1208 = vmul.f32 %v1205, %v1207
    %v1209 = vadd.f32 %v1205, %v1208
    %vm1210 = vweird.f32 %v1204
    %vm1211 = vweird.f32 %v1205
    %vm1212 = vmor %vm1210, %vm1211
    %v1213 = vsel %vm1212, %v1205, %v1209
    %v1214 = vand.u32 2147483647, %v1204
    %vm1215 = vcmp.eq.f32.partialorder %v1214, 8.507059e+37
    %v1216 = vand.u32 %v1204, 2147483648
    %v1217 = vor.u32 1.1754944e-38, %v1216
    %v1218 = vsel %vm1215, %v1217, %v1213
    %v1219 = vmul.f32 1.0, %v1218
    %v1220 = vadd.f32 %v1138, %v1178
    %v1221 = vxor.u32 %v1220, 2147483648
    %v1222 = vmul.f32 %v1221, 1.442695
    %v1223 = vpow.pop %v1222
    %v1224 = vadd.f32 %v1223, 1.0
    %v1225 = vrcp.pop %v1224
    %v1226 = vmul.f32 %v1224, %v1225
    %v1227 = vsub.f32 1.0, %v1226
    %v1228 = vmul.f32 %v1225, %v1227
    %v1229 = vadd.f32 %v1225, %v1228
    %vm1230 = vweird.f32 %v1224
    %vm1231 = vweird.f32 %v1225
    %vm1232 = vmor %vm1230, %vm1231
    %v1233 = vsel %vm1232, %v1225, %v1229
    %v1234 = vand.u32 2147483647, %v1224
    %vm1235 = vcmp.eq.f32.partialorder %v1234, 8.507059e+37
    %v1236 = vand.u32 %v1224, 2147483648
    %v1237 = vor.u32 1.1754944e-38, %v1236
    %v1238 = vsel %vm1235, %v1237, %v1233
    %v1239 = vmul.f32 1.0, %v1238
    %v1240 = vmul.f32 %v1219, %v1198
    %v1241 = vadd.f32 %v1139, %v1240
    %v1242 = vtanh.pop %v1241
    %v1243 = vsub.f32 1.0, %v1239
    %v1244 = vmul.f32 %v1243, %v1242
    %v1245 = vmul.f32 %v1239, %v1136
    %v1246 = vadd.f32 %v1244, %v1245
    %v1247 = vld [vmem:[#allocation2 + $0x60] sm:$0xff]
    %v1248 = vld [vmem:[#allocation2 + $0x68] sm:$0xff]
    %v1249 = vld [vmem:[#allocation2 + $0x70] sm:$0xff]
    %1250 = vmatpush.msra.mxu0 %v799
    %1251 = vmatpush.msra.mxu0 %v796
    %1252 = vmatpush.msra.mxu0 %v793
    %1253 = vmatpush.msra.mxu0 %v790
    %1254 = vmatpush.msra.mxu0 %v787
    %1255 = vmatpush.msra.mxu0 %v784
    %1256 = vmatpush.msra.mxu0 %v781
    %1257 = vmatpush.msra.mxu0 %v778
    %1258 = vmatpush.msra.mxu0 %v775
    %1259 = vmatpush.msra.mxu0 %v772
    %1260 = vmatpush.msra.mxu0 %v769
    %1261 = vmatpush.msra.mxu0 %v766
    %1262 = vmatpush.msra.mxu0 %v763
    %1263 = vmatpush.msra.mxu0 %v760
    %1264 = vmatpush.msra.mxu0 %v757
    %1265 = vmatpush.msra.mxu0 %v754
    %1266 = vmatmul.f32.gmra.mxu0 %v1246
    %v1267 = vpop.f32.mrf.mxu0
    %v1268 = vadd.f32 %v804, %v1267
    %1269 = vdwg.mxu0
    %1270 = vmatpush.msra.mxu0 %v800
    %1271 = vmatpush.msra.mxu0 %v797
    %1272 = vmatpush.msra.mxu0 %v794
    %1273 = vmatpush.msra.mxu0 %v791
    %1274 = vmatpush.msra.mxu0 %v788
    %1275 = vmatpush.msra.mxu0 %v785
    %1276 = vmatpush.msra.mxu0 %v782
    %1277 = vmatpush.msra.mxu0 %v779
    %1278 = vmatpush.msra.mxu0 %v776
    %1279 = vmatpush.msra.mxu0 %v773
    %1280 = vmatpush.msra.mxu0 %v770
    %1281 = vmatpush.msra.mxu0 %v767
    %1282 = vmatpush.msra.mxu0 %v764
    %1283 = vmatpush.msra.mxu0 %v761
    %1284 = vmatpush.msra.mxu0 %v758
    %1285 = vmatpush.msra.mxu0 %v755
    %1286 = vmatmul.f32.gmra.mxu0 %v1246
    %v1287 = vpop.f32.mrf.mxu0
    %v1288 = vadd.f32 %v805, %v1287
    %1289 = vdwg.mxu0
    %1290 = vmatpush.msra.mxu0 %v801
    %1291 = vmatpush.msra.mxu0 %v798
    %1292 = vmatpush.msra.mxu0 %v795
    %1293 = vmatpush.msra.mxu0 %v792
    %1294 = vmatpush.msra.mxu0 %v789
    %1295 = vmatpush.msra.mxu0 %v786
    %1296 = vmatpush.msra.mxu0 %v783
    %1297 = vmatpush.msra.mxu0 %v780
    %1298 = vmatpush.msra.mxu0 %v777
    %1299 = vmatpush.msra.mxu0 %v774
    %1300 = vmatpush.msra.mxu0 %v771
    %1301 = vmatpush.msra.mxu0 %v768
    %1302 = vmatpush.msra.mxu0 %v765
    %1303 = vmatpush.msra.mxu0 %v762
    %1304 = vmatpush.msra.mxu0 %v759
    %1305 = vmatpush.msra.mxu0 %v756
    %1306 = vmatmul.f32.gmra.mxu0 %v1246
    %v1307 = vpop.f32.mrf.mxu0
    %v1308 = vadd.f32 %v806, %v1307
    %1309 = vdwg.mxu0
    %v1310 = vadd.f32 %v1247, %v1268
    %v1311 = vxor.u32 %v1310, 2147483648
    %v1312 = vmul.f32 %v1311, 1.442695
    %v1313 = vpow.pop %v1312
    %v1314 = vadd.f32 %v1313, 1.0
    %v1315 = vrcp.pop %v1314
    %v1316 = vmul.f32 %v1314, %v1315
    %v1317 = vsub.f32 1.0, %v1316
    %v1318 = vmul.f32 %v1315, %v1317
    %v1319 = vadd.f32 %v1315, %v1318
    %vm1320 = vweird.f32 %v1314
    %vm1321 = vweird.f32 %v1315
    %vm1322 = vmor %vm1320, %vm1321
    %v1323 = vsel %vm1322, %v1315, %v1319
    %v1324 = vand.u32 2147483647, %v1314
    %vm1325 = vcmp.eq.f32.partialorder %v1324, 8.507059e+37
    %v1326 = vand.u32 %v1314, 2147483648
    %v1327 = vor.u32 1.1754944e-38, %v1326
    %v1328 = vsel %vm1325, %v1327, %v1323
    %v1329 = vmul.f32 1.0, %v1328
    %v1330 = vadd.f32 %v1248, %v1288
    %v1331 = vxor.u32 %v1330, 2147483648
    %v1332 = vmul.f32 %v1331, 1.442695
    %v1333 = vpow.pop %v1332
    %v1334 = vadd.f32 %v1333, 1.0
    %v1335 = vrcp.pop %v1334
    %v1336 = vmul.f32 %v1334, %v1335
    %v1337 = vsub.f32 1.0, %v1336
    %v1338 = vmul.f32 %v1335, %v1337
    %v1339 = vadd.f32 %v1335, %v1338
    %vm1340 = vweird.f32 %v1334
    %vm1341 = vweird.f32 %v1335
    %vm1342 = vmor %vm1340, %vm1341
    %v1343 = vsel %vm1342, %v1335, %v1339
    %v1344 = vand.u32 2147483647, %v1334
    %vm1345 = vcmp.eq.f32.partialorder %v1344, 8.507059e+37
    %v1346 = vand.u32 %v1334, 2147483648
    %v1347 = vor.u32 1.1754944e-38, %v1346
    %v1348 = vsel %vm1345, %v1347, %v1343
    %v1349 = vmul.f32 1.0, %v1348
    %v1350 = vmul.f32 %v1329, %v1308
    %v1351 = vadd.f32 %v1249, %v1350
    %v1352 = vtanh.pop %v1351
    %v1353 = vsub.f32 1.0, %v1349
    %v1354 = vmul.f32 %v1353, %v1352
    %v1355 = vmul.f32 %v1349, %v1246
    %v1356 = vadd.f32 %v1354, %v1355
    %v1357 = vld [vmem:[#allocation2 + $0x78] sm:$0xff]
    %v1358 = vld [vmem:[#allocation2 + $0x80] sm:$0xff]
    %v1359 = vld [vmem:[#allocation2 + $0x88] sm:$0xff]
    %1360 = vmatpush.msra.mxu0 %v799
    %1361 = vmatpush.msra.mxu0 %v796
    %1362 = vmatpush.msra.mxu0 %v793
    %1363 = vmatpush.msra.mxu0 %v790
    %1364 = vmatpush.msra.mxu0 %v787
    %1365 = vmatpush.msra.mxu0 %v784
    %1366 = vmatpush.msra.mxu0 %v781
    %1367 = vmatpush.msra.mxu0 %v778
    %1368 = vmatpush.msra.mxu0 %v775
    %1369 = vmatpush.msra.mxu0 %v772
    %1370 = vmatpush.msra.mxu0 %v769
    %1371 = vmatpush.msra.mxu0 %v766
    %1372 = vmatpush.msra.mxu0 %v763
    %1373 = vmatpush.msra.mxu0 %v760
    %1374 = vmatpush.msra.mxu0 %v757
    %1375 = vmatpush.msra.mxu0 %v754
    %1376 = vmatmul.f32.gmra.mxu0 %v1356
    %v1377 = vpop.f32.mrf.mxu0
    %v1378 = vadd.f32 %v804, %v1377
    %1379 = vdwg.mxu0
    %1380 = vmatpush.msra.mxu0 %v800
    %1381 = vmatpush.msra.mxu0 %v797
    %1382 = vmatpush.msra.mxu0 %v794
    %1383 = vmatpush.msra.mxu0 %v791
    %1384 = vmatpush.msra.mxu0 %v788
    %1385 = vmatpush.msra.mxu0 %v785
    %1386 = vmatpush.msra.mxu0 %v782
    %1387 = vmatpush.msra.mxu0 %v779
    %1388 = vmatpush.msra.mxu0 %v776
    %1389 = vmatpush.msra.mxu0 %v773
    %1390 = vmatpush.msra.mxu0 %v770
    %1391 = vmatpush.msra.mxu0 %v767
    %1392 = vmatpush.msra.mxu0 %v764
    %1393 = vmatpush.msra.mxu0 %v761
    %1394 = vmatpush.msra.mxu0 %v758
    %1395 = vmatpush.msra.mxu0 %v755
    %1396 = vmatmul.f32.gmra.mxu0 %v1356
    %v1397 = vpop.f32.mrf.mxu0
    %v1398 = vadd.f32 %v805, %v1397
    %1399 = vdwg.mxu0
    %1400 = vmatpush.msra.mxu0 %v801
    %1401 = vmatpush.msra.mxu0 %v798
    %1402 = vmatpush.msra.mxu0 %v795
    %1403 = vmatpush.msra.mxu0 %v792
    %1404 = vmatpush.msra.mxu0 %v789
    %1405 = vmatpush.msra.mxu0 %v786
    %1406 = vmatpush.msra.mxu0 %v783
    %1407 = vmatpush.msra.mxu0 %v780
    %1408 = vmatpush.msra.mxu0 %v777
    %1409 = vmatpush.msra.mxu0 %v774
    %1410 = vmatpush.msra.mxu0 %v771
    %1411 = vmatpush.msra.mxu0 %v768
    %1412 = vmatpush.msra.mxu0 %v765
    %1413 = vmatpush.msra.mxu0 %v762
    %1414 = vmatpush.msra.mxu0 %v759
    %1415 = vmatpush.msra.mxu0 %v756
    %1416 = vmatmul.f32.gmra.mxu0 %v1356
    %v1417 = vpop.f32.mrf.mxu0
    %v1418 = vadd.f32 %v806, %v1417
    %1419 = vdwg.mxu0
    %v1420 = vadd.f32 %v1357, %v1378
    %v1421 = vxor.u32 %v1420, 2147483648
    %v1422 = vmul.f32 %v1421, 1.442695
    %v1423 = vpow.pop %v1422
    %v1424 = vadd.f32 %v1423, 1.0
    %v1425 = vrcp.pop %v1424
    %v1426 = vmul.f32 %v1424, %v1425
    %v1427 = vsub.f32 1.0, %v1426
    %v1428 = vmul.f32 %v1425, %v1427
    %v1429 = vadd.f32 %v1425, %v1428
    %vm1430 = vweird.f32 %v1424
    %vm1431 = vweird.f32 %v1425
    %vm1432 = vmor %vm1430, %vm1431
    %v1433 = vsel %vm1432, %v1425, %v1429
    %v1434 = vand.u32 2147483647, %v1424
    %vm1435 = vcmp.eq.f32.partialorder %v1434, 8.507059e+37
    %v1436 = vand.u32 %v1424, 2147483648
    %v1437 = vor.u32 1.1754944e-38, %v1436
    %v1438 = vsel %vm1435, %v1437, %v1433
    %v1439 = vmul.f32 1.0, %v1438
    %v1440 = vadd.f32 %v1358, %v1398
    %v1441 = vxor.u32 %v1440, 2147483648
    %v1442 = vmul.f32 %v1441, 1.442695
    %v1443 = vpow.pop %v1442
    %v1444 = vadd.f32 %v1443, 1.0
    %v1445 = vrcp.pop %v1444
    %v1446 = vmul.f32 %v1444, %v1445
    %v1447 = vsub.f32 1.0, %v1446
    %v1448 = vmul.f32 %v1445, %v1447
    %v1449 = vadd.f32 %v1445, %v1448
    %vm1450 = vweird.f32 %v1444
    %vm1451 = vweird.f32 %v1445
    %vm1452 = vmor %vm1450, %vm1451
    %v1453 = vsel %vm1452, %v1445, %v1449
    %v1454 = vand.u32 2147483647, %v1444
    %vm1455 = vcmp.eq.f32.partialorder %v1454, 8.507059e+37
    %v1456 = vand.u32 %v1444, 2147483648
    %v1457 = vor.u32 1.1754944e-38, %v1456
    %v1458 = vsel %vm1455, %v1457, %v1453
    %v1459 = vmul.f32 1.0, %v1458
    %v1460 = vmul.f32 %v1439, %v1418
    %v1461 = vadd.f32 %v1359, %v1460
    %v1462 = vtanh.pop %v1461
    %v1463 = vsub.f32 1.0, %v1459
    %v1464 = vmul.f32 %v1463, %v1462
    %v1465 = vmul.f32 %v1459, %v1356
    %v1466 = vadd.f32 %v1464, %v1465
    %v1467 = vld [vmem:[#allocation2 + $0x90] sm:$0xff]
    %v1468 = vld [vmem:[#allocation2 + $0x98] sm:$0xff]
    %v1469 = vld [vmem:[#allocation2 + $0xa0] sm:$0xff]
    %1470 = vmatpush.msra.mxu0 %v799
    %1471 = vmatpush.msra.mxu0 %v796
    %1472 = vmatpush.msra.mxu0 %v793
    %1473 = vmatpush.msra.mxu0 %v790
    %1474 = vmatpush.msra.mxu0 %v787
    %1475 = vmatpush.msra.mxu0 %v784
    %1476 = vmatpush.msra.mxu0 %v781
    %1477 = vmatpush.msra.mxu0 %v778
    %1478 = vmatpush.msra.mxu0 %v775
    %1479 = vmatpush.msra.mxu0 %v772
    %1480 = vmatpush.msra.mxu0 %v769
    %1481 = vmatpush.msra.mxu0 %v766
    %1482 = vmatpush.msra.mxu0 %v763
    %1483 = vmatpush.msra.mxu0 %v760
    %1484 = vmatpush.msra.mxu0 %v757
    %1485 = vmatpush.msra.mxu0 %v754
    %1486 = vmatmul.f32.gmra.mxu0 %v1466
    %v1487 = vpop.f32.mrf.mxu0
    %v1488 = vadd.f32 %v804, %v1487
    %1489 = vdwg.mxu0
    %1490 = vmatpush.msra.mxu0 %v800
    %1491 = vmatpush.msra.mxu0 %v797
    %1492 = vmatpush.msra.mxu0 %v794
    %1493 = vmatpush.msra.mxu0 %v791
    %1494 = vmatpush.msra.mxu0 %v788
    %1495 = vmatpush.msra.mxu0 %v785
    %1496 = vmatpush.msra.mxu0 %v782
    %1497 = vmatpush.msra.mxu0 %v779
    %1498 = vmatpush.msra.mxu0 %v776
    %1499 = vmatpush.msra.mxu0 %v773
    %1500 = vmatpush.msra.mxu0 %v770
    %1501 = vmatpush.msra.mxu0 %v767
    %1502 = vmatpush.msra.mxu0 %v764
    %1503 = vmatpush.msra.mxu0 %v761
    %1504 = vmatpush.msra.mxu0 %v758
    %1505 = vmatpush.msra.mxu0 %v755
    %1506 = vmatmul.f32.gmra.mxu0 %v1466
    %v1507 = vpop.f32.mrf.mxu0
    %v1508 = vadd.f32 %v805, %v1507
    %1509 = vdwg.mxu0
    %1510 = vmatpush.msra.mxu0 %v801
    %1511 = vmatpush.msra.mxu0 %v798
    %1512 = vmatpush.msra.mxu0 %v795
    %1513 = vmatpush.msra.mxu0 %v792
    %1514 = vmatpush.msra.mxu0 %v789
    %1515 = vmatpush.msra.mxu0 %v786
    %1516 = vmatpush.msra.mxu0 %v783
    %1517 = vmatpush.msra.mxu0 %v780
    %1518 = vmatpush.msra.mxu0 %v777
    %1519 = vmatpush.msra.mxu0 %v774
    %1520 = vmatpush.msra.mxu0 %v771
    %1521 = vmatpush.msra.mxu0 %v768
    %1522 = vmatpush.msra.mxu0 %v765
    %1523 = vmatpush.msra.mxu0 %v762
    %1524 = vmatpush.msra.mxu0 %v759
    %1525 = vmatpush.msra.mxu0 %v756
    %1526 = vmatmul.f32.gmra.mxu0 %v1466
    %v1527 = vpop.f32.mrf.mxu0
    %v1528 = vadd.f32 %v806, %v1527
    %1529 = vdwg.mxu0
    %v1530 = vadd.f32 %v1467, %v1488
    %v1531 = vxor.u32 %v1530, 2147483648
    %v1532 = vmul.f32 %v1531, 1.442695
    %v1533 = vpow.pop %v1532
    %v1534 = vadd.f32 %v1533, 1.0
    %v1535 = vrcp.pop %v1534
    %v1536 = vmul.f32 %v1534, %v1535
    %v1537 = vsub.f32 1.0, %v1536
    %v1538 = vmul.f32 %v1535, %v1537
    %v1539 = vadd.f32 %v1535, %v1538
    %vm1540 = vweird.f32 %v1534
    %vm1541 = vweird.f32 %v1535
    %vm1542 = vmor %vm1540, %vm1541
    %v1543 = vsel %vm1542, %v1535, %v1539
    %v1544 = vand.u32 2147483647, %v1534
    %vm1545 = vcmp.eq.f32.partialorder %v1544, 8.507059e+37
    %v1546 = vand.u32 %v1534, 2147483648
    %v1547 = vor.u32 1.1754944e-38, %v1546
    %v1548 = vsel %vm1545, %v1547, %v1543
    %v1549 = vmul.f32 1.0, %v1548
    %v1550 = vadd.f32 %v1468, %v1508
    %v1551 = vxor.u32 %v1550, 2147483648
    %v1552 = vmul.f32 %v1551, 1.442695
    %v1553 = vpow.pop %v1552
    %v1554 = vadd.f32 %v1553, 1.0
    %v1555 = vrcp.pop %v1554
    %v1556 = vmul.f32 %v1554, %v1555
    %v1557 = vsub.f32 1.0, %v1556
    %v1558 = vmul.f32 %v1555, %v1557
    %v1559 = vadd.f32 %v1555, %v1558
    %vm1560 = vweird.f32 %v1554
    %vm1561 = vweird.f32 %v1555
    %vm1562 = vmor %vm1560, %vm1561
    %v1563 = vsel %vm1562, %v1555, %v1559
    %v1564 = vand.u32 2147483647, %v1554
    %vm1565 = vcmp.eq.f32.partialorder %v1564, 8.507059e+37
    %v1566 = vand.u32 %v1554, 2147483648
    %v1567 = vor.u32 1.1754944e-38, %v1566
    %v1568 = vsel %vm1565, %v1567, %v1563
    %v1569 = vmul.f32 1.0, %v1568
    %v1570 = vmul.f32 %v1549, %v1528
    %v1571 = vadd.f32 %v1469, %v1570
    %v1572 = vtanh.pop %v1571
    %v1573 = vsub.f32 1.0, %v1569
    %v1574 = vmul.f32 %v1573, %v1572
    %v1575 = vmul.f32 %v1569, %v1466
    %v1576 = vadd.f32 %v1574, %v1575
    %v1577 = vld [vmem:[#allocation2 + $0xa8] sm:$0xff]
    %v1578 = vld [vmem:[#allocation2 + $0xb0] sm:$0xff]
    %v1579 = vld [vmem:[#allocation2 + $0xb8] sm:$0xff]
    %1580 = vmatpush.msra.mxu0 %v799
    %1581 = vmatpush.msra.mxu0 %v796
    %1582 = vmatpush.msra.mxu0 %v793
    %1583 = vmatpush.msra.mxu0 %v790
    %1584 = vmatpush.msra.mxu0 %v787
    %1585 = vmatpush.msra.mxu0 %v784
    %1586 = vmatpush.msra.mxu0 %v781
    %1587 = vmatpush.msra.mxu0 %v778
    %1588 = vmatpush.msra.mxu0 %v775
    %1589 = vmatpush.msra.mxu0 %v772
    %1590 = vmatpush.msra.mxu0 %v769
    %1591 = vmatpush.msra.mxu0 %v766
    %1592 = vmatpush.msra.mxu0 %v763
    %1593 = vmatpush.msra.mxu0 %v760
    %1594 = vmatpush.msra.mxu0 %v757
    %1595 = vmatpush.msra.mxu0 %v754
    %1596 = vmatmul.f32.gmra.mxu0 %v1576
    %v1597 = vpop.f32.mrf.mxu0
    %v1598 = vadd.f32 %v804, %v1597
    %1599 = vdwg.mxu0
    %1600 = vmatpush.msra.mxu0 %v800
    %1601 = vmatpush.msra.mxu0 %v797
    %1602 = vmatpush.msra.mxu0 %v794
    %1603 = vmatpush.msra.mxu0 %v791
    %1604 = vmatpush.msra.mxu0 %v788
    %1605 = vmatpush.msra.mxu0 %v785
    %1606 = vmatpush.msra.mxu0 %v782
    %1607 = vmatpush.msra.mxu0 %v779
    %1608 = vmatpush.msra.mxu0 %v776
    %1609 = vmatpush.msra.mxu0 %v773
    %1610 = vmatpush.msra.mxu0 %v770
    %1611 = vmatpush.msra.mxu0 %v767
    %1612 = vmatpush.msra.mxu0 %v764
    %1613 = vmatpush.msra.mxu0 %v761
    %1614 = vmatpush.msra.mxu0 %v758
    %1615 = vmatpush.msra.mxu0 %v755
    %1616 = vmatmul.f32.gmra.mxu0 %v1576
    %v1617 = vpop.f32.mrf.mxu0
    %v1618 = vadd.f32 %v805, %v1617
    %1619 = vdwg.mxu0
    %1620 = vmatpush.msra.mxu0 %v801
    %1621 = vmatpush.msra.mxu0 %v798
    %1622 = vmatpush.msra.mxu0 %v795
    %1623 = vmatpush.msra.mxu0 %v792
    %1624 = vmatpush.msra.mxu0 %v789
    %1625 = vmatpush.msra.mxu0 %v786
    %1626 = vmatpush.msra.mxu0 %v783
    %1627 = vmatpush.msra.mxu0 %v780
    %1628 = vmatpush.msra.mxu0 %v777
    %1629 = vmatpush.msra.mxu0 %v774
    %1630 = vmatpush.msra.mxu0 %v771
    %1631 = vmatpush.msra.mxu0 %v768
    %1632 = vmatpush.msra.mxu0 %v765
    %1633 = vmatpush.msra.mxu0 %v762
    %1634 = vmatpush.msra.mxu0 %v759
    %1635 = vmatpush.msra.mxu0 %v756
    %1636 = vmatmul.f32.gmra.mxu0 %v1576
    %v1637 = vpop.f32.mrf.mxu0
    %v1638 = vadd.f32 %v806, %v1637
    %1639 = vdwg.mxu0
    %v1640 = vadd.f32 %v1577, %v1598
    %v1641 = vxor.u32 %v1640, 2147483648
    %v1642 = vmul.f32 %v1641, 1.442695
    %v1643 = vpow.pop %v1642
    %v1644 = vadd.f32 %v1643, 1.0
    %v1645 = vrcp.pop %v1644
    %v1646 = vmul.f32 %v1644, %v1645
    %v1647 = vsub.f32 1.0, %v1646
    %v1648 = vmul.f32 %v1645, %v1647
    %v1649 = vadd.f32 %v1645, %v1648
    %vm1650 = vweird.f32 %v1644
    %vm1651 = vweird.f32 %v1645
    %vm1652 = vmor %vm1650, %vm1651
    %v1653 = vsel %vm1652, %v1645, %v1649
    %v1654 = vand.u32 2147483647, %v1644
    %vm1655 = vcmp.eq.f32.partialorder %v1654, 8.507059e+37
    %v1656 = vand.u32 %v1644, 2147483648
    %v1657 = vor.u32 1.1754944e-38, %v1656
    %v1658 = vsel %vm1655, %v1657, %v1653
    %v1659 = vmul.f32 1.0, %v1658
    %v1660 = vadd.f32 %v1578, %v1618
    %v1661 = vxor.u32 %v1660, 2147483648
    %v1662 = vmul.f32 %v1661, 1.442695
    %v1663 = vpow.pop %v1662
    %v1664 = vadd.f32 %v1663, 1.0
    %v1665 = vrcp.pop %v1664
    %v1666 = vmul.f32 %v1664, %v1665
    %v1667 = vsub.f32 1.0, %v1666
    %v1668 = vmul.f32 %v1665, %v1667
    %v1669 = vadd.f32 %v1665, %v1668
    %vm1670 = vweird.f32 %v1664
    %vm1671 = vweird.f32 %v1665
    %vm1672 = vmor %vm1670, %vm1671
    %v1673 = vsel %vm1672, %v1665, %v1669
    %v1674 = vand.u32 2147483647, %v1664
    %vm1675 = vcmp.eq.f32.partialorder %v1674, 8.507059e+37
    %v1676 = vand.u32 %v1664, 2147483648
    %v1677 = vor.u32 1.1754944e-38, %v1676
    %v1678 = vsel %vm1675, %v1677, %v1673
    %v1679 = vmul.f32 1.0, %v1678
    %v1680 = vmul.f32 %v1659, %v1638
    %v1681 = vadd.f32 %v1579, %v1680
    %v1682 = vtanh.pop %v1681
    %v1683 = vsub.f32 1.0, %v1679
    %v1684 = vmul.f32 %v1683, %v1682
    %v1685 = vmul.f32 %v1679, %v1576
    %v1686 = vadd.f32 %v1684, %v1685
    %v1687 = vld [vmem:[#allocation10] sm:$0xff]
    %v1688 = vld [vmem:[#allocation10 + $0x8] sm:$0xff]
    %v1689 = vld [vmem:[#allocation10 + $0x10] sm:$0xff]
    %v1690 = vld [vmem:[#allocation10 + $0x18] sm:$0xff]
    %v1691 = vld [vmem:[#allocation10 + $0x20] sm:$0xff]
    %v1692 = vld [vmem:[#allocation10 + $0x28] sm:$0xff]
    %v1693 = vld [vmem:[#allocation10 + $0x30] sm:$0xff]
    %v1694 = vld [vmem:[#allocation10 + $0x38] sm:$0xff]
    %v1695 = vld [vmem:[#allocation10 + $0x40] sm:$0xff]
    %v1696 = vld [vmem:[#allocation10 + $0x48] sm:$0xff]
    %v1697 = vld [vmem:[#allocation10 + $0x50] sm:$0xff]
    %v1698 = vld [vmem:[#allocation10 + $0x58] sm:$0xff]
    %v1699 = vld [vmem:[#allocation10 + $0x60] sm:$0xff]
    %v1700 = vld [vmem:[#allocation10 + $0x68] sm:$0xff]
    %v1701 = vld [vmem:[#allocation10 + $0x70] sm:$0xff]
    %v1702 = vld [vmem:[#allocation10 + $0x78] sm:$0xff]
    %v1703 = vld [vmem:[%s7] sm:$0x1]
    %v1705 = vperm.slane %v1703, 0
    %1707 = vmatpush.msra.mxu0 %v1702
    %1708 = vmatpush.msra.mxu0 %v1701
    %1709 = vmatpush.msra.mxu0 %v1700
    %1710 = vmatpush.msra.mxu0 %v1699
    %1711 = vmatpush.msra.mxu0 %v1698
    %1712 = vmatpush.msra.mxu0 %v1697
    %1713 = vmatpush.msra.mxu0 %v1696
    %1714 = vmatpush.msra.mxu0 %v1695
    %1715 = vmatpush.msra.mxu0 %v1694
    %1716 = vmatpush.msra.mxu0 %v1693
    %1717 = vmatpush.msra.mxu0 %v1692
    %1718 = vmatpush.msra.mxu0 %v1691
    %1719 = vmatpush.msra.mxu0 %v1690
    %1720 = vmatpush.msra.mxu0 %v1689
    %1721 = vmatpush.msra.mxu0 %v1688
    %1722 = vmatpush.msra.mxu0 %v1687
    %1723 = vmatmul.f32.gmra.mxu0 %v1686
    %v1724 = vpop.f32.mrf.mxu0
    %v1725 = vadd.f32 %v1705, %v1724
    %1726 = vdwg.mxu0
    %1727 = vmax.xlane.f32.xlu0 %v1725
    %v1728 = vpop.xlane.xlu0 %1727
    %v1729 = vsub.f32 %v1725, %v1728
    %v1730 = vmul.f32 %v1729, 1.442695
    %v1731 = vpow.pop %v1730
    %1732 = vadd.xlane.f32.xlu0 %v1731
    %v1733 = vpop.xlane.xlu0 %1732
    %v1734 = vrcp.pop %v1733
    %v1735 = vmul.f32 %v1733, %v1734
    %v1736 = vsub.f32 1.0, %v1735
    %v1737 = vmul.f32 %v1734, %v1736
    %v1738 = vadd.f32 %v1734, %v1737
    %vm1739 = vweird.f32 %v1733
    %vm1740 = vweird.f32 %v1734
    %vm1741 = vmor %vm1739, %vm1740
    %v1742 = vsel %vm1741, %v1734, %v1738
    %v1743 = vand.u32 2147483647, %v1733
    %vm1744 = vcmp.eq.f32.partialorder %v1743, 8.507059e+37
    %v1745 = vand.u32 %v1733, 2147483648
    %v1746 = vor.u32 1.1754944e-38, %v1745
    %v1747 = vsel %vm1744, %v1746, %v1742
    %v1748 = vmul.f32 %v1731, %v1747
    %1749 = vst [vmem:[%s8] sm:$0xff] %v1748
    // Predicated region
    $region46: #{forward_batch.1} parent=1 // pred_check
      _
    $region47: #{forward_batch.1} parent=1 // pred_check_branch
      %1751 = sbr.rel (0) target = $region49
    $region48: #{forward_batch.1} parent=1 // pred_region
      _
    $region49: #{forward_batch.1} parent=1 // pred_fallthru
      _
    // Predicated region
    $region50: #{forward_batch.1} parent=1 // pred_check
      _
    $region51: #{forward_batch.1} parent=1 // pred_check_branch
      %1753 = sbr.rel (0) target = $region53
    $region52: #{forward_batch.1} parent=1 // pred_region
      _
    $region53: #{forward_batch.1} parent=1 // pred_fallthru
      _
    %1754 = vsyncpa [#allocation6], 1
    %1755 = vsyncpa [#allocation8], 1
    %1756 = vsyncpa [#allocation11], 1

</llo_original>
